<compile_context>
chip_gen: v5e
topology: v5e:2x2
jax: 0.10.0
libtpu: 0.0.40
codegen_flags: <defaults>
</compile_context>

<pallas_src>
from functools import partial

import jax
import jax.numpy as jnp
from jax.experimental import pallas as pl
from jax.experimental.pallas import tpu as pltpu

LATENT_DIMS = 2
IN_DIM = 784            # 28 * 28
PAD_DIM = 896           # 7 * 128  (lane-dense padding of the 784 feature dim)
HID_DIM = 512


def _round_up(n, m):
    return ((n + m - 1) // m) * m


# ---------------------------------------------------------------------------
# Kernel: one batch tile end-to-end (3 MXU matmuls + VPU/EUP elementwise).
# ---------------------------------------------------------------------------
def autoencoder_kernel(x_ref,                 # (TB, 896)  bf16
                       w1_ref, b1_ref,        # (896, 512) bf16 / (1, 512) f32
                       w23_ref, b23_ref,      # (512, 512) bf16 / (1, 512) f32
                       w4_ref, b4_ref,        # (512, 896) bf16 / (1, 896) f32
                       out_ref):              # (TB, 896)  f32
    x = x_ref[...]

    # encoder.linear1 + ReLU  (f32 accumulation on the MXU)
    h = jnp.dot(x, w1_ref[...], preferred_element_type=jnp.float32) + b1_ref[...]
    h = jnp.maximum(h, 0.0)

    # fused encoder.linear2 @ decoder.linear1 (no nonlinearity between them) + ReLU
    d = jnp.dot(h.astype(jnp.bfloat16), w23_ref[...],
                preferred_element_type=jnp.float32) + b23_ref[...]
    d = jnp.maximum(d, 0.0)

    # decoder.linear2 + sigmoid (tanh form: one EUP op, no divide)
    y = jnp.dot(d.astype(jnp.bfloat16), w4_ref[...],
                preferred_element_type=jnp.float32) + b4_ref[...]
    out_ref[...] = (0.5 * jnp.tanh(0.5 * y) + 0.5).astype(out_ref.dtype)


# ---------------------------------------------------------------------------
# Wrapper: flatten / pad / fuse-and-cast weights / pallas_call / un-pad.
# ---------------------------------------------------------------------------
def _prepare_params(params):
    """Fold the bottleneck layers, pad to 896 lanes, cast matmul weights to bf16."""
    w1, b1, w2, b2, w3, b3, w4, b4 = params
    w1p = jnp.pad(w1, ((0, PAD_DIM - IN_DIM), (0, 0))).astype(jnp.bfloat16)   # (896, 512)
    w23 = (w2 @ w3).astype(jnp.bfloat16)                                      # (512, 512)
    b23 = (b2 @ w3 + b3).astype(jnp.float32)                                  # (1, 512)
    w4p = jnp.pad(w4, ((0, 0), (0, PAD_DIM - IN_DIM))).astype(jnp.bfloat16)   # (512, 896)
    b4p = jnp.pad(b4, ((0, 0), (0, PAD_DIM - IN_DIM))).astype(jnp.float32)    # (1, 896)
    return w1p, b1.astype(jnp.float32), w23, b23, w4p, b4p


@partial(jax.jit, static_argnames=("batch_tile",))
def autoencoder_forward(x_nchw, params, *, batch_tile=256):
    """x_nchw: (B, 1, 28, 28) float32 -> (B, 1, 28, 28) float32."""
    B = x_nchw.shape[0]
    x_flat = x_nchw.reshape(B, IN_DIM).astype(jnp.float32)

    # Tile sizing: default 256 rows/tile; clamp down for small batches, keep a
    # multiple of 16 (bf16 sublane packing).  Once there's enough work, shrink
    # the tile so the grid has >= 2 steps (v7x megacore gets both cores busy).
    bt = min(_round_up(batch_tile, 16), _round_up(B, 16))
    if B >= 64 and _round_up(B, bt) // bt < 2:
        bt = max(16, _round_up((B + 1) // 2, 16))
    Bp = _round_up(B, bt)
    n_tiles = Bp // bt

    x_p = jnp.pad(x_flat, ((0, Bp - B), (0, PAD_DIM - IN_DIM))).astype(jnp.bfloat16)
    w1p, b1, w23, b23, w4p, b4p = _prepare_params(params)

    # Whole-array (grid-invariant) blocks for the weights / biases: DMA'd once.
    full = lambda shape: pl.BlockSpec(shape, lambda i: (0, 0))

    flops = 2 * Bp * (PAD_DIM * HID_DIM + HID_DIM * HID_DIM + HID_DIM * PAD_DIM)
    bytes_accessed = (x_p.size * 2                       # bf16 input
                      + Bp * PAD_DIM * 4                 # f32 output
                      + (w1p.size + w23.size + w4p.size) * 2
                      + (b1.size + b23.size + b4p.size) * 4)

    out_padded = pl.pallas_call(
        autoencoder_kernel,
        out_shape=jax.ShapeDtypeStruct((Bp, PAD_DIM), jnp.float32),
        grid_spec=pltpu.PrefetchScalarGridSpec(
            num_scalar_prefetch=0,
            grid=(n_tiles,),
            in_specs=[
                pl.BlockSpec((bt, PAD_DIM), lambda i: (i, 0)),    # x tile
                full(w1p.shape), full(b1.shape),
                full(w23.shape), full(b23.shape),
                full(w4p.shape), full(b4p.shape),
            ],
            out_specs=pl.BlockSpec((bt, PAD_DIM), lambda i: (i, 0)),
        ),
        compiler_params=pltpu.CompilerParams(
            # Batch axis is independent -> shard across TensorCores (v7x megacore).
            dimension_semantics=("parallel",),
        ),
        cost_estimate=pl.CostEstimate(
            flops=flops,
            transcendentals=Bp * PAD_DIM,
            bytes_accessed=bytes_accessed,
        ),
    )(x_p, w1p, b1, w23, b23, w4p, b4p)

    return out_padded[:B, :IN_DIM].reshape(B, 1, 28, 28)


# ---------------------------------------------------------------------------
# Params + pure-JAX reference (mirrors the PyTorch module exactly, in f32).
# ---------------------------------------------------------------------------
def init_params(key):
    """nn.Linear-style init: U(-1/sqrt(fan_in), +1/sqrt(fan_in)).
    Weights stored as (in, out); biases as (1, out)."""
    def linear(k, fan_in, fan_out):
        kw, kb = jax.random.split(k)
        bound = 1.0 / jnp.sqrt(fan_in)
        w = jax.random.uniform(kw, (fan_in, fan_out), jnp.float32, -bound, bound)
        b = jax.random.uniform(kb, (1, fan_out), jnp.float32, -bound, bound)
        return w, b

    k1, k2, k3, k4 = jax.random.split(key, 4)
    w1, b1 = linear(k1, IN_DIM, HID_DIM)        # encoder.linear1
    w2, b2 = linear(k2, HID_DIM, LATENT_DIMS)   # encoder.linear2
    w3, b3 = linear(k3, LATENT_DIMS, HID_DIM)   # decoder.linear1
    w4, b4 = linear(k4, HID_DIM, IN_DIM)        # decoder.linear2
    return (w1, b1, w2, b2, w3, b3, w4, b4)


def reference_forward(x_nchw, params):
    w1, b1, w2, b2, w3, b3, w4, b4 = params
    B = x_nchw.shape[0]
    x = x_nchw.reshape(B, IN_DIM)
    h = jax.nn.relu(x @ w1 + b1)
    z = h @ w2 + b2
    d = jax.nn.relu(z @ w3 + b3)
    y = jax.nn.sigmoid(d @ w4 + b4)
    return y.reshape(B, 1, 28, 28)


if __name__ == "__main__":
    key = jax.random.PRNGKey(0)
    kx, kp = jax.random.split(key)
    params = init_params(kp)

    # bf16 matmuls vs f32 reference -> relaxed tolerance (sigmoid output in [0,1]).
    TOL = 2e-2

    # Small-batch path (batch zero-padded up to a 16-row tile).
    B_small = 8
    x_small = jax.random.normal(kx, (B_small, 1, 28, 28), jnp.float32)
    out_small = jax.block_until_ready(autoencoder_forward(x_small, params))
    ref_small = reference_forward(x_small, params)
    assert out_small.shape == (B_small, 1, 28, 28), out_small.shape
    err_small = float(jnp.max(jnp.abs(out_small - ref_small)))
    assert err_small < TOL, err_small

    # Larger-batch path (tile shrinks to 128 rows -> 2 grid steps / both cores).
    B_big = 256
    x_big = jax.random.normal(kx, (B_big, 1, 28, 28), jnp.float32)
    out_big = jax.block_until_ready(autoencoder_forward(x_big, params))
    ref_big = reference_forward(x_big, params)
    assert out_big.shape == (B_big, 1, 28, 28), out_big.shape
    err_big = float(jnp.max(jnp.abs(out_big - ref_big)))
    assert err_big < TOL, err_big

    print("KERNEL_OK")
</pallas_src>

<mosaic_0001>
module attributes {stable_mosaic.version = 11 : i64} {
  func.func @autoencoder_kernel(%arg0: i32, %arg1: memref<16x896xbf16, #tpu.memory_space<vmem>>, %arg2: memref<896x512xbf16, #tpu.memory_space<vmem>>, %arg3: memref<1x512xf32, #tpu.memory_space<vmem>>, %arg4: memref<512x512xbf16, #tpu.memory_space<vmem>>, %arg5: memref<1x512xf32, #tpu.memory_space<vmem>>, %arg6: memref<512x896xbf16, #tpu.memory_space<vmem>>, %arg7: memref<1x896xf32, #tpu.memory_space<vmem>>, %arg8: memref<16x896xf32, #tpu.memory_space<vmem>>) attributes {dimension_semantics = [#tpu.dimension_semantics<parallel>], iteration_bounds = array<i64: 1>, scalar_prefetch = 0 : i64, scratch_operands = 0 : i64, tpu.core_type = #tpu.core_type<tc>, window_params = [{transform_indices = @transform_0, window_bounds = array<i64: 16, 896>}, {pipeline_mode = #tpu.pipeline_mode<synchronous>, transform_indices = @transform_1, window_bounds = array<i64: 896, 512>}, {pipeline_mode = #tpu.pipeline_mode<synchronous>, transform_indices = @transform_2, window_bounds = array<i64: 1, 512>}, {pipeline_mode = #tpu.pipeline_mode<synchronous>, transform_indices = @transform_3, window_bounds = array<i64: 512, 512>}, {pipeline_mode = #tpu.pipeline_mode<synchronous>, transform_indices = @transform_4, window_bounds = array<i64: 1, 512>}, {pipeline_mode = #tpu.pipeline_mode<synchronous>, transform_indices = @transform_5, window_bounds = array<i64: 512, 896>}, {pipeline_mode = #tpu.pipeline_mode<synchronous>, transform_indices = @transform_6, window_bounds = array<i64: 1, 896>}, {transform_indices = @transform_7, window_bounds = array<i64: 16, 896>}]} {
    %c0 = arith.constant 0 : index
    %c0_0 = arith.constant 0 : index
    %0 = vector.load %arg1[%c0, %c0_0] : memref<16x896xbf16, #tpu.memory_space<vmem>>, vector<16x896xbf16>
    %c0_1 = arith.constant 0 : index
    %c0_2 = arith.constant 0 : index
    %1 = vector.load %arg2[%c0_1, %c0_2] : memref<896x512xbf16, #tpu.memory_space<vmem>>, vector<896x512xbf16>
    %cst = arith.constant dense<0.000000e+00> : vector<16x512xf32>
    %2 = tpu.matmul %0, %1, %cst {dimension_numbers = #tpu.dot_dimension_numbers<[1], [0], [0], [1], [0, 0, 1, 1], [], []>} : vector<16x896xbf16>, vector<896x512xbf16>, vector<16x512xf32> -> vector<16x512xf32>
    %c0_3 = arith.constant 0 : index
    %c0_4 = arith.constant 0 : index
    %3 = vector.load %arg3[%c0_3, %c0_4] : memref<1x512xf32, #tpu.memory_space<vmem>>, vector<1x512xf32>
    %4 = vector.broadcast %3 : vector<1x512xf32> to vector<16x512xf32>
    %5 = arith.addf %2, %4 : vector<16x512xf32>
    %cst_5 = arith.constant 0.000000e+00 : f32
    %6 = vector.broadcast %cst_5 : f32 to vector<16x512xf32>
    %7 = arith.maximumf %5, %6 : vector<16x512xf32>
    %8 = arith.truncf %7 : vector<16x512xf32> to vector<16x512xbf16>
    %c0_6 = arith.constant 0 : index
    %c0_7 = arith.constant 0 : index
    %9 = vector.load %arg4[%c0_6, %c0_7] : memref<512x512xbf16, #tpu.memory_space<vmem>>, vector<512x512xbf16>
    %cst_8 = arith.constant dense<0.000000e+00> : vector<16x512xf32>
    %10 = tpu.matmul %8, %9, %cst_8 {dimension_numbers = #tpu.dot_dimension_numbers<[1], [0], [0], [1], [0, 0, 1, 1], [], []>} : vector<16x512xbf16>, vector<512x512xbf16>, vector<16x512xf32> -> vector<16x512xf32>
    %c0_9 = arith.constant 0 : index
    %c0_10 = arith.constant 0 : index
    %11 = vector.load %arg5[%c0_9, %c0_10] : memref<1x512xf32, #tpu.memory_space<vmem>>, vector<1x512xf32>
    %12 = vector.broadcast %11 : vector<1x512xf32> to vector<16x512xf32>
    %13 = arith.addf %10, %12 : vector<16x512xf32>
    %cst_11 = arith.constant 0.000000e+00 : f32
    %14 = vector.broadcast %cst_11 : f32 to vector<16x512xf32>
    %15 = arith.maximumf %13, %14 : vector<16x512xf32>
    %16 = arith.truncf %15 : vector<16x512xf32> to vector<16x512xbf16>
    %c0_12 = arith.constant 0 : index
    %c0_13 = arith.constant 0 : index
    %17 = vector.load %arg6[%c0_12, %c0_13] : memref<512x896xbf16, #tpu.memory_space<vmem>>, vector<512x896xbf16>
    %cst_14 = arith.constant dense<0.000000e+00> : vector<16x896xf32>
    %18 = tpu.matmul %16, %17, %cst_14 {dimension_numbers = #tpu.dot_dimension_numbers<[1], [0], [0], [1], [0, 0, 1, 1], [], []>} : vector<16x512xbf16>, vector<512x896xbf16>, vector<16x896xf32> -> vector<16x896xf32>
    %c0_15 = arith.constant 0 : index
    %c0_16 = arith.constant 0 : index
    %19 = vector.load %arg7[%c0_15, %c0_16] : memref<1x896xf32, #tpu.memory_space<vmem>>, vector<1x896xf32>
    %20 = vector.broadcast %19 : vector<1x896xf32> to vector<16x896xf32>
    %21 = arith.addf %18, %20 : vector<16x896xf32>
    %cst_17 = arith.constant 5.000000e-01 : f32
    %22 = vector.broadcast %cst_17 : f32 to vector<16x896xf32>
    %23 = arith.mulf %22, %21 : vector<16x896xf32>
    %24 = math.tanh %23 : vector<16x896xf32>
    %cst_18 = arith.constant 5.000000e-01 : f32
    %25 = vector.broadcast %cst_18 : f32 to vector<16x896xf32>
    %26 = arith.mulf %25, %24 : vector<16x896xf32>
    %cst_19 = arith.constant 5.000000e-01 : f32
    %27 = vector.broadcast %cst_19 : f32 to vector<16x896xf32>
    %28 = arith.addf %26, %27 : vector<16x896xf32>
    %c0_20 = arith.constant 0 : index
    %c0_21 = arith.constant 0 : index
    %29 = vector.load %arg8[%c0_20, %c0_21] : memref<16x896xf32, #tpu.memory_space<vmem>>, vector<16x896xf32>
    tpu.vector_store %arg8[%c0_20, %c0_21], %28 {strides = array<i32>} : memref<16x896xf32, #tpu.memory_space<vmem>>, vector<16x896xf32>,
    return
  }
  func.func @transform_0(%arg0: i32) -> (i32, i32) {
    %c0_i32 = arith.constant 0 : i32
    %c0_i32_0 = arith.constant 0 : i32
    return %arg0, %c0_i32 : i32, i32
  }
  func.func @transform_1(%arg0: i32) -> (i32, i32) {
    %c0_i32 = arith.constant 0 : i32
    %c0_i32_0 = arith.constant 0 : i32
    %c0_i32_1 = arith.constant 0 : i32
    return %c0_i32, %c0_i32_0 : i32, i32
  }
  func.func @transform_2(%arg0: i32) -> (i32, i32) {
    %c0_i32 = arith.constant 0 : i32
    %c0_i32_0 = arith.constant 0 : i32
    %c0_i32_1 = arith.constant 0 : i32
    return %c0_i32, %c0_i32_0 : i32, i32
  }
  func.func @transform_3(%arg0: i32) -> (i32, i32) {
    %c0_i32 = arith.constant 0 : i32
    %c0_i32_0 = arith.constant 0 : i32
    %c0_i32_1 = arith.constant 0 : i32
    return %c0_i32, %c0_i32_0 : i32, i32
  }
  func.func @transform_4(%arg0: i32) -> (i32, i32) {
    %c0_i32 = arith.constant 0 : i32
    %c0_i32_0 = arith.constant 0 : i32
    %c0_i32_1 = arith.constant 0 : i32
    return %c0_i32, %c0_i32_0 : i32, i32
  }
  func.func @transform_5(%arg0: i32) -> (i32, i32) {
    %c0_i32 = arith.constant 0 : i32
    %c0_i32_0 = arith.constant 0 : i32
    %c0_i32_1 = arith.constant 0 : i32
    return %c0_i32, %c0_i32_0 : i32, i32
  }
  func.func @transform_6(%arg0: i32) -> (i32, i32) {
    %c0_i32 = arith.constant 0 : i32
    %c0_i32_0 = arith.constant 0 : i32
    %c0_i32_1 = arith.constant 0 : i32
    return %c0_i32, %c0_i32_0 : i32, i32
  }
  func.func @transform_7(%arg0: i32) -> (i32, i32) {
    %c0_i32 = arith.constant 0 : i32
    %c0_i32_0 = arith.constant 0 : i32
    return %arg0, %c0_i32 : i32, i32
  }
}

</mosaic_0001>

<llo_original>
// kernel: autoencoder_forward.1
$region0: #{autoencoder_forward.1}
  #allocation0 [shape = 'u32[]', space=smem, size = 0x4, offset = 0x4, fixed_abs, tag = 'smem constant byte address 0x4 - core index']
  #allocation1 [shape = 'u32[72,128]{1,0:T(1,128)}', space=vmem, size = 0x9000, scoped, tag = 'internal scratch']
  %s0 = inlined_call_operand.vmem [shape: bf16[16,896], index: 0, kind: input, shape index: {}]
  %s1 = inlined_call_operand.vmem [shape: bf16[896,512], index: 1, kind: input, shape index: {}]
  %s2 = inlined_call_operand.vmem [shape: f32[1,512], index: 2, kind: input, shape index: {}]
  %s3 = inlined_call_operand.vmem [shape: bf16[512,512], index: 3, kind: input, shape index: {}]
  %s4 = inlined_call_operand.vmem [shape: f32[1,512], index: 4, kind: input, shape index: {}]
  %s5 = inlined_call_operand.vmem [shape: bf16[512,896], index: 5, kind: input, shape index: {}]
  %s6 = inlined_call_operand.vmem [shape: f32[1,896], index: 6, kind: input, shape index: {}]
  %s7 = inlined_call_operand.vmem [shape: f32[16,896], index: 7, kind: output, shape index: {}]
  %s8 = sld [smem:[#allocation0]]
  $region38: #{autoencoder_forward.1} parent=0
    _
  %s10 = ssub.s32 1, %s8
  %s11 = scalar_select 0, %s10, %s8
  // Predicated region
  $region2: #{autoencoder_forward.1} parent=0 // pred_check
    _
  $region3: #{autoencoder_forward.1} parent=0 // pred_check_branch
    %13 = sbr.rel (0) target = $region5
  $region4: #{autoencoder_forward.1} parent=0 // pred_region
    _
  $region5: #{autoencoder_forward.1} parent=0 // pred_fallthru
    _
  // Predicated region
  $region6: #{autoencoder_forward.1} parent=0 // pred_check
    _
  $region7: #{autoencoder_forward.1} parent=0 // pred_check_branch
    %15 = sbr.rel (0) target = $region9
  $region8: #{autoencoder_forward.1} parent=0 // pred_region
    _
  $region9: #{autoencoder_forward.1} parent=0 // pred_fallthru
    _
  // Predicated region
  $region10: #{autoencoder_forward.1} parent=0 // pred_check
    _
  $region11: #{autoencoder_forward.1} parent=0 // pred_check_branch
    %17 = sbr.rel (0) target = $region13
  $region12: #{autoencoder_forward.1} parent=0 // pred_region
    _
  $region13: #{autoencoder_forward.1} parent=0 // pred_fallthru
    _
  // Predicated region
  $region14: #{autoencoder_forward.1} parent=0 // pred_check
    _
  $region15: #{autoencoder_forward.1} parent=0 // pred_check_branch
    %19 = sbr.rel (0) target = $region17
  $region16: #{autoencoder_forward.1} parent=0 // pred_region
    _
  $region17: #{autoencoder_forward.1} parent=0 // pred_fallthru
    _
  // Predicated region
  $region18: #{autoencoder_forward.1} parent=0 // pred_check
    _
  $region19: #{autoencoder_forward.1} parent=0 // pred_check_branch
    %21 = sbr.rel (0) target = $region21
  $region20: #{autoencoder_forward.1} parent=0 // pred_region
    _
  $region21: #{autoencoder_forward.1} parent=0 // pred_fallthru
    _
  // Predicated region
  $region22: #{autoencoder_forward.1} parent=0 // pred_check
    _
  $region23: #{autoencoder_forward.1} parent=0 // pred_check_branch
    %23 = sbr.rel (0) target = $region25
  $region24: #{autoencoder_forward.1} parent=0 // pred_region
    _
  $region25: #{autoencoder_forward.1} parent=0 // pred_fallthru
    _
  // Predicated region
  $region26: #{autoencoder_forward.1} parent=0 // pred_check
    _
  $region27: #{autoencoder_forward.1} parent=0 // pred_check_branch
    %25 = sbr.rel (0) target = $region29
  $region28: #{autoencoder_forward.1} parent=0 // pred_region
    _
  $region29: #{autoencoder_forward.1} parent=0 // pred_fallthru
    _
  %v26 = vld [vmem:[%s0] sm:$0xff]
  %v27 = vld [vmem:[%s0 + $0x8] sm:$0xff]
  %v28 = vld [vmem:[%s0 + $0x10] sm:$0xff]
  %v29 = vld [vmem:[%s0 + $0x18] sm:$0xf]
  %v30 = vld [vmem:[%s0 + $0x1c] sm:$0xff]
  %v31 = vld [vmem:[%s0 + $0x24] sm:$0xff]
  %v32 = vld [vmem:[%s0 + $0x2c] sm:$0xff]
  %v33 = vld [vmem:[%s0 + $0x34] sm:$0xf]
  %v34 = vld [vmem:[%s1] sm:$0xff]
  %v35 = vld [vmem:[%s1 + $0x8] sm:$0xff]
  %v36 = vld [vmem:[%s1 + $0x10] sm:$0xff]
  %v37 = vld [vmem:[%s1 + $0x18] sm:$0xff]
  %v38 = vld [vmem:[%s1 + $0x20] sm:$0xff]
  %v39 = vld [vmem:[%s1 + $0x28] sm:$0xff]
  %v40 = vld [vmem:[%s1 + $0x30] sm:$0xff]
  %v41 = vld [vmem:[%s1 + $0x38] sm:$0xff]
  %v42 = vld [vmem:[%s1 + $0x40] sm:$0xff]
  %v43 = vld [vmem:[%s1 + $0x48] sm:$0xff]
  %v44 = vld [vmem:[%s1 + $0x50] sm:$0xff]
  %v45 = vld [vmem:[%s1 + $0x58] sm:$0xff]
  %v46 = vld [vmem:[%s1 + $0x60] sm:$0xff]
  %v47 = vld [vmem:[%s1 + $0x68] sm:$0xff]
  %v48 = vld [vmem:[%s1 + $0x70] sm:$0xff]
  %v49 = vld [vmem:[%s1 + $0x78] sm:$0xff]
  %v50 = vld [vmem:[%s1 + $0x80] sm:$0xff]
  %v51 = vld [vmem:[%s1 + $0x88] sm:$0xff]
  %v52 = vld [vmem:[%s1 + $0x90] sm:$0xff]
  %v53 = vld [vmem:[%s1 + $0x98] sm:$0xff]
  %v54 = vld [vmem:[%s1 + $0xa0] sm:$0xff]
  %v55 = vld [vmem:[%s1 + $0xa8] sm:$0xff]
  %v56 = vld [vmem:[%s1 + $0xb0] sm:$0xff]
  %v57 = vld [vmem:[%s1 + $0xb8] sm:$0xff]
  %v58 = vld [vmem:[%s1 + $0xc0] sm:$0xff]
  %v59 = vld [vmem:[%s1 + $0xc8] sm:$0xff]
  %v60 = vld [vmem:[%s1 + $0xd0] sm:$0xff]
  %v61 = vld [vmem:[%s1 + $0xd8] sm:$0xff]
  %v62 = vld [vmem:[%s1 + $0xe0] sm:$0xff]
  %v63 = vld [vmem:[%s1 + $0xe8] sm:$0xff]
  %v64 = vld [vmem:[%s1 + $0xf0] sm:$0xff]
  %v65 = vld [vmem:[%s1 + $0xf8] sm:$0xff]
  %v66 = vld [vmem:[%s1 + $0x100] sm:$0xff]
  %v67 = vld [vmem:[%s1 + $0x108] sm:$0xff]
  %v68 = vld [vmem:[%s1 + $0x110] sm:$0xff]
  %v69 = vld [vmem:[%s1 + $0x118] sm:$0xff]
  %v70 = vld [vmem:[%s1 + $0x120] sm:$0xff]
  %v71 = vld [vmem:[%s1 + $0x128] sm:$0xff]
  %v72 = vld [vmem:[%s1 + $0x130] sm:$0xff]
  %v73 = vld [vmem:[%s1 + $0x138] sm:$0xff]
  %v74 = vld [vmem:[%s1 + $0x140] sm:$0xff]
  %v75 = vld [vmem:[%s1 + $0x148] sm:$0xff]
  %v76 = vld [vmem:[%s1 + $0x150] sm:$0xff]
  %v77 = vld [vmem:[%s1 + $0x158] sm:$0xff]
  %v78 = vld [vmem:[%s1 + $0x160] sm:$0xff]
  %v79 = vld [vmem:[%s1 + $0x168] sm:$0xff]
  %v80 = vld [vmem:[%s1 + $0x170] sm:$0xff]
  %v81 = vld [vmem:[%s1 + $0x178] sm:$0xff]
  %v82 = vld [vmem:[%s1 + $0x180] sm:$0xff]
  %v83 = vld [vmem:[%s1 + $0x188] sm:$0xff]
  %v84 = vld [vmem:[%s1 + $0x190] sm:$0xff]
  %v85 = vld [vmem:[%s1 + $0x198] sm:$0xff]
  %v86 = vld [vmem:[%s1 + $0x1a0] sm:$0xff]
  %v87 = vld [vmem:[%s1 + $0x1a8] sm:$0xff]
  %v88 = vld [vmem:[%s1 + $0x1b0] sm:$0xff]
  %v89 = vld [vmem:[%s1 + $0x1b8] sm:$0xff]
  %v90 = vld [vmem:[%s1 + $0x1c0] sm:$0xff]
  %v91 = vld [vmem:[%s1 + $0x1c8] sm:$0xff]
  %v92 = vld [vmem:[%s1 + $0x1d0] sm:$0xff]
  %v93 = vld [vmem:[%s1 + $0x1d8] sm:$0xff]
  %v94 = vld [vmem:[%s1 + $0x1e0] sm:$0xff]
  %v95 = vld [vmem:[%s1 + $0x1e8] sm:$0xff]
  %v96 = vld [vmem:[%s1 + $0x1f0] sm:$0xff]
  %v97 = vld [vmem:[%s1 + $0x1f8] sm:$0xff]
  %v98 = vld [vmem:[%s1 + $0x200] sm:$0xff]
  %v99 = vld [vmem:[%s1 + $0x208] sm:$0xff]
  %v100 = vld [vmem:[%s1 + $0x210] sm:$0xff]
  %v101 = vld [vmem:[%s1 + $0x218] sm:$0xff]
  %v102 = vld [vmem:[%s1 + $0x220] sm:$0xff]
  %v103 = vld [vmem:[%s1 + $0x228] sm:$0xff]
  %v104 = vld [vmem:[%s1 + $0x230] sm:$0xff]
  %v105 = vld [vmem:[%s1 + $0x238] sm:$0xff]
  %v106 = vld [vmem:[%s1 + $0x240] sm:$0xff]
  %v107 = vld [vmem:[%s1 + $0x248] sm:$0xff]
  %v108 = vld [vmem:[%s1 + $0x250] sm:$0xff]
  %v109 = vld [vmem:[%s1 + $0x258] sm:$0xff]
  %v110 = vld [vmem:[%s1 + $0x260] sm:$0xff]
  %v111 = vld [vmem:[%s1 + $0x268] sm:$0xff]
  %v112 = vld [vmem:[%s1 + $0x270] sm:$0xff]
  %v113 = vld [vmem:[%s1 + $0x278] sm:$0xff]
  %v114 = vld [vmem:[%s1 + $0x280] sm:$0xff]
  %v115 = vld [vmem:[%s1 + $0x288] sm:$0xff]
  %v116 = vld [vmem:[%s1 + $0x290] sm:$0xff]
  %v117 = vld [vmem:[%s1 + $0x298] sm:$0xff]
  %v118 = vld [vmem:[%s1 + $0x2a0] sm:$0xff]
  %v119 = vld [vmem:[%s1 + $0x2a8] sm:$0xff]
  %v120 = vld [vmem:[%s1 + $0x2b0] sm:$0xff]
  %v121 = vld [vmem:[%s1 + $0x2b8] sm:$0xff]
  %v122 = vld [vmem:[%s1 + $0x2c0] sm:$0xff]
  %v123 = vld [vmem:[%s1 + $0x2c8] sm:$0xff]
  %v124 = vld [vmem:[%s1 + $0x2d0] sm:$0xff]
  %v125 = vld [vmem:[%s1 + $0x2d8] sm:$0xff]
  %v126 = vld [vmem:[%s1 + $0x2e0] sm:$0xff]
  %v127 = vld [vmem:[%s1 + $0x2e8] sm:$0xff]
  %v128 = vld [vmem:[%s1 + $0x2f0] sm:$0xff]
  %v129 = vld [vmem:[%s1 + $0x2f8] sm:$0xff]
  %v130 = vld [vmem:[%s1 + $0x300] sm:$0xff]
  %v131 = vld [vmem:[%s1 + $0x308] sm:$0xff]
  %v132 = vld [vmem:[%s1 + $0x310] sm:$0xff]
  %v133 = vld [vmem:[%s1 + $0x318] sm:$0xff]
  %v134 = vld [vmem:[%s1 + $0x320] sm:$0xff]
  %v135 = vld [vmem:[%s1 + $0x328] sm:$0xff]
  %v136 = vld [vmem:[%s1 + $0x330] sm:$0xff]
  %v137 = vld [vmem:[%s1 + $0x338] sm:$0xff]
  %v138 = vld [vmem:[%s1 + $0x340] sm:$0xff]
  %v139 = vld [vmem:[%s1 + $0x348] sm:$0xff]
  %v140 = vld [vmem:[%s1 + $0x350] sm:$0xff]
  %v141 = vld [vmem:[%s1 + $0x358] sm:$0xff]
  %v142 = vld [vmem:[%s1 + $0x360] sm:$0xff]
  %v143 = vld [vmem:[%s1 + $0x368] sm:$0xff]
  %v144 = vld [vmem:[%s1 + $0x370] sm:$0xff]
  %v145 = vld [vmem:[%s1 + $0x378] sm:$0xff]
  %v146 = vld [vmem:[%s1 + $0x380] sm:$0xff]
  %v147 = vld [vmem:[%s1 + $0x388] sm:$0xff]
  %v148 = vld [vmem:[%s1 + $0x390] sm:$0xff]
  %v149 = vld [vmem:[%s1 + $0x398] sm:$0xff]
  %v150 = vld [vmem:[%s1 + $0x3a0] sm:$0xff]
  %v151 = vld [vmem:[%s1 + $0x3a8] sm:$0xff]
  %v152 = vld [vmem:[%s1 + $0x3b0] sm:$0xff]
  %v153 = vld [vmem:[%s1 + $0x3b8] sm:$0xff]
  %v154 = vld [vmem:[%s1 + $0x3c0] sm:$0xff]
  %v155 = vld [vmem:[%s1 + $0x3c8] sm:$0xff]
  %v156 = vld [vmem:[%s1 + $0x3d0] sm:$0xff]
  %v157 = vld [vmem:[%s1 + $0x3d8] sm:$0xff]
  %v158 = vld [vmem:[%s1 + $0x3e0] sm:$0xff]
  %v159 = vld [vmem:[%s1 + $0x3e8] sm:$0xff]
  %v160 = vld [vmem:[%s1 + $0x3f0] sm:$0xff]
  %v161 = vld [vmem:[%s1 + $0x3f8] sm:$0xff]
  %v162 = vld [vmem:[%s1 + $0x400] sm:$0xff]
  %v163 = vld [vmem:[%s1 + $0x408] sm:$0xff]
  %v164 = vld [vmem:[%s1 + $0x410] sm:$0xff]
  %v165 = vld [vmem:[%s1 + $0x418] sm:$0xff]
  %v166 = vld [vmem:[%s1 + $0x420] sm:$0xff]
  %v167 = vld [vmem:[%s1 + $0x428] sm:$0xff]
  %v168 = vld [vmem:[%s1 + $0x430] sm:$0xff]
  %v169 = vld [vmem:[%s1 + $0x438] sm:$0xff]
  %v170 = vld [vmem:[%s1 + $0x440] sm:$0xff]
  %v171 = vld [vmem:[%s1 + $0x448] sm:$0xff]
  %v172 = vld [vmem:[%s1 + $0x450] sm:$0xff]
  %v173 = vld [vmem:[%s1 + $0x458] sm:$0xff]
  %v174 = vld [vmem:[%s1 + $0x460] sm:$0xff]
  %v175 = vld [vmem:[%s1 + $0x468] sm:$0xff]
  %v176 = vld [vmem:[%s1 + $0x470] sm:$0xff]
  %v177 = vld [vmem:[%s1 + $0x478] sm:$0xff]
  %v178 = vld [vmem:[%s1 + $0x480] sm:$0xff]
  %v179 = vld [vmem:[%s1 + $0x488] sm:$0xff]
  %v180 = vld [vmem:[%s1 + $0x490] sm:$0xff]
  %v181 = vld [vmem:[%s1 + $0x498] sm:$0xff]
  %v182 = vld [vmem:[%s1 + $0x4a0] sm:$0xff]
  %v183 = vld [vmem:[%s1 + $0x4a8] sm:$0xff]
  %v184 = vld [vmem:[%s1 + $0x4b0] sm:$0xff]
  %v185 = vld [vmem:[%s1 + $0x4b8] sm:$0xff]
  %v186 = vld [vmem:[%s1 + $0x4c0] sm:$0xff]
  %v187 = vld [vmem:[%s1 + $0x4c8] sm:$0xff]
  %v188 = vld [vmem:[%s1 + $0x4d0] sm:$0xff]
  %v189 = vld [vmem:[%s1 + $0x4d8] sm:$0xff]
  %v190 = vld [vmem:[%s1 + $0x4e0] sm:$0xff]
  %v191 = vld [vmem:[%s1 + $0x4e8] sm:$0xff]
  %v192 = vld [vmem:[%s1 + $0x4f0] sm:$0xff]
  %v193 = vld [vmem:[%s1 + $0x4f8] sm:$0xff]
  %v194 = vld [vmem:[%s1 + $0x500] sm:$0xff]
  %v195 = vld [vmem:[%s1 + $0x508] sm:$0xff]
  %v196 = vld [vmem:[%s1 + $0x510] sm:$0xff]
  %v197 = vld [vmem:[%s1 + $0x518] sm:$0xff]
  %v198 = vld [vmem:[%s1 + $0x520] sm:$0xff]
  %v199 = vld [vmem:[%s1 + $0x528] sm:$0xff]
  %v200 = vld [vmem:[%s1 + $0x530] sm:$0xff]
  %v201 = vld [vmem:[%s1 + $0x538] sm:$0xff]
  %v202 = vld [vmem:[%s1 + $0x540] sm:$0xff]
  %v203 = vld [vmem:[%s1 + $0x548] sm:$0xff]
  %v204 = vld [vmem:[%s1 + $0x550] sm:$0xff]
  %v205 = vld [vmem:[%s1 + $0x558] sm:$0xff]
  %v206 = vld [vmem:[%s1 + $0x560] sm:$0xff]
  %v207 = vld [vmem:[%s1 + $0x568] sm:$0xff]
  %v208 = vld [vmem:[%s1 + $0x570] sm:$0xff]
  %v209 = vld [vmem:[%s1 + $0x578] sm:$0xff]
  %v210 = vld [vmem:[%s1 + $0x580] sm:$0xff]
  %v211 = vld [vmem:[%s1 + $0x588] sm:$0xff]
  %v212 = vld [vmem:[%s1 + $0x590] sm:$0xff]
  %v213 = vld [vmem:[%s1 + $0x598] sm:$0xff]
  %v214 = vld [vmem:[%s1 + $0x5a0] sm:$0xff]
  %v215 = vld [vmem:[%s1 + $0x5a8] sm:$0xff]
  %v216 = vld [vmem:[%s1 + $0x5b0] sm:$0xff]
  %v217 = vld [vmem:[%s1 + $0x5b8] sm:$0xff]
  %v218 = vld [vmem:[%s1 + $0x5c0] sm:$0xff]
  %v219 = vld [vmem:[%s1 + $0x5c8] sm:$0xff]
  %v220 = vld [vmem:[%s1 + $0x5d0] sm:$0xff]
  %v221 = vld [vmem:[%s1 + $0x5d8] sm:$0xff]
  %v222 = vld [vmem:[%s1 + $0x5e0] sm:$0xff]
  %v223 = vld [vmem:[%s1 + $0x5e8] sm:$0xff]
  %v224 = vld [vmem:[%s1 + $0x5f0] sm:$0xff]
  %v225 = vld [vmem:[%s1 + $0x5f8] sm:$0xff]
  %v226 = vld [vmem:[%s1 + $0x600] sm:$0xff]
  %v227 = vld [vmem:[%s1 + $0x608] sm:$0xff]
  %v228 = vld [vmem:[%s1 + $0x610] sm:$0xff]
  %v229 = vld [vmem:[%s1 + $0x618] sm:$0xff]
  %v230 = vld [vmem:[%s1 + $0x620] sm:$0xff]
  %v231 = vld [vmem:[%s1 + $0x628] sm:$0xff]
  %v232 = vld [vmem:[%s1 + $0x630] sm:$0xff]
  %v233 = vld [vmem:[%s1 + $0x638] sm:$0xff]
  %v234 = vld [vmem:[%s1 + $0x640] sm:$0xff]
  %v235 = vld [vmem:[%s1 + $0x648] sm:$0xff]
  %v236 = vld [vmem:[%s1 + $0x650] sm:$0xff]
  %v237 = vld [vmem:[%s1 + $0x658] sm:$0xff]
  %v238 = vld [vmem:[%s1 + $0x660] sm:$0xff]
  %v239 = vld [vmem:[%s1 + $0x668] sm:$0xff]
  %v240 = vld [vmem:[%s1 + $0x670] sm:$0xff]
  %v241 = vld [vmem:[%s1 + $0x678] sm:$0xff]
  %v242 = vld [vmem:[%s1 + $0x680] sm:$0xff]
  %v243 = vld [vmem:[%s1 + $0x688] sm:$0xff]
  %v244 = vld [vmem:[%s1 + $0x690] sm:$0xff]
  %v245 = vld [vmem:[%s1 + $0x698] sm:$0xff]
  %v246 = vld [vmem:[%s1 + $0x6a0] sm:$0xff]
  %v247 = vld [vmem:[%s1 + $0x6a8] sm:$0xff]
  %v248 = vld [vmem:[%s1 + $0x6b0] sm:$0xff]
  %v249 = vld [vmem:[%s1 + $0x6b8] sm:$0xff]
  %v250 = vld [vmem:[%s1 + $0x6c0] sm:$0xff]
  %v251 = vld [vmem:[%s1 + $0x6c8] sm:$0xff]
  %v252 = vld [vmem:[%s1 + $0x6d0] sm:$0xff]
  %v253 = vld [vmem:[%s1 + $0x6d8] sm:$0xff]
  %v254 = vld [vmem:[%s1 + $0x6e0] sm:$0xff]
  %v255 = vld [vmem:[%s1 + $0x6e8] sm:$0xff]
  %v256 = vld [vmem:[%s1 + $0x6f0] sm:$0xff]
  %v257 = vld [vmem:[%s1 + $0x6f8] sm:$0xff]
  %v258 = vld [vmem:[%s2] sm:$0xf]
  %v260 = vperm.slane %v258, 0
  %v261 = vperm.slane %v258, 1
  %v262 = vperm.slane %v258, 2
  %v263 = vperm.slane %v258, 3
  %v276 = vunpack.c.l.b16 %v26
  %v277 = vunpack.c.h.b16 %v26
  %v278 = vunpack.c.l.b16 %v27
  %v279 = vunpack.c.h.b16 %v27
  %v280 = vunpack.c.l.b16 %v28
  %v281 = vunpack.c.h.b16 %v28
  %v282 = vunpack.c.l.b16 %v29
  %v283 = vunpack.c.l.b16 %v30
  %v284 = vunpack.c.h.b16 %v30
  %v285 = vunpack.c.l.b16 %v31
  %v286 = vunpack.c.h.b16 %v31
  %v287 = vunpack.c.l.b16 %v32
  %v288 = vunpack.c.h.b16 %v32
  %v289 = vunpack.c.l.b16 %v33
  %v290 = vpack.c.b16 %v283, %v276
  %v291 = vpack.c.b16 %v284, %v277
  %v292 = vpack.c.b16 %v285, %v278
  %v293 = vpack.c.b16 %v286, %v279
  %v294 = vpack.c.b16 %v287, %v280
  %v295 = vpack.c.b16 %v288, %v281
  %v296 = vpack.c.b16 %v289, %v282
  %v528 = vunpack.c.l.b16 %v34
  %v529 = vunpack.c.h.b16 %v34
  %v530 = vunpack.c.l.b16 %v35
  %v531 = vunpack.c.h.b16 %v35
  %v532 = vunpack.c.l.b16 %v36
  %v533 = vunpack.c.h.b16 %v36
  %v534 = vunpack.c.l.b16 %v37
  %v535 = vunpack.c.h.b16 %v37
  %v536 = vunpack.c.l.b16 %v38
  %v537 = vunpack.c.h.b16 %v38
  %v538 = vunpack.c.l.b16 %v39
  %v539 = vunpack.c.h.b16 %v39
  %v540 = vunpack.c.l.b16 %v40
  %v541 = vunpack.c.h.b16 %v40
  %v542 = vunpack.c.l.b16 %v41
  %v543 = vunpack.c.h.b16 %v41
  %v544 = vunpack.c.l.b16 %v42
  %v545 = vunpack.c.h.b16 %v42
  %v546 = vunpack.c.l.b16 %v43
  %v547 = vunpack.c.h.b16 %v43
  %v548 = vunpack.c.l.b16 %v44
  %v549 = vunpack.c.h.b16 %v44
  %v550 = vunpack.c.l.b16 %v45
  %v551 = vunpack.c.h.b16 %v45
  %v552 = vunpack.c.l.b16 %v46
  %v553 = vunpack.c.h.b16 %v46
  %v554 = vunpack.c.l.b16 %v47
  %v555 = vunpack.c.h.b16 %v47
  %v556 = vunpack.c.l.b16 %v48
  %v557 = vunpack.c.h.b16 %v48
  %v558 = vunpack.c.l.b16 %v49
  %v559 = vunpack.c.h.b16 %v49
  %v560 = vunpack.c.l.b16 %v50
  %v561 = vunpack.c.h.b16 %v50
  %v562 = vunpack.c.l.b16 %v51
  %v563 = vunpack.c.h.b16 %v51
  %v564 = vunpack.c.l.b16 %v52
  %v565 = vunpack.c.h.b16 %v52
  %v566 = vunpack.c.l.b16 %v53
  %v567 = vunpack.c.h.b16 %v53
  %v568 = vunpack.c.l.b16 %v54
  %v569 = vunpack.c.h.b16 %v54
  %v570 = vunpack.c.l.b16 %v55
  %v571 = vunpack.c.h.b16 %v55
  %v572 = vunpack.c.l.b16 %v56
  %v573 = vunpack.c.h.b16 %v56
  %v574 = vunpack.c.l.b16 %v57
  %v575 = vunpack.c.h.b16 %v57
  %v576 = vunpack.c.l.b16 %v58
  %v577 = vunpack.c.h.b16 %v58
  %v578 = vunpack.c.l.b16 %v59
  %v579 = vunpack.c.h.b16 %v59
  %v580 = vunpack.c.l.b16 %v60
  %v581 = vunpack.c.h.b16 %v60
  %v582 = vunpack.c.l.b16 %v61
  %v583 = vunpack.c.h.b16 %v61
  %v584 = vunpack.c.l.b16 %v62
  %v585 = vunpack.c.h.b16 %v62
  %v586 = vunpack.c.l.b16 %v63
  %v587 = vunpack.c.h.b16 %v63
  %v588 = vunpack.c.l.b16 %v64
  %v589 = vunpack.c.h.b16 %v64
  %v590 = vunpack.c.l.b16 %v65
  %v591 = vunpack.c.h.b16 %v65
  %v592 = vunpack.c.l.b16 %v66
  %v593 = vunpack.c.h.b16 %v66
  %v594 = vunpack.c.l.b16 %v67
  %v595 = vunpack.c.h.b16 %v67
  %v596 = vunpack.c.l.b16 %v68
  %v597 = vunpack.c.h.b16 %v68
  %v598 = vunpack.c.l.b16 %v69
  %v599 = vunpack.c.h.b16 %v69
  %v600 = vunpack.c.l.b16 %v70
  %v601 = vunpack.c.h.b16 %v70
  %v602 = vunpack.c.l.b16 %v71
  %v603 = vunpack.c.h.b16 %v71
  %v604 = vunpack.c.l.b16 %v72
  %v605 = vunpack.c.h.b16 %v72
  %v606 = vunpack.c.l.b16 %v73
  %v607 = vunpack.c.h.b16 %v73
  %v608 = vunpack.c.l.b16 %v74
  %v609 = vunpack.c.h.b16 %v74
  %v610 = vunpack.c.l.b16 %v75
  %v611 = vunpack.c.h.b16 %v75
  %v612 = vunpack.c.l.b16 %v76
  %v613 = vunpack.c.h.b16 %v76
  %v614 = vunpack.c.l.b16 %v77
  %v615 = vunpack.c.h.b16 %v77
  %v616 = vunpack.c.l.b16 %v78
  %v617 = vunpack.c.h.b16 %v78
  %v618 = vunpack.c.l.b16 %v79
  %v619 = vunpack.c.h.b16 %v79
  %v620 = vunpack.c.l.b16 %v80
  %v621 = vunpack.c.h.b16 %v80
  %v622 = vunpack.c.l.b16 %v81
  %v623 = vunpack.c.h.b16 %v81
  %v624 = vunpack.c.l.b16 %v82
  %v625 = vunpack.c.h.b16 %v82
  %v626 = vunpack.c.l.b16 %v83
  %v627 = vunpack.c.h.b16 %v83
  %v628 = vunpack.c.l.b16 %v84
  %v629 = vunpack.c.h.b16 %v84
  %v630 = vunpack.c.l.b16 %v85
  %v631 = vunpack.c.h.b16 %v85
  %v632 = vunpack.c.l.b16 %v86
  %v633 = vunpack.c.h.b16 %v86
  %v634 = vunpack.c.l.b16 %v87
  %v635 = vunpack.c.h.b16 %v87
  %v636 = vunpack.c.l.b16 %v88
  %v637 = vunpack.c.h.b16 %v88
  %v638 = vunpack.c.l.b16 %v89
  %v639 = vunpack.c.h.b16 %v89
  %v640 = vunpack.c.l.b16 %v90
  %v641 = vunpack.c.h.b16 %v90
  %v642 = vunpack.c.l.b16 %v91
  %v643 = vunpack.c.h.b16 %v91
  %v644 = vunpack.c.l.b16 %v92
  %v645 = vunpack.c.h.b16 %v92
  %v646 = vunpack.c.l.b16 %v93
  %v647 = vunpack.c.h.b16 %v93
  %v648 = vunpack.c.l.b16 %v94
  %v649 = vunpack.c.h.b16 %v94
  %v650 = vunpack.c.l.b16 %v95
  %v651 = vunpack.c.h.b16 %v95
  %v652 = vunpack.c.l.b16 %v96
  %v653 = vunpack.c.h.b16 %v96
  %v654 = vunpack.c.l.b16 %v97
  %v655 = vunpack.c.h.b16 %v97
  %v656 = vunpack.c.l.b16 %v98
  %v657 = vunpack.c.h.b16 %v98
  %v658 = vunpack.c.l.b16 %v99
  %v659 = vunpack.c.h.b16 %v99
  %v660 = vunpack.c.l.b16 %v100
  %v661 = vunpack.c.h.b16 %v100
  %v662 = vunpack.c.l.b16 %v101
  %v663 = vunpack.c.h.b16 %v101
  %v664 = vunpack.c.l.b16 %v102
  %v665 = vunpack.c.h.b16 %v102
  %v666 = vunpack.c.l.b16 %v103
  %v667 = vunpack.c.h.b16 %v103
  %v668 = vunpack.c.l.b16 %v104
  %v669 = vunpack.c.h.b16 %v104
  %v670 = vunpack.c.l.b16 %v105
  %v671 = vunpack.c.h.b16 %v105
  %v672 = vunpack.c.l.b16 %v106
  %v673 = vunpack.c.h.b16 %v106
  %v674 = vunpack.c.l.b16 %v107
  %v675 = vunpack.c.h.b16 %v107
  %v676 = vunpack.c.l.b16 %v108
  %v677 = vunpack.c.h.b16 %v108
  %v678 = vunpack.c.l.b16 %v109
  %v679 = vunpack.c.h.b16 %v109
  %v680 = vunpack.c.l.b16 %v110
  %v681 = vunpack.c.h.b16 %v110
  %v682 = vunpack.c.l.b16 %v111
  %v683 = vunpack.c.h.b16 %v111
  %v684 = vunpack.c.l.b16 %v112
  %v685 = vunpack.c.h.b16 %v112
  %v686 = vunpack.c.l.b16 %v113
  %v687 = vunpack.c.h.b16 %v113
  %v688 = vunpack.c.l.b16 %v114
  %v689 = vunpack.c.h.b16 %v114
  %v690 = vunpack.c.l.b16 %v115
  %v691 = vunpack.c.h.b16 %v115
  %v692 = vunpack.c.l.b16 %v116
  %v693 = vunpack.c.h.b16 %v116
  %v694 = vunpack.c.l.b16 %v117
  %v695 = vunpack.c.h.b16 %v117
  %v696 = vunpack.c.l.b16 %v118
  %v697 = vunpack.c.h.b16 %v118
  %v698 = vunpack.c.l.b16 %v119
  %v699 = vunpack.c.h.b16 %v119
  %v700 = vunpack.c.l.b16 %v120
  %v701 = vunpack.c.h.b16 %v120
  %v702 = vunpack.c.l.b16 %v121
  %v703 = vunpack.c.h.b16 %v121
  %v704 = vunpack.c.l.b16 %v122
  %v705 = vunpack.c.h.b16 %v122
  %v706 = vunpack.c.l.b16 %v123
  %v707 = vunpack.c.h.b16 %v123
  %v708 = vunpack.c.l.b16 %v124
  %v709 = vunpack.c.h.b16 %v124
  %v710 = vunpack.c.l.b16 %v125
  %v711 = vunpack.c.h.b16 %v125
  %v712 = vunpack.c.l.b16 %v126
  %v713 = vunpack.c.h.b16 %v126
  %v714 = vunpack.c.l.b16 %v127
  %v715 = vunpack.c.h.b16 %v127
  %v716 = vunpack.c.l.b16 %v128
  %v717 = vunpack.c.h.b16 %v128
  %v718 = vunpack.c.l.b16 %v129
  %v719 = vunpack.c.h.b16 %v129
  %v720 = vunpack.c.l.b16 %v130
  %v721 = vunpack.c.h.b16 %v130
  %v722 = vunpack.c.l.b16 %v131
  %v723 = vunpack.c.h.b16 %v131
  %v724 = vunpack.c.l.b16 %v132
  %v725 = vunpack.c.h.b16 %v132
  %v726 = vunpack.c.l.b16 %v133
  %v727 = vunpack.c.h.b16 %v133
  %v728 = vunpack.c.l.b16 %v134
  %v729 = vunpack.c.h.b16 %v134
  %v730 = vunpack.c.l.b16 %v135
  %v731 = vunpack.c.h.b16 %v135
  %v732 = vunpack.c.l.b16 %v136
  %v733 = vunpack.c.h.b16 %v136
  %v734 = vunpack.c.l.b16 %v137
  %v735 = vunpack.c.h.b16 %v137
  %v736 = vunpack.c.l.b16 %v138
  %v737 = vunpack.c.h.b16 %v138
  %v738 = vunpack.c.l.b16 %v139
  %v739 = vunpack.c.h.b16 %v139
  %v740 = vunpack.c.l.b16 %v140
  %v741 = vunpack.c.h.b16 %v140
  %v742 = vunpack.c.l.b16 %v141
  %v743 = vunpack.c.h.b16 %v141
  %v744 = vunpack.c.l.b16 %v142
  %v745 = vunpack.c.h.b16 %v142
  %v746 = vunpack.c.l.b16 %v143
  %v747 = vunpack.c.h.b16 %v143
  %v748 = vunpack.c.l.b16 %v144
  %v749 = vunpack.c.h.b16 %v144
  %v750 = vunpack.c.l.b16 %v145
  %v751 = vunpack.c.h.b16 %v145
  %v752 = vunpack.c.l.b16 %v146
  %v753 = vunpack.c.h.b16 %v146
  %v754 = vunpack.c.l.b16 %v147
  %v755 = vunpack.c.h.b16 %v147
  %v756 = vunpack.c.l.b16 %v148
  %v757 = vunpack.c.h.b16 %v148
  %v758 = vunpack.c.l.b16 %v149
  %v759 = vunpack.c.h.b16 %v149
  %v760 = vunpack.c.l.b16 %v150
  %v761 = vunpack.c.h.b16 %v150
  %v762 = vunpack.c.l.b16 %v151
  %v763 = vunpack.c.h.b16 %v151
  %v764 = vunpack.c.l.b16 %v152
  %v765 = vunpack.c.h.b16 %v152
  %v766 = vunpack.c.l.b16 %v153
  %v767 = vunpack.c.h.b16 %v153
  %v768 = vunpack.c.l.b16 %v154
  %v769 = vunpack.c.h.b16 %v154
  %v770 = vunpack.c.l.b16 %v155
  %v771 = vunpack.c.h.b16 %v155
  %v772 = vunpack.c.l.b16 %v156
  %v773 = vunpack.c.h.b16 %v156
  %v774 = vunpack.c.l.b16 %v157
  %v775 = vunpack.c.h.b16 %v157
  %v776 = vunpack.c.l.b16 %v158
  %v777 = vunpack.c.h.b16 %v158
  %v778 = vunpack.c.l.b16 %v159
  %v779 = vunpack.c.h.b16 %v159
  %v780 = vunpack.c.l.b16 %v160
  %v781 = vunpack.c.h.b16 %v160
  %v782 = vunpack.c.l.b16 %v161
  %v783 = vunpack.c.h.b16 %v161
  %v784 = vunpack.c.l.b16 %v162
  %v785 = vunpack.c.h.b16 %v162
  %v786 = vunpack.c.l.b16 %v163
  %v787 = vunpack.c.h.b16 %v163
  %v788 = vunpack.c.l.b16 %v164
  %v789 = vunpack.c.h.b16 %v164
  %v790 = vunpack.c.l.b16 %v165
  %v791 = vunpack.c.h.b16 %v165
  %v792 = vunpack.c.l.b16 %v166
  %v793 = vunpack.c.h.b16 %v166
  %v794 = vunpack.c.l.b16 %v167
  %v795 = vunpack.c.h.b16 %v167
  %v796 = vunpack.c.l.b16 %v168
  %v797 = vunpack.c.h.b16 %v168
  %v798 = vunpack.c.l.b16 %v169
  %v799 = vunpack.c.h.b16 %v169
  %v800 = vunpack.c.l.b16 %v170
  %v801 = vunpack.c.h.b16 %v170
  %v802 = vunpack.c.l.b16 %v171
  %v803 = vunpack.c.h.b16 %v171
  %v804 = vunpack.c.l.b16 %v172
  %v805 = vunpack.c.h.b16 %v172
  %v806 = vunpack.c.l.b16 %v173
  %v807 = vunpack.c.h.b16 %v173
  %v808 = vunpack.c.l.b16 %v174
  %v809 = vunpack.c.h.b16 %v174
  %v810 = vunpack.c.l.b16 %v175
  %v811 = vunpack.c.h.b16 %v175
  %v812 = vunpack.c.l.b16 %v176
  %v813 = vunpack.c.h.b16 %v176
  %v814 = vunpack.c.l.b16 %v177
  %v815 = vunpack.c.h.b16 %v177
  %v816 = vunpack.c.l.b16 %v178
  %v817 = vunpack.c.h.b16 %v178
  %v818 = vunpack.c.l.b16 %v179
  %v819 = vunpack.c.h.b16 %v179
  %v820 = vunpack.c.l.b16 %v180
  %v821 = vunpack.c.h.b16 %v180
  %v822 = vunpack.c.l.b16 %v181
  %v823 = vunpack.c.h.b16 %v181
  %v824 = vunpack.c.l.b16 %v182
  %v825 = vunpack.c.h.b16 %v182
  %v826 = vunpack.c.l.b16 %v183
  %v827 = vunpack.c.h.b16 %v183
  %v828 = vunpack.c.l.b16 %v184
  %v829 = vunpack.c.h.b16 %v184
  %v830 = vunpack.c.l.b16 %v185
  %v831 = vunpack.c.h.b16 %v185
  %v832 = vunpack.c.l.b16 %v186
  %v833 = vunpack.c.h.b16 %v186
  %v834 = vunpack.c.l.b16 %v187
  %v835 = vunpack.c.h.b16 %v187
  %v836 = vunpack.c.l.b16 %v188
  %v837 = vunpack.c.h.b16 %v188
  %v838 = vunpack.c.l.b16 %v189
  %v839 = vunpack.c.h.b16 %v189
  %v840 = vunpack.c.l.b16 %v190
  %v841 = vunpack.c.h.b16 %v190
  %v842 = vunpack.c.l.b16 %v191
  %v843 = vunpack.c.h.b16 %v191
  %v844 = vunpack.c.l.b16 %v192
  %v845 = vunpack.c.h.b16 %v192
  %v846 = vunpack.c.l.b16 %v193
  %v847 = vunpack.c.h.b16 %v193
  %v848 = vunpack.c.l.b16 %v194
  %v849 = vunpack.c.h.b16 %v194
  %v850 = vunpack.c.l.b16 %v195
  %v851 = vunpack.c.h.b16 %v195
  %v852 = vunpack.c.l.b16 %v196
  %v853 = vunpack.c.h.b16 %v196
  %v854 = vunpack.c.l.b16 %v197
  %v855 = vunpack.c.h.b16 %v197
  %v856 = vunpack.c.l.b16 %v198
  %v857 = vunpack.c.h.b16 %v198
  %v858 = vunpack.c.l.b16 %v199
  %v859 = vunpack.c.h.b16 %v199
  %v860 = vunpack.c.l.b16 %v200
  %v861 = vunpack.c.h.b16 %v200
  %v862 = vunpack.c.l.b16 %v201
  %v863 = vunpack.c.h.b16 %v201
  %v864 = vunpack.c.l.b16 %v202
  %v865 = vunpack.c.h.b16 %v202
  %v866 = vunpack.c.l.b16 %v203
  %v867 = vunpack.c.h.b16 %v203
  %v868 = vunpack.c.l.b16 %v204
  %v869 = vunpack.c.h.b16 %v204
  %v870 = vunpack.c.l.b16 %v205
  %v871 = vunpack.c.h.b16 %v205
  %v872 = vunpack.c.l.b16 %v206
  %v873 = vunpack.c.h.b16 %v206
  %v874 = vunpack.c.l.b16 %v207
  %v875 = vunpack.c.h.b16 %v207
  %v876 = vunpack.c.l.b16 %v208
  %v877 = vunpack.c.h.b16 %v208
  %v878 = vunpack.c.l.b16 %v209
  %v879 = vunpack.c.h.b16 %v209
  %v880 = vunpack.c.l.b16 %v210
  %v881 = vunpack.c.h.b16 %v210
  %v882 = vunpack.c.l.b16 %v211
  %v883 = vunpack.c.h.b16 %v211
  %v884 = vunpack.c.l.b16 %v212
  %v885 = vunpack.c.h.b16 %v212
  %v886 = vunpack.c.l.b16 %v213
  %v887 = vunpack.c.h.b16 %v213
  %v888 = vunpack.c.l.b16 %v214
  %v889 = vunpack.c.h.b16 %v214
  %v890 = vunpack.c.l.b16 %v215
  %v891 = vunpack.c.h.b16 %v215
  %v892 = vunpack.c.l.b16 %v216
  %v893 = vunpack.c.h.b16 %v216
  %v894 = vunpack.c.l.b16 %v217
  %v895 = vunpack.c.h.b16 %v217
  %v896 = vunpack.c.l.b16 %v218
  %v897 = vunpack.c.h.b16 %v218
  %v898 = vunpack.c.l.b16 %v219
  %v899 = vunpack.c.h.b16 %v219
  %v900 = vunpack.c.l.b16 %v220
  %v901 = vunpack.c.h.b16 %v220
  %v902 = vunpack.c.l.b16 %v221
  %v903 = vunpack.c.h.b16 %v221
  %v904 = vunpack.c.l.b16 %v222
  %v905 = vunpack.c.h.b16 %v222
  %v906 = vunpack.c.l.b16 %v223
  %v907 = vunpack.c.h.b16 %v223
  %v908 = vunpack.c.l.b16 %v224
  %v909 = vunpack.c.h.b16 %v224
  %v910 = vunpack.c.l.b16 %v225
  %v911 = vunpack.c.h.b16 %v225
  %v912 = vunpack.c.l.b16 %v226
  %v913 = vunpack.c.h.b16 %v226
  %v914 = vunpack.c.l.b16 %v227
  %v915 = vunpack.c.h.b16 %v227
  %v916 = vunpack.c.l.b16 %v228
  %v917 = vunpack.c.h.b16 %v228
  %v918 = vunpack.c.l.b16 %v229
  %v919 = vunpack.c.h.b16 %v229
  %v920 = vunpack.c.l.b16 %v230
  %v921 = vunpack.c.h.b16 %v230
  %v922 = vunpack.c.l.b16 %v231
  %v923 = vunpack.c.h.b16 %v231
  %v924 = vunpack.c.l.b16 %v232
  %v925 = vunpack.c.h.b16 %v232
  %v926 = vunpack.c.l.b16 %v233
  %v927 = vunpack.c.h.b16 %v233
  %v928 = vunpack.c.l.b16 %v234
  %v929 = vunpack.c.h.b16 %v234
  %v930 = vunpack.c.l.b16 %v235
  %v931 = vunpack.c.h.b16 %v235
  %v932 = vunpack.c.l.b16 %v236
  %v933 = vunpack.c.h.b16 %v236
  %v934 = vunpack.c.l.b16 %v237
  %v935 = vunpack.c.h.b16 %v237
  %v936 = vunpack.c.l.b16 %v238
  %v937 = vunpack.c.h.b16 %v238
  %v938 = vunpack.c.l.b16 %v239
  %v939 = vunpack.c.h.b16 %v239
  %v940 = vunpack.c.l.b16 %v240
  %v941 = vunpack.c.h.b16 %v240
  %v942 = vunpack.c.l.b16 %v241
  %v943 = vunpack.c.h.b16 %v241
  %v944 = vunpack.c.l.b16 %v242
  %v945 = vunpack.c.h.b16 %v242
  %v946 = vunpack.c.l.b16 %v243
  %v947 = vunpack.c.h.b16 %v243
  %v948 = vunpack.c.l.b16 %v244
  %v949 = vunpack.c.h.b16 %v244
  %v950 = vunpack.c.l.b16 %v245
  %v951 = vunpack.c.h.b16 %v245
  %v952 = vunpack.c.l.b16 %v246
  %v953 = vunpack.c.h.b16 %v246
  %v954 = vunpack.c.l.b16 %v247
  %v955 = vunpack.c.h.b16 %v247
  %v956 = vunpack.c.l.b16 %v248
  %v957 = vunpack.c.h.b16 %v248
  %v958 = vunpack.c.l.b16 %v249
  %v959 = vunpack.c.h.b16 %v249
  %v960 = vunpack.c.l.b16 %v250
  %v961 = vunpack.c.h.b16 %v250
  %v962 = vunpack.c.l.b16 %v251
  %v963 = vunpack.c.h.b16 %v251
  %v964 = vunpack.c.l.b16 %v252
  %v965 = vunpack.c.h.b16 %v252
  %v966 = vunpack.c.l.b16 %v253
  %v967 = vunpack.c.h.b16 %v253
  %v968 = vunpack.c.l.b16 %v254
  %v969 = vunpack.c.h.b16 %v254
  %v970 = vunpack.c.l.b16 %v255
  %v971 = vunpack.c.h.b16 %v255
  %v972 = vunpack.c.l.b16 %v256
  %v973 = vunpack.c.h.b16 %v256
  %v974 = vunpack.c.l.b16 %v257
  %v975 = vunpack.c.h.b16 %v257
  %v976 = vpack.c.b16 %v532, %v528
  %v977 = vpack.c.b16 %v533, %v529
  %v978 = vpack.c.b16 %v534, %v530
  %v979 = vpack.c.b16 %v535, %v531
  %v980 = vpack.c.b16 %v540, %v536
  %v981 = vpack.c.b16 %v541, %v537
  %v982 = vpack.c.b16 %v542, %v538
  %v983 = vpack.c.b16 %v543, %v539
  %v984 = vpack.c.b16 %v548, %v544
  %v985 = vpack.c.b16 %v549, %v545
  %v986 = vpack.c.b16 %v550, %v546
  %v987 = vpack.c.b16 %v551, %v547
  %v988 = vpack.c.b16 %v556, %v552
  %v989 = vpack.c.b16 %v557, %v553
  %v990 = vpack.c.b16 %v558, %v554
  %v991 = vpack.c.b16 %v559, %v555
  %v992 = vpack.c.b16 %v564, %v560
  %v993 = vpack.c.b16 %v565, %v561
  %v994 = vpack.c.b16 %v566, %v562
  %v995 = vpack.c.b16 %v567, %v563
  %v996 = vpack.c.b16 %v572, %v568
  %v997 = vpack.c.b16 %v573, %v569
  %v998 = vpack.c.b16 %v574, %v570
  %v999 = vpack.c.b16 %v575, %v571
  %v1000 = vpack.c.b16 %v580, %v576
  %v1001 = vpack.c.b16 %v581, %v577
  %v1002 = vpack.c.b16 %v582, %v578
  %v1003 = vpack.c.b16 %v583, %v579
  %v1004 = vpack.c.b16 %v588, %v584
  %v1005 = vpack.c.b16 %v589, %v585
  %v1006 = vpack.c.b16 %v590, %v586
  %v1007 = vpack.c.b16 %v591, %v587
  %v1008 = vpack.c.b16 %v596, %v592
  %v1009 = vpack.c.b16 %v597, %v593
  %v1010 = vpack.c.b16 %v598, %v594
  %v1011 = vpack.c.b16 %v599, %v595
  %v1012 = vpack.c.b16 %v604, %v600
  %v1013 = vpack.c.b16 %v605, %v601
  %v1014 = vpack.c.b16 %v606, %v602
  %v1015 = vpack.c.b16 %v607, %v603
  %v1016 = vpack.c.b16 %v612, %v608
  %v1017 = vpack.c.b16 %v613, %v609
  %v1018 = vpack.c.b16 %v614, %v610
  %v1019 = vpack.c.b16 %v615, %v611
  %v1020 = vpack.c.b16 %v620, %v616
  %v1021 = vpack.c.b16 %v621, %v617
  %v1022 = vpack.c.b16 %v622, %v618
  %v1023 = vpack.c.b16 %v623, %v619
  %v1024 = vpack.c.b16 %v628, %v624
  %v1025 = vpack.c.b16 %v629, %v625
  %v1026 = vpack.c.b16 %v630, %v626
  %v1027 = vpack.c.b16 %v631, %v627
  %v1028 = vpack.c.b16 %v636, %v632
  %v1029 = vpack.c.b16 %v637, %v633
  %v1030 = vpack.c.b16 %v638, %v634
  %v1031 = vpack.c.b16 %v639, %v635
  %v1032 = vpack.c.b16 %v644, %v640
  %v1033 = vpack.c.b16 %v645, %v641
  %v1034 = vpack.c.b16 %v646, %v642
  %v1035 = vpack.c.b16 %v647, %v643
  %v1036 = vpack.c.b16 %v652, %v648
  %v1037 = vpack.c.b16 %v653, %v649
  %v1038 = vpack.c.b16 %v654, %v650
  %v1039 = vpack.c.b16 %v655, %v651
  %v1040 = vpack.c.b16 %v660, %v656
  %v1041 = vpack.c.b16 %v661, %v657
  %v1042 = vpack.c.b16 %v662, %v658
  %v1043 = vpack.c.b16 %v663, %v659
  %v1044 = vpack.c.b16 %v668, %v664
  %v1045 = vpack.c.b16 %v669, %v665
  %v1046 = vpack.c.b16 %v670, %v666
  %v1047 = vpack.c.b16 %v671, %v667
  %v1048 = vpack.c.b16 %v676, %v672
  %v1049 = vpack.c.b16 %v677, %v673
  %v1050 = vpack.c.b16 %v678, %v674
  %v1051 = vpack.c.b16 %v679, %v675
  %v1052 = vpack.c.b16 %v684, %v680
  %v1053 = vpack.c.b16 %v685, %v681
  %v1054 = vpack.c.b16 %v686, %v682
  %v1055 = vpack.c.b16 %v687, %v683
  %v1056 = vpack.c.b16 %v692, %v688
  %v1057 = vpack.c.b16 %v693, %v689
  %v1058 = vpack.c.b16 %v694, %v690
  %v1059 = vpack.c.b16 %v695, %v691
  %v1060 = vpack.c.b16 %v700, %v696
  %v1061 = vpack.c.b16 %v701, %v697
  %v1062 = vpack.c.b16 %v702, %v698
  %v1063 = vpack.c.b16 %v703, %v699
  %v1064 = vpack.c.b16 %v708, %v704
  %v1065 = vpack.c.b16 %v709, %v705
  %v1066 = vpack.c.b16 %v710, %v706
  %v1067 = vpack.c.b16 %v711, %v707
  %v1068 = vpack.c.b16 %v716, %v712
  %v1069 = vpack.c.b16 %v717, %v713
  %v1070 = vpack.c.b16 %v718, %v714
  %v1071 = vpack.c.b16 %v719, %v715
  %v1072 = vpack.c.b16 %v724, %v720
  %v1073 = vpack.c.b16 %v725, %v721
  %v1074 = vpack.c.b16 %v726, %v722
  %v1075 = vpack.c.b16 %v727, %v723
  %v1076 = vpack.c.b16 %v732, %v728
  %v1077 = vpack.c.b16 %v733, %v729
  %v1078 = vpack.c.b16 %v734, %v730
  %v1079 = vpack.c.b16 %v735, %v731
  %v1080 = vpack.c.b16 %v740, %v736
  %v1081 = vpack.c.b16 %v741, %v737
  %v1082 = vpack.c.b16 %v742, %v738
  %v1083 = vpack.c.b16 %v743, %v739
  %v1084 = vpack.c.b16 %v748, %v744
  %v1085 = vpack.c.b16 %v749, %v745
  %v1086 = vpack.c.b16 %v750, %v746
  %v1087 = vpack.c.b16 %v751, %v747
  %v1088 = vpack.c.b16 %v756, %v752
  %v1089 = vpack.c.b16 %v757, %v753
  %v1090 = vpack.c.b16 %v758, %v754
  %v1091 = vpack.c.b16 %v759, %v755
  %v1092 = vpack.c.b16 %v764, %v760
  %v1093 = vpack.c.b16 %v765, %v761
  %v1094 = vpack.c.b16 %v766, %v762
  %v1095 = vpack.c.b16 %v767, %v763
  %v1096 = vpack.c.b16 %v772, %v768
  %v1097 = vpack.c.b16 %v773, %v769
  %v1098 = vpack.c.b16 %v774, %v770
  %v1099 = vpack.c.b16 %v775, %v771
  %v1100 = vpack.c.b16 %v780, %v776
  %v1101 = vpack.c.b16 %v781, %v777
  %v1102 = vpack.c.b16 %v782, %v778
  %v1103 = vpack.c.b16 %v783, %v779
  %v1104 = vpack.c.b16 %v788, %v784
  %v1105 = vpack.c.b16 %v789, %v785
  %v1106 = vpack.c.b16 %v790, %v786
  %v1107 = vpack.c.b16 %v791, %v787
  %v1108 = vpack.c.b16 %v796, %v792
  %v1109 = vpack.c.b16 %v797, %v793
  %v1110 = vpack.c.b16 %v798, %v794
  %v1111 = vpack.c.b16 %v799, %v795
  %v1112 = vpack.c.b16 %v804, %v800
  %v1113 = vpack.c.b16 %v805, %v801
  %v1114 = vpack.c.b16 %v806, %v802
  %v1115 = vpack.c.b16 %v807, %v803
  %v1116 = vpack.c.b16 %v812, %v808
  %v1117 = vpack.c.b16 %v813, %v809
  %v1118 = vpack.c.b16 %v814, %v810
  %v1119 = vpack.c.b16 %v815, %v811
  %v1120 = vpack.c.b16 %v820, %v816
  %v1121 = vpack.c.b16 %v821, %v817
  %v1122 = vpack.c.b16 %v822, %v818
  %v1123 = vpack.c.b16 %v823, %v819
  %v1124 = vpack.c.b16 %v828, %v824
  %v1125 = vpack.c.b16 %v829, %v825
  %v1126 = vpack.c.b16 %v830, %v826
  %v1127 = vpack.c.b16 %v831, %v827
  %v1128 = vpack.c.b16 %v836, %v832
  %v1129 = vpack.c.b16 %v837, %v833
  %v1130 = vpack.c.b16 %v838, %v834
  %v1131 = vpack.c.b16 %v839, %v835
  %v1132 = vpack.c.b16 %v844, %v840
  %v1133 = vpack.c.b16 %v845, %v841
  %v1134 = vpack.c.b16 %v846, %v842
  %v1135 = vpack.c.b16 %v847, %v843
  %v1136 = vpack.c.b16 %v852, %v848
  %v1137 = vpack.c.b16 %v853, %v849
  %v1138 = vpack.c.b16 %v854, %v850
  %v1139 = vpack.c.b16 %v855, %v851
  %v1140 = vpack.c.b16 %v860, %v856
  %v1141 = vpack.c.b16 %v861, %v857
  %v1142 = vpack.c.b16 %v862, %v858
  %v1143 = vpack.c.b16 %v863, %v859
  %v1144 = vpack.c.b16 %v868, %v864
  %v1145 = vpack.c.b16 %v869, %v865
  %v1146 = vpack.c.b16 %v870, %v866
  %v1147 = vpack.c.b16 %v871, %v867
  %v1148 = vpack.c.b16 %v876, %v872
  %v1149 = vpack.c.b16 %v877, %v873
  %v1150 = vpack.c.b16 %v878, %v874
  %v1151 = vpack.c.b16 %v879, %v875
  %v1152 = vpack.c.b16 %v884, %v880
  %v1153 = vpack.c.b16 %v885, %v881
  %v1154 = vpack.c.b16 %v886, %v882
  %v1155 = vpack.c.b16 %v887, %v883
  %v1156 = vpack.c.b16 %v892, %v888
  %v1157 = vpack.c.b16 %v893, %v889
  %v1158 = vpack.c.b16 %v894, %v890
  %v1159 = vpack.c.b16 %v895, %v891
  %v1160 = vpack.c.b16 %v900, %v896
  %v1161 = vpack.c.b16 %v901, %v897
  %v1162 = vpack.c.b16 %v902, %v898
  %v1163 = vpack.c.b16 %v903, %v899
  %v1164 = vpack.c.b16 %v908, %v904
  %v1165 = vpack.c.b16 %v909, %v905
  %v1166 = vpack.c.b16 %v910, %v906
  %v1167 = vpack.c.b16 %v911, %v907
  %v1168 = vpack.c.b16 %v916, %v912
  %v1169 = vpack.c.b16 %v917, %v913
  %v1170 = vpack.c.b16 %v918, %v914
  %v1171 = vpack.c.b16 %v919, %v915
  %v1172 = vpack.c.b16 %v924, %v920
  %v1173 = vpack.c.b16 %v925, %v921
  %v1174 = vpack.c.b16 %v926, %v922
  %v1175 = vpack.c.b16 %v927, %v923
  %v1176 = vpack.c.b16 %v932, %v928
  %v1177 = vpack.c.b16 %v933, %v929
  %v1178 = vpack.c.b16 %v934, %v930
  %v1179 = vpack.c.b16 %v935, %v931
  %v1180 = vpack.c.b16 %v940, %v936
  %v1181 = vpack.c.b16 %v941, %v937
  %v1182 = vpack.c.b16 %v942, %v938
  %v1183 = vpack.c.b16 %v943, %v939
  %v1184 = vpack.c.b16 %v948, %v944
  %v1185 = vpack.c.b16 %v949, %v945
  %v1186 = vpack.c.b16 %v950, %v946
  %v1187 = vpack.c.b16 %v951, %v947
  %v1188 = vpack.c.b16 %v956, %v952
  %v1189 = vpack.c.b16 %v957, %v953
  %v1190 = vpack.c.b16 %v958, %v954
  %v1191 = vpack.c.b16 %v959, %v955
  %v1192 = vpack.c.b16 %v964, %v960
  %v1193 = vpack.c.b16 %v965, %v961
  %v1194 = vpack.c.b16 %v966, %v962
  %v1195 = vpack.c.b16 %v967, %v963
  %v1196 = vpack.c.b16 %v972, %v968
  %v1197 = vpack.c.b16 %v973, %v969
  %v1198 = vpack.c.b16 %v974, %v970
  %v1199 = vpack.c.b16 %v975, %v971
  %1424 = vmatpush.bf16.msra.mxu0 %v1004
  %1425 = vmatpush.bf16.msra.mxu0 %v1000
  %1426 = vmatpush.bf16.msra.mxu0 %v996
  %1427 = vmatpush.bf16.msra.mxu0 %v992
  %1428 = vmatpush.bf16.msra.mxu0 %v988
  %1429 = vmatpush.bf16.msra.mxu0 %v984
  %1430 = vmatpush.bf16.msra.mxu0 %v980
  %1431 = vmatpush.bf16.msra.mxu0 %v976
  %1432 = vmatmul.bf16.gmra.mxu0 %v290
  %v1433 = vpop.f32.mrf.mxu0
  %v1434 = vadd.f32 %v260, %v1433
  %v1435 = vpop.f32.mrf.mxu0
  %v1436 = vadd.f32 %v260, %v1435
  %1437 = vdwg.mxu0
  %1438 = vmatpush.bf16.msra.mxu0 %v1036
  %1439 = vmatpush.bf16.msra.mxu0 %v1032
  %1440 = vmatpush.bf16.msra.mxu0 %v1028
  %1441 = vmatpush.bf16.msra.mxu0 %v1024
  %1442 = vmatpush.bf16.msra.mxu0 %v1020
  %1443 = vmatpush.bf16.msra.mxu0 %v1016
  %1444 = vmatpush.bf16.msra.mxu0 %v1012
  %1445 = vmatpush.bf16.msra.mxu0 %v1008
  %1446 = vmatmul.bf16.gmra.mxu0 %v291
  %v1447 = vpop.f32.mrf.mxu0
  %v1448 = vadd.f32 %v1434, %v1447
  %v1449 = vpop.f32.mrf.mxu0
  %v1450 = vadd.f32 %v1436, %v1449
  %1451 = vdwg.mxu0
  %1452 = vmatpush.bf16.msra.mxu0 %v1068
  %1453 = vmatpush.bf16.msra.mxu0 %v1064
  %1454 = vmatpush.bf16.msra.mxu0 %v1060
  %1455 = vmatpush.bf16.msra.mxu0 %v1056
  %1456 = vmatpush.bf16.msra.mxu0 %v1052
  %1457 = vmatpush.bf16.msra.mxu0 %v1048
  %1458 = vmatpush.bf16.msra.mxu0 %v1044
  %1459 = vmatpush.bf16.msra.mxu0 %v1040
  %1460 = vmatmul.bf16.gmra.mxu0 %v292
  %v1461 = vpop.f32.mrf.mxu0
  %v1462 = vadd.f32 %v1448, %v1461
  %v1463 = vpop.f32.mrf.mxu0
  %v1464 = vadd.f32 %v1450, %v1463
  %1465 = vdwg.mxu0
  %1466 = vmatpush.bf16.msra.mxu0 %v1100
  %1467 = vmatpush.bf16.msra.mxu0 %v1096
  %1468 = vmatpush.bf16.msra.mxu0 %v1092
  %1469 = vmatpush.bf16.msra.mxu0 %v1088
  %1470 = vmatpush.bf16.msra.mxu0 %v1084
  %1471 = vmatpush.bf16.msra.mxu0 %v1080
  %1472 = vmatpush.bf16.msra.mxu0 %v1076
  %1473 = vmatpush.bf16.msra.mxu0 %v1072
  %1474 = vmatmul.bf16.gmra.mxu0 %v293
  %v1475 = vpop.f32.mrf.mxu0
  %v1476 = vadd.f32 %v1462, %v1475
  %v1477 = vpop.f32.mrf.mxu0
  %v1478 = vadd.f32 %v1464, %v1477
  %1479 = vdwg.mxu0
  %1480 = vmatpush.bf16.msra.mxu0 %v1132
  %1481 = vmatpush.bf16.msra.mxu0 %v1128
  %1482 = vmatpush.bf16.msra.mxu0 %v1124
  %1483 = vmatpush.bf16.msra.mxu0 %v1120
  %1484 = vmatpush.bf16.msra.mxu0 %v1116
  %1485 = vmatpush.bf16.msra.mxu0 %v1112
  %1486 = vmatpush.bf16.msra.mxu0 %v1108
  %1487 = vmatpush.bf16.msra.mxu0 %v1104
  %1488 = vmatmul.bf16.gmra.mxu0 %v294
  %v1489 = vpop.f32.mrf.mxu0
  %v1490 = vadd.f32 %v1476, %v1489
  %v1491 = vpop.f32.mrf.mxu0
  %v1492 = vadd.f32 %v1478, %v1491
  %1493 = vdwg.mxu0
  %1494 = vmatpush.bf16.msra.mxu0 %v1164
  %1495 = vmatpush.bf16.msra.mxu0 %v1160
  %1496 = vmatpush.bf16.msra.mxu0 %v1156
  %1497 = vmatpush.bf16.msra.mxu0 %v1152
  %1498 = vmatpush.bf16.msra.mxu0 %v1148
  %1499 = vmatpush.bf16.msra.mxu0 %v1144
  %1500 = vmatpush.bf16.msra.mxu0 %v1140
  %1501 = vmatpush.bf16.msra.mxu0 %v1136
  %1502 = vmatmul.bf16.gmra.mxu0 %v295
  %v1503 = vpop.f32.mrf.mxu0
  %v1504 = vadd.f32 %v1490, %v1503
  %v1505 = vpop.f32.mrf.mxu0
  %v1506 = vadd.f32 %v1492, %v1505
  %1507 = vdwg.mxu0
  %1508 = vmatpush.bf16.msra.mxu0 %v1196
  %1509 = vmatpush.bf16.msra.mxu0 %v1192
  %1510 = vmatpush.bf16.msra.mxu0 %v1188
  %1511 = vmatpush.bf16.msra.mxu0 %v1184
  %1512 = vmatpush.bf16.msra.mxu0 %v1180
  %1513 = vmatpush.bf16.msra.mxu0 %v1176
  %1514 = vmatpush.bf16.msra.mxu0 %v1172
  %1515 = vmatpush.bf16.msra.mxu0 %v1168
  %1516 = vmatmul.bf16.gmra.mxu0 %v296
  %v1517 = vpop.f32.mrf.mxu0
  %v1518 = vadd.f32 %v1504, %v1517
  %v1519 = vpop.f32.mrf.mxu0
  %v1520 = vadd.f32 %v1506, %v1519
  %1521 = vdwg.mxu0
  %1522 = vmatpush.bf16.msra.mxu0 %v1005
  %1523 = vmatpush.bf16.msra.mxu0 %v1001
  %1524 = vmatpush.bf16.msra.mxu0 %v997
  %1525 = vmatpush.bf16.msra.mxu0 %v993
  %1526 = vmatpush.bf16.msra.mxu0 %v989
  %1527 = vmatpush.bf16.msra.mxu0 %v985
  %1528 = vmatpush.bf16.msra.mxu0 %v981
  %1529 = vmatpush.bf16.msra.mxu0 %v977
  %1530 = vmatmul.bf16.gmra.mxu0 %v290
  %v1531 = vpop.f32.mrf.mxu0
  %v1532 = vadd.f32 %v261, %v1531
  %v1533 = vpop.f32.mrf.mxu0
  %v1534 = vadd.f32 %v261, %v1533
  %1535 = vdwg.mxu0
  %1536 = vmatpush.bf16.msra.mxu0 %v1037
  %1537 = vmatpush.bf16.msra.mxu0 %v1033
  %1538 = vmatpush.bf16.msra.mxu0 %v1029
  %1539 = vmatpush.bf16.msra.mxu0 %v1025
  %1540 = vmatpush.bf16.msra.mxu0 %v1021
  %1541 = vmatpush.bf16.msra.mxu0 %v1017
  %1542 = vmatpush.bf16.msra.mxu0 %v1013
  %1543 = vmatpush.bf16.msra.mxu0 %v1009
  %1544 = vmatmul.bf16.gmra.mxu0 %v291
  %v1545 = vpop.f32.mrf.mxu0
  %v1546 = vadd.f32 %v1532, %v1545
  %v1547 = vpop.f32.mrf.mxu0
  %v1548 = vadd.f32 %v1534, %v1547
  %1549 = vdwg.mxu0
  %1550 = vmatpush.bf16.msra.mxu0 %v1069
  %1551 = vmatpush.bf16.msra.mxu0 %v1065
  %1552 = vmatpush.bf16.msra.mxu0 %v1061
  %1553 = vmatpush.bf16.msra.mxu0 %v1057
  %1554 = vmatpush.bf16.msra.mxu0 %v1053
  %1555 = vmatpush.bf16.msra.mxu0 %v1049
  %1556 = vmatpush.bf16.msra.mxu0 %v1045
  %1557 = vmatpush.bf16.msra.mxu0 %v1041
  %1558 = vmatmul.bf16.gmra.mxu0 %v292
  %v1559 = vpop.f32.mrf.mxu0
  %v1560 = vadd.f32 %v1546, %v1559
  %v1561 = vpop.f32.mrf.mxu0
  %v1562 = vadd.f32 %v1548, %v1561
  %1563 = vdwg.mxu0
  %1564 = vmatpush.bf16.msra.mxu0 %v1101
  %1565 = vmatpush.bf16.msra.mxu0 %v1097
  %1566 = vmatpush.bf16.msra.mxu0 %v1093
  %1567 = vmatpush.bf16.msra.mxu0 %v1089
  %1568 = vmatpush.bf16.msra.mxu0 %v1085
  %1569 = vmatpush.bf16.msra.mxu0 %v1081
  %1570 = vmatpush.bf16.msra.mxu0 %v1077
  %1571 = vmatpush.bf16.msra.mxu0 %v1073
  %1572 = vmatmul.bf16.gmra.mxu0 %v293
  %v1573 = vpop.f32.mrf.mxu0
  %v1574 = vadd.f32 %v1560, %v1573
  %v1575 = vpop.f32.mrf.mxu0
  %v1576 = vadd.f32 %v1562, %v1575
  %1577 = vdwg.mxu0
  %1578 = vmatpush.bf16.msra.mxu0 %v1133
  %1579 = vmatpush.bf16.msra.mxu0 %v1129
  %1580 = vmatpush.bf16.msra.mxu0 %v1125
  %1581 = vmatpush.bf16.msra.mxu0 %v1121
  %1582 = vmatpush.bf16.msra.mxu0 %v1117
  %1583 = vmatpush.bf16.msra.mxu0 %v1113
  %1584 = vmatpush.bf16.msra.mxu0 %v1109
  %1585 = vmatpush.bf16.msra.mxu0 %v1105
  %1586 = vmatmul.bf16.gmra.mxu0 %v294
  %v1587 = vpop.f32.mrf.mxu0
  %v1588 = vadd.f32 %v1574, %v1587
  %v1589 = vpop.f32.mrf.mxu0
  %v1590 = vadd.f32 %v1576, %v1589
  %1591 = vdwg.mxu0
  %1592 = vmatpush.bf16.msra.mxu0 %v1165
  %1593 = vmatpush.bf16.msra.mxu0 %v1161
  %1594 = vmatpush.bf16.msra.mxu0 %v1157
  %1595 = vmatpush.bf16.msra.mxu0 %v1153
  %1596 = vmatpush.bf16.msra.mxu0 %v1149
  %1597 = vmatpush.bf16.msra.mxu0 %v1145
  %1598 = vmatpush.bf16.msra.mxu0 %v1141
  %1599 = vmatpush.bf16.msra.mxu0 %v1137
  %1600 = vmatmul.bf16.gmra.mxu0 %v295
  %v1601 = vpop.f32.mrf.mxu0
  %v1602 = vadd.f32 %v1588, %v1601
  %v1603 = vpop.f32.mrf.mxu0
  %v1604 = vadd.f32 %v1590, %v1603
  %1605 = vdwg.mxu0
  %1606 = vmatpush.bf16.msra.mxu0 %v1197
  %1607 = vmatpush.bf16.msra.mxu0 %v1193
  %1608 = vmatpush.bf16.msra.mxu0 %v1189
  %1609 = vmatpush.bf16.msra.mxu0 %v1185
  %1610 = vmatpush.bf16.msra.mxu0 %v1181
  %1611 = vmatpush.bf16.msra.mxu0 %v1177
  %1612 = vmatpush.bf16.msra.mxu0 %v1173
  %1613 = vmatpush.bf16.msra.mxu0 %v1169
  %1614 = vmatmul.bf16.gmra.mxu0 %v296
  %v1615 = vpop.f32.mrf.mxu0
  %v1616 = vadd.f32 %v1602, %v1615
  %v1617 = vpop.f32.mrf.mxu0
  %v1618 = vadd.f32 %v1604, %v1617
  %1619 = vdwg.mxu0
  %1620 = vmatpush.bf16.msra.mxu0 %v1006
  %1621 = vmatpush.bf16.msra.mxu0 %v1002
  %1622 = vmatpush.bf16.msra.mxu0 %v998
  %1623 = vmatpush.bf16.msra.mxu0 %v994
  %1624 = vmatpush.bf16.msra.mxu0 %v990
  %1625 = vmatpush.bf16.msra.mxu0 %v986
  %1626 = vmatpush.bf16.msra.mxu0 %v982
  %1627 = vmatpush.bf16.msra.mxu0 %v978
  %1628 = vmatmul.bf16.gmra.mxu0 %v290
  %v1629 = vpop.f32.mrf.mxu0
  %v1630 = vadd.f32 %v262, %v1629
  %v1631 = vpop.f32.mrf.mxu0
  %v1632 = vadd.f32 %v262, %v1631
  %1633 = vdwg.mxu0
  %1634 = vmatpush.bf16.msra.mxu0 %v1038
  %1635 = vmatpush.bf16.msra.mxu0 %v1034
  %1636 = vmatpush.bf16.msra.mxu0 %v1030
  %1637 = vmatpush.bf16.msra.mxu0 %v1026
  %1638 = vmatpush.bf16.msra.mxu0 %v1022
  %1639 = vmatpush.bf16.msra.mxu0 %v1018
  %1640 = vmatpush.bf16.msra.mxu0 %v1014
  %1641 = vmatpush.bf16.msra.mxu0 %v1010
  %1642 = vmatmul.bf16.gmra.mxu0 %v291
  %v1643 = vpop.f32.mrf.mxu0
  %v1644 = vadd.f32 %v1630, %v1643
  %v1645 = vpop.f32.mrf.mxu0
  %v1646 = vadd.f32 %v1632, %v1645
  %1647 = vdwg.mxu0
  %1648 = vmatpush.bf16.msra.mxu0 %v1070
  %1649 = vmatpush.bf16.msra.mxu0 %v1066
  %1650 = vmatpush.bf16.msra.mxu0 %v1062
  %1651 = vmatpush.bf16.msra.mxu0 %v1058
  %1652 = vmatpush.bf16.msra.mxu0 %v1054
  %1653 = vmatpush.bf16.msra.mxu0 %v1050
  %1654 = vmatpush.bf16.msra.mxu0 %v1046
  %1655 = vmatpush.bf16.msra.mxu0 %v1042
  %1656 = vmatmul.bf16.gmra.mxu0 %v292
  %v1657 = vpop.f32.mrf.mxu0
  %v1658 = vadd.f32 %v1644, %v1657
  %v1659 = vpop.f32.mrf.mxu0
  %v1660 = vadd.f32 %v1646, %v1659
  %1661 = vdwg.mxu0
  %1662 = vmatpush.bf16.msra.mxu0 %v1102
  %1663 = vmatpush.bf16.msra.mxu0 %v1098
  %1664 = vmatpush.bf16.msra.mxu0 %v1094
  %1665 = vmatpush.bf16.msra.mxu0 %v1090
  %1666 = vmatpush.bf16.msra.mxu0 %v1086
  %1667 = vmatpush.bf16.msra.mxu0 %v1082
  %1668 = vmatpush.bf16.msra.mxu0 %v1078
  %1669 = vmatpush.bf16.msra.mxu0 %v1074
  %1670 = vmatmul.bf16.gmra.mxu0 %v293
  %v1671 = vpop.f32.mrf.mxu0
  %v1672 = vadd.f32 %v1658, %v1671
  %v1673 = vpop.f32.mrf.mxu0
  %v1674 = vadd.f32 %v1660, %v1673
  %1675 = vdwg.mxu0
  %1676 = vmatpush.bf16.msra.mxu0 %v1134
  %1677 = vmatpush.bf16.msra.mxu0 %v1130
  %1678 = vmatpush.bf16.msra.mxu0 %v1126
  %1679 = vmatpush.bf16.msra.mxu0 %v1122
  %1680 = vmatpush.bf16.msra.mxu0 %v1118
  %1681 = vmatpush.bf16.msra.mxu0 %v1114
  %1682 = vmatpush.bf16.msra.mxu0 %v1110
  %1683 = vmatpush.bf16.msra.mxu0 %v1106
  %1684 = vmatmul.bf16.gmra.mxu0 %v294
  %v1685 = vpop.f32.mrf.mxu0
  %v1686 = vadd.f32 %v1672, %v1685
  %v1687 = vpop.f32.mrf.mxu0
  %v1688 = vadd.f32 %v1674, %v1687
  %1689 = vdwg.mxu0
  %1690 = vmatpush.bf16.msra.mxu0 %v1166
  %1691 = vmatpush.bf16.msra.mxu0 %v1162
  %1692 = vmatpush.bf16.msra.mxu0 %v1158
  %1693 = vmatpush.bf16.msra.mxu0 %v1154
  %1694 = vmatpush.bf16.msra.mxu0 %v1150
  %1695 = vmatpush.bf16.msra.mxu0 %v1146
  %1696 = vmatpush.bf16.msra.mxu0 %v1142
  %1697 = vmatpush.bf16.msra.mxu0 %v1138
  %1698 = vmatmul.bf16.gmra.mxu0 %v295
  %v1699 = vpop.f32.mrf.mxu0
  %v1700 = vadd.f32 %v1686, %v1699
  %v1701 = vpop.f32.mrf.mxu0
  %v1702 = vadd.f32 %v1688, %v1701
  %1703 = vdwg.mxu0
  %1704 = vmatpush.bf16.msra.mxu0 %v1198
  %1705 = vmatpush.bf16.msra.mxu0 %v1194
  %1706 = vmatpush.bf16.msra.mxu0 %v1190
  %1707 = vmatpush.bf16.msra.mxu0 %v1186
  %1708 = vmatpush.bf16.msra.mxu0 %v1182
  %1709 = vmatpush.bf16.msra.mxu0 %v1178
  %1710 = vmatpush.bf16.msra.mxu0 %v1174
  %1711 = vmatpush.bf16.msra.mxu0 %v1170
  %1712 = vmatmul.bf16.gmra.mxu0 %v296
  %v1713 = vpop.f32.mrf.mxu0
  %v1714 = vadd.f32 %v1700, %v1713
  %v1715 = vpop.f32.mrf.mxu0
  %v1716 = vadd.f32 %v1702, %v1715
  %1717 = vdwg.mxu0
  %1718 = vmatpush.bf16.msra.mxu0 %v1007
  %1719 = vmatpush.bf16.msra.mxu0 %v1003
  %1720 = vmatpush.bf16.msra.mxu0 %v999
  %1721 = vmatpush.bf16.msra.mxu0 %v995
  %1722 = vmatpush.bf16.msra.mxu0 %v991
  %1723 = vmatpush.bf16.msra.mxu0 %v987
  %1724 = vmatpush.bf16.msra.mxu0 %v983
  %1725 = vmatpush.bf16.msra.mxu0 %v979
  %1726 = vmatmul.bf16.gmra.mxu0 %v290
  %v1727 = vpop.f32.mrf.mxu0
  %v1728 = vadd.f32 %v263, %v1727
  %v1729 = vpop.f32.mrf.mxu0
  %v1730 = vadd.f32 %v263, %v1729
  %1731 = vdwg.mxu0
  %1732 = vmatpush.bf16.msra.mxu0 %v1039
  %1733 = vmatpush.bf16.msra.mxu0 %v1035
  %1734 = vmatpush.bf16.msra.mxu0 %v1031
  %1735 = vmatpush.bf16.msra.mxu0 %v1027
  %1736 = vmatpush.bf16.msra.mxu0 %v1023
  %1737 = vmatpush.bf16.msra.mxu0 %v1019
  %1738 = vmatpush.bf16.msra.mxu0 %v1015
  %1739 = vmatpush.bf16.msra.mxu0 %v1011
  %1740 = vmatmul.bf16.gmra.mxu0 %v291
  %v1741 = vpop.f32.mrf.mxu0
  %v1742 = vadd.f32 %v1728, %v1741
  %v1743 = vpop.f32.mrf.mxu0
  %v1744 = vadd.f32 %v1730, %v1743
  %1745 = vdwg.mxu0
  %1746 = vmatpush.bf16.msra.mxu0 %v1071
  %1747 = vmatpush.bf16.msra.mxu0 %v1067
  %1748 = vmatpush.bf16.msra.mxu0 %v1063
  %1749 = vmatpush.bf16.msra.mxu0 %v1059
  %1750 = vmatpush.bf16.msra.mxu0 %v1055
  %1751 = vmatpush.bf16.msra.mxu0 %v1051
  %1752 = vmatpush.bf16.msra.mxu0 %v1047
  %1753 = vmatpush.bf16.msra.mxu0 %v1043
  %1754 = vmatmul.bf16.gmra.mxu0 %v292
  %v1755 = vpop.f32.mrf.mxu0
  %v1756 = vadd.f32 %v1742, %v1755
  %v1757 = vpop.f32.mrf.mxu0
  %v1758 = vadd.f32 %v1744, %v1757
  %1759 = vdwg.mxu0
  %1760 = vmatpush.bf16.msra.mxu0 %v1103
  %1761 = vmatpush.bf16.msra.mxu0 %v1099
  %1762 = vmatpush.bf16.msra.mxu0 %v1095
  %1763 = vmatpush.bf16.msra.mxu0 %v1091
  %1764 = vmatpush.bf16.msra.mxu0 %v1087
  %1765 = vmatpush.bf16.msra.mxu0 %v1083
  %1766 = vmatpush.bf16.msra.mxu0 %v1079
  %1767 = vmatpush.bf16.msra.mxu0 %v1075
  %1768 = vmatmul.bf16.gmra.mxu0 %v293
  %v1769 = vpop.f32.mrf.mxu0
  %v1770 = vadd.f32 %v1756, %v1769
  %v1771 = vpop.f32.mrf.mxu0
  %v1772 = vadd.f32 %v1758, %v1771
  %1773 = vdwg.mxu0
  %1774 = vmatpush.bf16.msra.mxu0 %v1135
  %1775 = vmatpush.bf16.msra.mxu0 %v1131
  %1776 = vmatpush.bf16.msra.mxu0 %v1127
  %1777 = vmatpush.bf16.msra.mxu0 %v1123
  %1778 = vmatpush.bf16.msra.mxu0 %v1119
  %1779 = vmatpush.bf16.msra.mxu0 %v1115
  %1780 = vmatpush.bf16.msra.mxu0 %v1111
  %1781 = vmatpush.bf16.msra.mxu0 %v1107
  %1782 = vmatmul.bf16.gmra.mxu0 %v294
  %v1783 = vpop.f32.mrf.mxu0
  %v1784 = vadd.f32 %v1770, %v1783
  %v1785 = vpop.f32.mrf.mxu0
  %v1786 = vadd.f32 %v1772, %v1785
  %1787 = vdwg.mxu0
  %1788 = vmatpush.bf16.msra.mxu0 %v1167
  %1789 = vmatpush.bf16.msra.mxu0 %v1163
  %1790 = vmatpush.bf16.msra.mxu0 %v1159
  %1791 = vmatpush.bf16.msra.mxu0 %v1155
  %1792 = vmatpush.bf16.msra.mxu0 %v1151
  %1793 = vmatpush.bf16.msra.mxu0 %v1147
  %1794 = vmatpush.bf16.msra.mxu0 %v1143
  %1795 = vmatpush.bf16.msra.mxu0 %v1139
  %1796 = vmatmul.bf16.gmra.mxu0 %v295
  %v1797 = vpop.f32.mrf.mxu0
  %v1798 = vadd.f32 %v1784, %v1797
  %v1799 = vpop.f32.mrf.mxu0
  %v1800 = vadd.f32 %v1786, %v1799
  %1801 = vdwg.mxu0
  %1802 = vmatpush.bf16.msra.mxu0 %v1199
  %1803 = vmatpush.bf16.msra.mxu0 %v1195
  %1804 = vmatpush.bf16.msra.mxu0 %v1191
  %1805 = vmatpush.bf16.msra.mxu0 %v1187
  %1806 = vmatpush.bf16.msra.mxu0 %v1183
  %1807 = vmatpush.bf16.msra.mxu0 %v1179
  %1808 = vmatpush.bf16.msra.mxu0 %v1175
  %1809 = vmatpush.bf16.msra.mxu0 %v1171
  %1810 = vmatmul.bf16.gmra.mxu0 %v296
  %v1811 = vpop.f32.mrf.mxu0
  %v1812 = vadd.f32 %v1798, %v1811
  %v1813 = vpop.f32.mrf.mxu0
  %v1814 = vadd.f32 %v1800, %v1813
  %1815 = vdwg.mxu0
  %v1816 = vmax.f32 %v1518, 0.0
  %v1817 = vmax.f32 %v1616, 0.0
  %v1818 = vmax.f32 %v1714, 0.0
  %v1819 = vmax.f32 %v1812, 0.0
  %v1820 = vmax.f32 %v1520, 0.0
  %v1821 = vmax.f32 %v1618, 0.0
  %v1822 = vmax.f32 %v1716, 0.0
  %v1823 = vmax.f32 %v1814, 0.0
  %v1824 = vpack.c.bf16 %v1820, %v1816
  %v1825 = vpack.c.bf16 %v1821, %v1817
  %v1826 = vpack.c.bf16 %v1822, %v1818
  %v1827 = vpack.c.bf16 %v1823, %v1819
  %v1828 = vld [vmem:[%s3] sm:$0xff]
  %v1829 = vld [vmem:[%s3 + $0x8] sm:$0xff]
  %v1830 = vld [vmem:[%s3 + $0x10] sm:$0xff]
  %v1831 = vld [vmem:[%s3 + $0x18] sm:$0xff]
  %v1832 = vld [vmem:[%s3 + $0x20] sm:$0xff]
  %v1833 = vld [vmem:[%s3 + $0x28] sm:$0xff]
  %v1834 = vld [vmem:[%s3 + $0x30] sm:$0xff]
  %v1835 = vld [vmem:[%s3 + $0x38] sm:$0xff]
  %v1836 = vld [vmem:[%s3 + $0x40] sm:$0xff]
  %v1837 = vld [vmem:[%s3 + $0x48] sm:$0xff]
  %v1838 = vld [vmem:[%s3 + $0x50] sm:$0xff]
  %v1839 = vld [vmem:[%s3 + $0x58] sm:$0xff]
  %v1840 = vld [vmem:[%s3 + $0x60] sm:$0xff]
  %v1841 = vld [vmem:[%s3 + $0x68] sm:$0xff]
  %v1842 = vld [vmem:[%s3 + $0x70] sm:$0xff]
  %v1843 = vld [vmem:[%s3 + $0x78] sm:$0xff]
  %v1844 = vld [vmem:[%s3 + $0x80] sm:$0xff]
  %v1845 = vld [vmem:[%s3 + $0x88] sm:$0xff]
  %v1846 = vld [vmem:[%s3 + $0x90] sm:$0xff]
  %v1847 = vld [vmem:[%s3 + $0x98] sm:$0xff]
  %v1848 = vld [vmem:[%s3 + $0xa0] sm:$0xff]
  %v1849 = vld [vmem:[%s3 + $0xa8] sm:$0xff]
  %v1850 = vld [vmem:[%s3 + $0xb0] sm:$0xff]
  %v1851 = vld [vmem:[%s3 + $0xb8] sm:$0xff]
  %v1852 = vld [vmem:[%s3 + $0xc0] sm:$0xff]
  %v1853 = vld [vmem:[%s3 + $0xc8] sm:$0xff]
  %v1854 = vld [vmem:[%s3 + $0xd0] sm:$0xff]
  %v1855 = vld [vmem:[%s3 + $0xd8] sm:$0xff]
  %v1856 = vld [vmem:[%s3 + $0xe0] sm:$0xff]
  %v1857 = vld [vmem:[%s3 + $0xe8] sm:$0xff]
  %v1858 = vld [vmem:[%s3 + $0xf0] sm:$0xff]
  %v1859 = vld [vmem:[%s3 + $0xf8] sm:$0xff]
  %v1860 = vld [vmem:[%s3 + $0x100] sm:$0xff]
  %v1861 = vld [vmem:[%s3 + $0x108] sm:$0xff]
  %v1862 = vld [vmem:[%s3 + $0x110] sm:$0xff]
  %v1863 = vld [vmem:[%s3 + $0x118] sm:$0xff]
  %v1864 = vld [vmem:[%s3 + $0x120] sm:$0xff]
  %v1865 = vld [vmem:[%s3 + $0x128] sm:$0xff]
  %v1866 = vld [vmem:[%s3 + $0x130] sm:$0xff]
  %v1867 = vld [vmem:[%s3 + $0x138] sm:$0xff]
  %v1868 = vld [vmem:[%s3 + $0x140] sm:$0xff]
  %v1869 = vld [vmem:[%s3 + $0x148] sm:$0xff]
  %v1870 = vld [vmem:[%s3 + $0x150] sm:$0xff]
  %v1871 = vld [vmem:[%s3 + $0x158] sm:$0xff]
  %v1872 = vld [vmem:[%s3 + $0x160] sm:$0xff]
  %v1873 = vld [vmem:[%s3 + $0x168] sm:$0xff]
  %v1874 = vld [vmem:[%s3 + $0x170] sm:$0xff]
  %v1875 = vld [vmem:[%s3 + $0x178] sm:$0xff]
  %v1876 = vld [vmem:[%s3 + $0x180] sm:$0xff]
  %v1877 = vld [vmem:[%s3 + $0x188] sm:$0xff]
  %v1878 = vld [vmem:[%s3 + $0x190] sm:$0xff]
  %v1879 = vld [vmem:[%s3 + $0x198] sm:$0xff]
  %v1880 = vld [vmem:[%s3 + $0x1a0] sm:$0xff]
  %v1881 = vld [vmem:[%s3 + $0x1a8] sm:$0xff]
  %v1882 = vld [vmem:[%s3 + $0x1b0] sm:$0xff]
  %v1883 = vld [vmem:[%s3 + $0x1b8] sm:$0xff]
  %v1884 = vld [vmem:[%s3 + $0x1c0] sm:$0xff]
  %v1885 = vld [vmem:[%s3 + $0x1c8] sm:$0xff]
  %v1886 = vld [vmem:[%s3 + $0x1d0] sm:$0xff]
  %v1887 = vld [vmem:[%s3 + $0x1d8] sm:$0xff]
  %v1888 = vld [vmem:[%s3 + $0x1e0] sm:$0xff]
  %v1889 = vld [vmem:[%s3 + $0x1e8] sm:$0xff]
  %v1890 = vld [vmem:[%s3 + $0x1f0] sm:$0xff]
  %v1891 = vld [vmem:[%s3 + $0x1f8] sm:$0xff]
  %v1892 = vld [vmem:[%s3 + $0x200] sm:$0xff]
  %v1893 = vld [vmem:[%s3 + $0x208] sm:$0xff]
  %v1894 = vld [vmem:[%s3 + $0x210] sm:$0xff]
  %v1895 = vld [vmem:[%s3 + $0x218] sm:$0xff]
  %v1896 = vld [vmem:[%s3 + $0x220] sm:$0xff]
  %v1897 = vld [vmem:[%s3 + $0x228] sm:$0xff]
  %v1898 = vld [vmem:[%s3 + $0x230] sm:$0xff]
  %v1899 = vld [vmem:[%s3 + $0x238] sm:$0xff]
  %v1900 = vld [vmem:[%s3 + $0x240] sm:$0xff]
  %v1901 = vld [vmem:[%s3 + $0x248] sm:$0xff]
  %v1902 = vld [vmem:[%s3 + $0x250] sm:$0xff]
  %v1903 = vld [vmem:[%s3 + $0x258] sm:$0xff]
  %v1904 = vld [vmem:[%s3 + $0x260] sm:$0xff]
  %v1905 = vld [vmem:[%s3 + $0x268] sm:$0xff]
  %v1906 = vld [vmem:[%s3 + $0x270] sm:$0xff]
  %v1907 = vld [vmem:[%s3 + $0x278] sm:$0xff]
  %v1908 = vld [vmem:[%s3 + $0x280] sm:$0xff]
  %v1909 = vld [vmem:[%s3 + $0x288] sm:$0xff]
  %v1910 = vld [vmem:[%s3 + $0x290] sm:$0xff]
  %v1911 = vld [vmem:[%s3 + $0x298] sm:$0xff]
  %v1912 = vld [vmem:[%s3 + $0x2a0] sm:$0xff]
  %v1913 = vld [vmem:[%s3 + $0x2a8] sm:$0xff]
  %v1914 = vld [vmem:[%s3 + $0x2b0] sm:$0xff]
  %v1915 = vld [vmem:[%s3 + $0x2b8] sm:$0xff]
  %v1916 = vld [vmem:[%s3 + $0x2c0] sm:$0xff]
  %v1917 = vld [vmem:[%s3 + $0x2c8] sm:$0xff]
  %v1918 = vld [vmem:[%s3 + $0x2d0] sm:$0xff]
  %v1919 = vld [vmem:[%s3 + $0x2d8] sm:$0xff]
  %v1920 = vld [vmem:[%s3 + $0x2e0] sm:$0xff]
  %v1921 = vld [vmem:[%s3 + $0x2e8] sm:$0xff]
  %v1922 = vld [vmem:[%s3 + $0x2f0] sm:$0xff]
  %v1923 = vld [vmem:[%s3 + $0x2f8] sm:$0xff]
  %v1924 = vld [vmem:[%s3 + $0x300] sm:$0xff]
  %v1925 = vld [vmem:[%s3 + $0x308] sm:$0xff]
  %v1926 = vld [vmem:[%s3 + $0x310] sm:$0xff]
  %v1927 = vld [vmem:[%s3 + $0x318] sm:$0xff]
  %v1928 = vld [vmem:[%s3 + $0x320] sm:$0xff]
  %v1929 = vld [vmem:[%s3 + $0x328] sm:$0xff]
  %v1930 = vld [vmem:[%s3 + $0x330] sm:$0xff]
  %v1931 = vld [vmem:[%s3 + $0x338] sm:$0xff]
  %v1932 = vld [vmem:[%s3 + $0x340] sm:$0xff]
  %v1933 = vld [vmem:[%s3 + $0x348] sm:$0xff]
  %v1934 = vld [vmem:[%s3 + $0x350] sm:$0xff]
  %v1935 = vld [vmem:[%s3 + $0x358] sm:$0xff]
  %v1936 = vld [vmem:[%s3 + $0x360] sm:$0xff]
  %v1937 = vld [vmem:[%s3 + $0x368] sm:$0xff]
  %v1938 = vld [vmem:[%s3 + $0x370] sm:$0xff]
  %v1939 = vld [vmem:[%s3 + $0x378] sm:$0xff]
  %v1940 = vld [vmem:[%s3 + $0x380] sm:$0xff]
  %v1941 = vld [vmem:[%s3 + $0x388] sm:$0xff]
  %v1942 = vld [vmem:[%s3 + $0x390] sm:$0xff]
  %v1943 = vld [vmem:[%s3 + $0x398] sm:$0xff]
  %v1944 = vld [vmem:[%s3 + $0x3a0] sm:$0xff]
  %v1945 = vld [vmem:[%s3 + $0x3a8] sm:$0xff]
  %v1946 = vld [vmem:[%s3 + $0x3b0] sm:$0xff]
  %v1947 = vld [vmem:[%s3 + $0x3b8] sm:$0xff]
  %v1948 = vld [vmem:[%s3 + $0x3c0] sm:$0xff]
  %v1949 = vld [vmem:[%s3 + $0x3c8] sm:$0xff]
  %v1950 = vld [vmem:[%s3 + $0x3d0] sm:$0xff]
  %v1951 = vld [vmem:[%s3 + $0x3d8] sm:$0xff]
  %v1952 = vld [vmem:[%s3 + $0x3e0] sm:$0xff]
  %v1953 = vld [vmem:[%s3 + $0x3e8] sm:$0xff]
  %v1954 = vld [vmem:[%s3 + $0x3f0] sm:$0xff]
  %v1955 = vld [vmem:[%s3 + $0x3f8] sm:$0xff]
  %v1956 = vld [vmem:[%s4] sm:$0xf]
  %v1958 = vperm.slane %v1956, 0
  %v1959 = vperm.slane %v1956, 1
  %v1960 = vperm.slane %v1956, 2
  %v1961 = vperm.slane %v1956, 3
  %v2094 = vunpack.c.l.b16 %v1828
  %v2095 = vunpack.c.h.b16 %v1828
  %v2096 = vunpack.c.l.b16 %v1829
  %v2097 = vunpack.c.h.b16 %v1829
  %v2098 = vunpack.c.l.b16 %v1830
  %v2099 = vunpack.c.h.b16 %v1830
  %v2100 = vunpack.c.l.b16 %v1831
  %v2101 = vunpack.c.h.b16 %v1831
  %v2102 = vunpack.c.l.b16 %v1832
  %v2103 = vunpack.c.h.b16 %v1832
  %v2104 = vunpack.c.l.b16 %v1833
  %v2105 = vunpack.c.h.b16 %v1833
  %v2106 = vunpack.c.l.b16 %v1834
  %v2107 = vunpack.c.h.b16 %v1834
  %v2108 = vunpack.c.l.b16 %v1835
  %v2109 = vunpack.c.h.b16 %v1835
  %v2110 = vunpack.c.l.b16 %v1836
  %v2111 = vunpack.c.h.b16 %v1836
  %v2112 = vunpack.c.l.b16 %v1837
  %v2113 = vunpack.c.h.b16 %v1837
  %v2114 = vunpack.c.l.b16 %v1838
  %v2115 = vunpack.c.h.b16 %v1838
  %v2116 = vunpack.c.l.b16 %v1839
  %v2117 = vunpack.c.h.b16 %v1839
  %v2118 = vunpack.c.l.b16 %v1840
  %v2119 = vunpack.c.h.b16 %v1840
  %v2120 = vunpack.c.l.b16 %v1841
  %v2121 = vunpack.c.h.b16 %v1841
  %v2122 = vunpack.c.l.b16 %v1842
  %v2123 = vunpack.c.h.b16 %v1842
  %v2124 = vunpack.c.l.b16 %v1843
  %v2125 = vunpack.c.h.b16 %v1843
  %v2126 = vunpack.c.l.b16 %v1844
  %v2127 = vunpack.c.h.b16 %v1844
  %v2128 = vunpack.c.l.b16 %v1845
  %v2129 = vunpack.c.h.b16 %v1845
  %v2130 = vunpack.c.l.b16 %v1846
  %v2131 = vunpack.c.h.b16 %v1846
  %v2132 = vunpack.c.l.b16 %v1847
  %v2133 = vunpack.c.h.b16 %v1847
  %v2134 = vunpack.c.l.b16 %v1848
  %v2135 = vunpack.c.h.b16 %v1848
  %v2136 = vunpack.c.l.b16 %v1849
  %v2137 = vunpack.c.h.b16 %v1849
  %v2138 = vunpack.c.l.b16 %v1850
  %v2139 = vunpack.c.h.b16 %v1850
  %v2140 = vunpack.c.l.b16 %v1851
  %v2141 = vunpack.c.h.b16 %v1851
  %v2142 = vunpack.c.l.b16 %v1852
  %v2143 = vunpack.c.h.b16 %v1852
  %v2144 = vunpack.c.l.b16 %v1853
  %v2145 = vunpack.c.h.b16 %v1853
  %v2146 = vunpack.c.l.b16 %v1854
  %v2147 = vunpack.c.h.b16 %v1854
  %v2148 = vunpack.c.l.b16 %v1855
  %v2149 = vunpack.c.h.b16 %v1855
  %v2150 = vunpack.c.l.b16 %v1856
  %v2151 = vunpack.c.h.b16 %v1856
  %v2152 = vunpack.c.l.b16 %v1857
  %v2153 = vunpack.c.h.b16 %v1857
  %v2154 = vunpack.c.l.b16 %v1858
  %v2155 = vunpack.c.h.b16 %v1858
  %v2156 = vunpack.c.l.b16 %v1859
  %v2157 = vunpack.c.h.b16 %v1859
  %v2158 = vunpack.c.l.b16 %v1860
  %v2159 = vunpack.c.h.b16 %v1860
  %v2160 = vunpack.c.l.b16 %v1861
  %v2161 = vunpack.c.h.b16 %v1861
  %v2162 = vunpack.c.l.b16 %v1862
  %v2163 = vunpack.c.h.b16 %v1862
  %v2164 = vunpack.c.l.b16 %v1863
  %v2165 = vunpack.c.h.b16 %v1863
  %v2166 = vunpack.c.l.b16 %v1864
  %v2167 = vunpack.c.h.b16 %v1864
  %v2168 = vunpack.c.l.b16 %v1865
  %v2169 = vunpack.c.h.b16 %v1865
  %v2170 = vunpack.c.l.b16 %v1866
  %v2171 = vunpack.c.h.b16 %v1866
  %v2172 = vunpack.c.l.b16 %v1867
  %v2173 = vunpack.c.h.b16 %v1867
  %v2174 = vunpack.c.l.b16 %v1868
  %v2175 = vunpack.c.h.b16 %v1868
  %v2176 = vunpack.c.l.b16 %v1869
  %v2177 = vunpack.c.h.b16 %v1869
  %v2178 = vunpack.c.l.b16 %v1870
  %v2179 = vunpack.c.h.b16 %v1870
  %v2180 = vunpack.c.l.b16 %v1871
  %v2181 = vunpack.c.h.b16 %v1871
  %v2182 = vunpack.c.l.b16 %v1872
  %v2183 = vunpack.c.h.b16 %v1872
  %v2184 = vunpack.c.l.b16 %v1873
  %v2185 = vunpack.c.h.b16 %v1873
  %v2186 = vunpack.c.l.b16 %v1874
  %v2187 = vunpack.c.h.b16 %v1874
  %v2188 = vunpack.c.l.b16 %v1875
  %v2189 = vunpack.c.h.b16 %v1875
  %v2190 = vunpack.c.l.b16 %v1876
  %v2191 = vunpack.c.h.b16 %v1876
  %v2192 = vunpack.c.l.b16 %v1877
  %v2193 = vunpack.c.h.b16 %v1877
  %v2194 = vunpack.c.l.b16 %v1878
  %v2195 = vunpack.c.h.b16 %v1878
  %v2196 = vunpack.c.l.b16 %v1879
  %v2197 = vunpack.c.h.b16 %v1879
  %v2198 = vunpack.c.l.b16 %v1880
  %v2199 = vunpack.c.h.b16 %v1880
  %v2200 = vunpack.c.l.b16 %v1881
  %v2201 = vunpack.c.h.b16 %v1881
  %v2202 = vunpack.c.l.b16 %v1882
  %v2203 = vunpack.c.h.b16 %v1882
  %v2204 = vunpack.c.l.b16 %v1883
  %v2205 = vunpack.c.h.b16 %v1883
  %v2206 = vunpack.c.l.b16 %v1884
  %v2207 = vunpack.c.h.b16 %v1884
  %v2208 = vunpack.c.l.b16 %v1885
  %v2209 = vunpack.c.h.b16 %v1885
  %v2210 = vunpack.c.l.b16 %v1886
  %v2211 = vunpack.c.h.b16 %v1886
  %v2212 = vunpack.c.l.b16 %v1887
  %v2213 = vunpack.c.h.b16 %v1887
  %v2214 = vunpack.c.l.b16 %v1888
  %v2215 = vunpack.c.h.b16 %v1888
  %v2216 = vunpack.c.l.b16 %v1889
  %v2217 = vunpack.c.h.b16 %v1889
  %v2218 = vunpack.c.l.b16 %v1890
  %v2219 = vunpack.c.h.b16 %v1890
  %v2220 = vunpack.c.l.b16 %v1891
  %v2221 = vunpack.c.h.b16 %v1891
  %v2222 = vunpack.c.l.b16 %v1892
  %v2223 = vunpack.c.h.b16 %v1892
  %v2224 = vunpack.c.l.b16 %v1893
  %v2225 = vunpack.c.h.b16 %v1893
  %v2226 = vunpack.c.l.b16 %v1894
  %v2227 = vunpack.c.h.b16 %v1894
  %v2228 = vunpack.c.l.b16 %v1895
  %v2229 = vunpack.c.h.b16 %v1895
  %v2230 = vunpack.c.l.b16 %v1896
  %v2231 = vunpack.c.h.b16 %v1896
  %v2232 = vunpack.c.l.b16 %v1897
  %v2233 = vunpack.c.h.b16 %v1897
  %v2234 = vunpack.c.l.b16 %v1898
  %v2235 = vunpack.c.h.b16 %v1898
  %v2236 = vunpack.c.l.b16 %v1899
  %v2237 = vunpack.c.h.b16 %v1899
  %v2238 = vunpack.c.l.b16 %v1900
  %v2239 = vunpack.c.h.b16 %v1900
  %v2240 = vunpack.c.l.b16 %v1901
  %v2241 = vunpack.c.h.b16 %v1901
  %v2242 = vunpack.c.l.b16 %v1902
  %v2243 = vunpack.c.h.b16 %v1902
  %v2244 = vunpack.c.l.b16 %v1903
  %v2245 = vunpack.c.h.b16 %v1903
  %v2246 = vunpack.c.l.b16 %v1904
  %v2247 = vunpack.c.h.b16 %v1904
  %v2248 = vunpack.c.l.b16 %v1905
  %v2249 = vunpack.c.h.b16 %v1905
  %v2250 = vunpack.c.l.b16 %v1906
  %v2251 = vunpack.c.h.b16 %v1906
  %v2252 = vunpack.c.l.b16 %v1907
  %v2253 = vunpack.c.h.b16 %v1907
  %v2254 = vunpack.c.l.b16 %v1908
  %v2255 = vunpack.c.h.b16 %v1908
  %v2256 = vunpack.c.l.b16 %v1909
  %v2257 = vunpack.c.h.b16 %v1909
  %v2258 = vunpack.c.l.b16 %v1910
  %v2259 = vunpack.c.h.b16 %v1910
  %v2260 = vunpack.c.l.b16 %v1911
  %v2261 = vunpack.c.h.b16 %v1911
  %v2262 = vunpack.c.l.b16 %v1912
  %v2263 = vunpack.c.h.b16 %v1912
  %v2264 = vunpack.c.l.b16 %v1913
  %v2265 = vunpack.c.h.b16 %v1913
  %v2266 = vunpack.c.l.b16 %v1914
  %v2267 = vunpack.c.h.b16 %v1914
  %v2268 = vunpack.c.l.b16 %v1915
  %v2269 = vunpack.c.h.b16 %v1915
  %v2270 = vunpack.c.l.b16 %v1916
  %v2271 = vunpack.c.h.b16 %v1916
  %v2272 = vunpack.c.l.b16 %v1917
  %v2273 = vunpack.c.h.b16 %v1917
  %v2274 = vunpack.c.l.b16 %v1918
  %v2275 = vunpack.c.h.b16 %v1918
  %v2276 = vunpack.c.l.b16 %v1919
  %v2277 = vunpack.c.h.b16 %v1919
  %v2278 = vunpack.c.l.b16 %v1920
  %v2279 = vunpack.c.h.b16 %v1920
  %v2280 = vunpack.c.l.b16 %v1921
  %v2281 = vunpack.c.h.b16 %v1921
  %v2282 = vunpack.c.l.b16 %v1922
  %v2283 = vunpack.c.h.b16 %v1922
  %v2284 = vunpack.c.l.b16 %v1923
  %v2285 = vunpack.c.h.b16 %v1923
  %v2286 = vunpack.c.l.b16 %v1924
  %v2287 = vunpack.c.h.b16 %v1924
  %v2288 = vunpack.c.l.b16 %v1925
  %v2289 = vunpack.c.h.b16 %v1925
  %v2290 = vunpack.c.l.b16 %v1926
  %v2291 = vunpack.c.h.b16 %v1926
  %v2292 = vunpack.c.l.b16 %v1927
  %v2293 = vunpack.c.h.b16 %v1927
  %v2294 = vunpack.c.l.b16 %v1928
  %v2295 = vunpack.c.h.b16 %v1928
  %v2296 = vunpack.c.l.b16 %v1929
  %v2297 = vunpack.c.h.b16 %v1929
  %v2298 = vunpack.c.l.b16 %v1930
  %v2299 = vunpack.c.h.b16 %v1930
  %v2300 = vunpack.c.l.b16 %v1931
  %v2301 = vunpack.c.h.b16 %v1931
  %v2302 = vunpack.c.l.b16 %v1932
  %v2303 = vunpack.c.h.b16 %v1932
  %v2304 = vunpack.c.l.b16 %v1933
  %v2305 = vunpack.c.h.b16 %v1933
  %v2306 = vunpack.c.l.b16 %v1934
  %v2307 = vunpack.c.h.b16 %v1934
  %v2308 = vunpack.c.l.b16 %v1935
  %v2309 = vunpack.c.h.b16 %v1935
  %v2310 = vunpack.c.l.b16 %v1936
  %v2311 = vunpack.c.h.b16 %v1936
  %v2312 = vunpack.c.l.b16 %v1937
  %v2313 = vunpack.c.h.b16 %v1937
  %v2314 = vunpack.c.l.b16 %v1938
  %v2315 = vunpack.c.h.b16 %v1938
  %v2316 = vunpack.c.l.b16 %v1939
  %v2317 = vunpack.c.h.b16 %v1939
  %v2318 = vunpack.c.l.b16 %v1940
  %v2319 = vunpack.c.h.b16 %v1940
  %v2320 = vunpack.c.l.b16 %v1941
  %v2321 = vunpack.c.h.b16 %v1941
  %v2322 = vunpack.c.l.b16 %v1942
  %v2323 = vunpack.c.h.b16 %v1942
  %v2324 = vunpack.c.l.b16 %v1943
  %v2325 = vunpack.c.h.b16 %v1943
  %v2326 = vunpack.c.l.b16 %v1944
  %v2327 = vunpack.c.h.b16 %v1944
  %v2328 = vunpack.c.l.b16 %v1945
  %v2329 = vunpack.c.h.b16 %v1945
  %v2330 = vunpack.c.l.b16 %v1946
  %v2331 = vunpack.c.h.b16 %v1946
  %v2332 = vunpack.c.l.b16 %v1947
  %v2333 = vunpack.c.h.b16 %v1947
  %v2334 = vunpack.c.l.b16 %v1948
  %v2335 = vunpack.c.h.b16 %v1948
  %v2336 = vunpack.c.l.b16 %v1949
  %v2337 = vunpack.c.h.b16 %v1949
  %v2338 = vunpack.c.l.b16 %v1950
  %v2339 = vunpack.c.h.b16 %v1950
  %v2340 = vunpack.c.l.b16 %v1951
  %v2341 = vunpack.c.h.b16 %v1951
  %v2342 = vunpack.c.l.b16 %v1952
  %v2343 = vunpack.c.h.b16 %v1952
  %v2344 = vunpack.c.l.b16 %v1953
  %v2345 = vunpack.c.h.b16 %v1953
  %v2346 = vunpack.c.l.b16 %v1954
  %v2347 = vunpack.c.h.b16 %v1954
  %v2348 = vunpack.c.l.b16 %v1955
  %v2349 = vunpack.c.h.b16 %v1955
  %v2350 = vpack.c.b16 %v2098, %v2094
  %v2351 = vpack.c.b16 %v2099, %v2095
  %v2352 = vpack.c.b16 %v2100, %v2096
  %v2353 = vpack.c.b16 %v2101, %v2097
  %v2354 = vpack.c.b16 %v2106, %v2102
  %v2355 = vpack.c.b16 %v2107, %v2103
  %v2356 = vpack.c.b16 %v2108, %v2104
  %v2357 = vpack.c.b16 %v2109, %v2105
  %v2358 = vpack.c.b16 %v2114, %v2110
  %v2359 = vpack.c.b16 %v2115, %v2111
  %v2360 = vpack.c.b16 %v2116, %v2112
  %v2361 = vpack.c.b16 %v2117, %v2113
  %v2362 = vpack.c.b16 %v2122, %v2118
  %v2363 = vpack.c.b16 %v2123, %v2119
  %v2364 = vpack.c.b16 %v2124, %v2120
  %v2365 = vpack.c.b16 %v2125, %v2121
  %v2366 = vpack.c.b16 %v2130, %v2126
  %v2367 = vpack.c.b16 %v2131, %v2127
  %v2368 = vpack.c.b16 %v2132, %v2128
  %v2369 = vpack.c.b16 %v2133, %v2129
  %v2370 = vpack.c.b16 %v2138, %v2134
  %v2371 = vpack.c.b16 %v2139, %v2135
  %v2372 = vpack.c.b16 %v2140, %v2136
  %v2373 = vpack.c.b16 %v2141, %v2137
  %v2374 = vpack.c.b16 %v2146, %v2142
  %v2375 = vpack.c.b16 %v2147, %v2143
  %v2376 = vpack.c.b16 %v2148, %v2144
  %v2377 = vpack.c.b16 %v2149, %v2145
  %v2378 = vpack.c.b16 %v2154, %v2150
  %v2379 = vpack.c.b16 %v2155, %v2151
  %v2380 = vpack.c.b16 %v2156, %v2152
  %v2381 = vpack.c.b16 %v2157, %v2153
  %v2382 = vpack.c.b16 %v2162, %v2158
  %v2383 = vpack.c.b16 %v2163, %v2159
  %v2384 = vpack.c.b16 %v2164, %v2160
  %v2385 = vpack.c.b16 %v2165, %v2161
  %v2386 = vpack.c.b16 %v2170, %v2166
  %v2387 = vpack.c.b16 %v2171, %v2167
  %v2388 = vpack.c.b16 %v2172, %v2168
  %v2389 = vpack.c.b16 %v2173, %v2169
  %v2390 = vpack.c.b16 %v2178, %v2174
  %v2391 = vpack.c.b16 %v2179, %v2175
  %v2392 = vpack.c.b16 %v2180, %v2176
  %v2393 = vpack.c.b16 %v2181, %v2177
  %v2394 = vpack.c.b16 %v2186, %v2182
  %v2395 = vpack.c.b16 %v2187, %v2183
  %v2396 = vpack.c.b16 %v2188, %v2184
  %v2397 = vpack.c.b16 %v2189, %v2185
  %v2398 = vpack.c.b16 %v2194, %v2190
  %v2399 = vpack.c.b16 %v2195, %v2191
  %v2400 = vpack.c.b16 %v2196, %v2192
  %v2401 = vpack.c.b16 %v2197, %v2193
  %v2402 = vpack.c.b16 %v2202, %v2198
  %v2403 = vpack.c.b16 %v2203, %v2199
  %v2404 = vpack.c.b16 %v2204, %v2200
  %v2405 = vpack.c.b16 %v2205, %v2201
  %v2406 = vpack.c.b16 %v2210, %v2206
  %v2407 = vpack.c.b16 %v2211, %v2207
  %v2408 = vpack.c.b16 %v2212, %v2208
  %v2409 = vpack.c.b16 %v2213, %v2209
  %v2410 = vpack.c.b16 %v2218, %v2214
  %v2411 = vpack.c.b16 %v2219, %v2215
  %v2412 = vpack.c.b16 %v2220, %v2216
  %v2413 = vpack.c.b16 %v2221, %v2217
  %v2414 = vpack.c.b16 %v2226, %v2222
  %v2415 = vpack.c.b16 %v2227, %v2223
  %v2416 = vpack.c.b16 %v2228, %v2224
  %v2417 = vpack.c.b16 %v2229, %v2225
  %v2418 = vpack.c.b16 %v2234, %v2230
  %v2419 = vpack.c.b16 %v2235, %v2231
  %v2420 = vpack.c.b16 %v2236, %v2232
  %v2421 = vpack.c.b16 %v2237, %v2233
  %v2422 = vpack.c.b16 %v2242, %v2238
  %v2423 = vpack.c.b16 %v2243, %v2239
  %v2424 = vpack.c.b16 %v2244, %v2240
  %v2425 = vpack.c.b16 %v2245, %v2241
  %v2426 = vpack.c.b16 %v2250, %v2246
  %v2427 = vpack.c.b16 %v2251, %v2247
  %v2428 = vpack.c.b16 %v2252, %v2248
  %v2429 = vpack.c.b16 %v2253, %v2249
  %v2430 = vpack.c.b16 %v2258, %v2254
  %v2431 = vpack.c.b16 %v2259, %v2255
  %v2432 = vpack.c.b16 %v2260, %v2256
  %v2433 = vpack.c.b16 %v2261, %v2257
  %v2434 = vpack.c.b16 %v2266, %v2262
  %v2435 = vpack.c.b16 %v2267, %v2263
  %v2436 = vpack.c.b16 %v2268, %v2264
  %v2437 = vpack.c.b16 %v2269, %v2265
  %v2438 = vpack.c.b16 %v2274, %v2270
  %v2439 = vpack.c.b16 %v2275, %v2271
  %v2440 = vpack.c.b16 %v2276, %v2272
  %v2441 = vpack.c.b16 %v2277, %v2273
  %v2442 = vpack.c.b16 %v2282, %v2278
  %v2443 = vpack.c.b16 %v2283, %v2279
  %v2444 = vpack.c.b16 %v2284, %v2280
  %v2445 = vpack.c.b16 %v2285, %v2281
  %v2446 = vpack.c.b16 %v2290, %v2286
  %v2447 = vpack.c.b16 %v2291, %v2287
  %v2448 = vpack.c.b16 %v2292, %v2288
  %v2449 = vpack.c.b16 %v2293, %v2289
  %v2450 = vpack.c.b16 %v2298, %v2294
  %v2451 = vpack.c.b16 %v2299, %v2295
  %v2452 = vpack.c.b16 %v2300, %v2296
  %v2453 = vpack.c.b16 %v2301, %v2297
  %v2454 = vpack.c.b16 %v2306, %v2302
  %v2455 = vpack.c.b16 %v2307, %v2303
  %v2456 = vpack.c.b16 %v2308, %v2304
  %v2457 = vpack.c.b16 %v2309, %v2305
  %v2458 = vpack.c.b16 %v2314, %v2310
  %v2459 = vpack.c.b16 %v2315, %v2311
  %v2460 = vpack.c.b16 %v2316, %v2312
  %v2461 = vpack.c.b16 %v2317, %v2313
  %v2462 = vpack.c.b16 %v2322, %v2318
  %v2463 = vpack.c.b16 %v2323, %v2319
  %v2464 = vpack.c.b16 %v2324, %v2320
  %v2465 = vpack.c.b16 %v2325, %v2321
  %v2466 = vpack.c.b16 %v2330, %v2326
  %v2467 = vpack.c.b16 %v2331, %v2327
  %v2468 = vpack.c.b16 %v2332, %v2328
  %v2469 = vpack.c.b16 %v2333, %v2329
  %v2470 = vpack.c.b16 %v2338, %v2334
  %v2471 = vpack.c.b16 %v2339, %v2335
  %v2472 = vpack.c.b16 %v2340, %v2336
  %v2473 = vpack.c.b16 %v2341, %v2337
  %v2474 = vpack.c.b16 %v2346, %v2342
  %v2475 = vpack.c.b16 %v2347, %v2343
  %v2476 = vpack.c.b16 %v2348, %v2344
  %v2477 = vpack.c.b16 %v2349, %v2345
  %2606 = vmatpush.bf16.msra.mxu0 %v2378
  %2607 = vmatpush.bf16.msra.mxu0 %v2374
  %2608 = vmatpush.bf16.msra.mxu0 %v2370
  %2609 = vmatpush.bf16.msra.mxu0 %v2366
  %2610 = vmatpush.bf16.msra.mxu0 %v2362
  %2611 = vmatpush.bf16.msra.mxu0 %v2358
  %2612 = vmatpush.bf16.msra.mxu0 %v2354
  %2613 = vmatpush.bf16.msra.mxu0 %v2350
  %2614 = vmatmul.bf16.gmra.mxu0 %v1824
  %v2615 = vpop.f32.mrf.mxu0
  %v2616 = vadd.f32 %v1958, %v2615
  %v2617 = vpop.f32.mrf.mxu0
  %v2618 = vadd.f32 %v1958, %v2617
  %2619 = vdwg.mxu0
  %2620 = vmatpush.bf16.msra.mxu0 %v2410
  %2621 = vmatpush.bf16.msra.mxu0 %v2406
  %2622 = vmatpush.bf16.msra.mxu0 %v2402
  %2623 = vmatpush.bf16.msra.mxu0 %v2398
  %2624 = vmatpush.bf16.msra.mxu0 %v2394
  %2625 = vmatpush.bf16.msra.mxu0 %v2390
  %2626 = vmatpush.bf16.msra.mxu0 %v2386
  %2627 = vmatpush.bf16.msra.mxu0 %v2382
  %2628 = vmatmul.bf16.gmra.mxu0 %v1825
  %v2629 = vpop.f32.mrf.mxu0
  %v2630 = vadd.f32 %v2616, %v2629
  %v2631 = vpop.f32.mrf.mxu0
  %v2632 = vadd.f32 %v2618, %v2631
  %2633 = vdwg.mxu0
  %2634 = vmatpush.bf16.msra.mxu0 %v2442
  %2635 = vmatpush.bf16.msra.mxu0 %v2438
  %2636 = vmatpush.bf16.msra.mxu0 %v2434
  %2637 = vmatpush.bf16.msra.mxu0 %v2430
  %2638 = vmatpush.bf16.msra.mxu0 %v2426
  %2639 = vmatpush.bf16.msra.mxu0 %v2422
  %2640 = vmatpush.bf16.msra.mxu0 %v2418
  %2641 = vmatpush.bf16.msra.mxu0 %v2414
  %2642 = vmatmul.bf16.gmra.mxu0 %v1826
  %v2643 = vpop.f32.mrf.mxu0
  %v2644 = vadd.f32 %v2630, %v2643
  %v2645 = vpop.f32.mrf.mxu0
  %v2646 = vadd.f32 %v2632, %v2645
  %2647 = vdwg.mxu0
  %2648 = vmatpush.bf16.msra.mxu0 %v2474
  %2649 = vmatpush.bf16.msra.mxu0 %v2470
  %2650 = vmatpush.bf16.msra.mxu0 %v2466
  %2651 = vmatpush.bf16.msra.mxu0 %v2462
  %2652 = vmatpush.bf16.msra.mxu0 %v2458
  %2653 = vmatpush.bf16.msra.mxu0 %v2454
  %2654 = vmatpush.bf16.msra.mxu0 %v2450
  %2655 = vmatpush.bf16.msra.mxu0 %v2446
  %2656 = vmatmul.bf16.gmra.mxu0 %v1827
  %v2657 = vpop.f32.mrf.mxu0
  %v2658 = vadd.f32 %v2644, %v2657
  %v2659 = vpop.f32.mrf.mxu0
  %v2660 = vadd.f32 %v2646, %v2659
  %2661 = vdwg.mxu0
  %2662 = vmatpush.bf16.msra.mxu0 %v2379
  %2663 = vmatpush.bf16.msra.mxu0 %v2375
  %2664 = vmatpush.bf16.msra.mxu0 %v2371
  %2665 = vmatpush.bf16.msra.mxu0 %v2367
  %2666 = vmatpush.bf16.msra.mxu0 %v2363
  %2667 = vmatpush.bf16.msra.mxu0 %v2359
  %2668 = vmatpush.bf16.msra.mxu0 %v2355
  %2669 = vmatpush.bf16.msra.mxu0 %v2351
  %2670 = vmatmul.bf16.gmra.mxu0 %v1824
  %v2671 = vpop.f32.mrf.mxu0
  %v2672 = vadd.f32 %v1959, %v2671
  %v2673 = vpop.f32.mrf.mxu0
  %v2674 = vadd.f32 %v1959, %v2673
  %2675 = vdwg.mxu0
  %2676 = vmatpush.bf16.msra.mxu0 %v2411
  %2677 = vmatpush.bf16.msra.mxu0 %v2407
  %2678 = vmatpush.bf16.msra.mxu0 %v2403
  %2679 = vmatpush.bf16.msra.mxu0 %v2399
  %2680 = vmatpush.bf16.msra.mxu0 %v2395
  %2681 = vmatpush.bf16.msra.mxu0 %v2391
  %2682 = vmatpush.bf16.msra.mxu0 %v2387
  %2683 = vmatpush.bf16.msra.mxu0 %v2383
  %2684 = vmatmul.bf16.gmra.mxu0 %v1825
  %v2685 = vpop.f32.mrf.mxu0
  %v2686 = vadd.f32 %v2672, %v2685
  %v2687 = vpop.f32.mrf.mxu0
  %v2688 = vadd.f32 %v2674, %v2687
  %2689 = vdwg.mxu0
  %2690 = vmatpush.bf16.msra.mxu0 %v2443
  %2691 = vmatpush.bf16.msra.mxu0 %v2439
  %2692 = vmatpush.bf16.msra.mxu0 %v2435
  %2693 = vmatpush.bf16.msra.mxu0 %v2431
  %2694 = vmatpush.bf16.msra.mxu0 %v2427
  %2695 = vmatpush.bf16.msra.mxu0 %v2423
  %2696 = vmatpush.bf16.msra.mxu0 %v2419
  %2697 = vmatpush.bf16.msra.mxu0 %v2415
  %2698 = vmatmul.bf16.gmra.mxu0 %v1826
  %v2699 = vpop.f32.mrf.mxu0
  %v2700 = vadd.f32 %v2686, %v2699
  %v2701 = vpop.f32.mrf.mxu0
  %v2702 = vadd.f32 %v2688, %v2701
  %2703 = vdwg.mxu0
  %2704 = vmatpush.bf16.msra.mxu0 %v2475
  %2705 = vmatpush.bf16.msra.mxu0 %v2471
  %2706 = vmatpush.bf16.msra.mxu0 %v2467
  %2707 = vmatpush.bf16.msra.mxu0 %v2463
  %2708 = vmatpush.bf16.msra.mxu0 %v2459
  %2709 = vmatpush.bf16.msra.mxu0 %v2455
  %2710 = vmatpush.bf16.msra.mxu0 %v2451
  %2711 = vmatpush.bf16.msra.mxu0 %v2447
  %2712 = vmatmul.bf16.gmra.mxu0 %v1827
  %v2713 = vpop.f32.mrf.mxu0
  %v2714 = vadd.f32 %v2700, %v2713
  %v2715 = vpop.f32.mrf.mxu0
  %v2716 = vadd.f32 %v2702, %v2715
  %2717 = vdwg.mxu0
  %2718 = vmatpush.bf16.msra.mxu0 %v2380
  %2719 = vmatpush.bf16.msra.mxu0 %v2376
  %2720 = vmatpush.bf16.msra.mxu0 %v2372
  %2721 = vmatpush.bf16.msra.mxu0 %v2368
  %2722 = vmatpush.bf16.msra.mxu0 %v2364
  %2723 = vmatpush.bf16.msra.mxu0 %v2360
  %2724 = vmatpush.bf16.msra.mxu0 %v2356
  %2725 = vmatpush.bf16.msra.mxu0 %v2352
  %2726 = vmatmul.bf16.gmra.mxu0 %v1824
  %v2727 = vpop.f32.mrf.mxu0
  %v2728 = vadd.f32 %v1960, %v2727
  %v2729 = vpop.f32.mrf.mxu0
  %v2730 = vadd.f32 %v1960, %v2729
  %2731 = vdwg.mxu0
  %2732 = vmatpush.bf16.msra.mxu0 %v2412
  %2733 = vmatpush.bf16.msra.mxu0 %v2408
  %2734 = vmatpush.bf16.msra.mxu0 %v2404
  %2735 = vmatpush.bf16.msra.mxu0 %v2400
  %2736 = vmatpush.bf16.msra.mxu0 %v2396
  %2737 = vmatpush.bf16.msra.mxu0 %v2392
  %2738 = vmatpush.bf16.msra.mxu0 %v2388
  %2739 = vmatpush.bf16.msra.mxu0 %v2384
  %2740 = vmatmul.bf16.gmra.mxu0 %v1825
  %v2741 = vpop.f32.mrf.mxu0
  %v2742 = vadd.f32 %v2728, %v2741
  %v2743 = vpop.f32.mrf.mxu0
  %v2744 = vadd.f32 %v2730, %v2743
  %2745 = vdwg.mxu0
  %2746 = vmatpush.bf16.msra.mxu0 %v2444
  %2747 = vmatpush.bf16.msra.mxu0 %v2440
  %2748 = vmatpush.bf16.msra.mxu0 %v2436
  %2749 = vmatpush.bf16.msra.mxu0 %v2432
  %2750 = vmatpush.bf16.msra.mxu0 %v2428
  %2751 = vmatpush.bf16.msra.mxu0 %v2424
  %2752 = vmatpush.bf16.msra.mxu0 %v2420
  %2753 = vmatpush.bf16.msra.mxu0 %v2416
  %2754 = vmatmul.bf16.gmra.mxu0 %v1826
  %v2755 = vpop.f32.mrf.mxu0
  %v2756 = vadd.f32 %v2742, %v2755
  %v2757 = vpop.f32.mrf.mxu0
  %v2758 = vadd.f32 %v2744, %v2757
  %2759 = vdwg.mxu0
  %2760 = vmatpush.bf16.msra.mxu0 %v2476
  %2761 = vmatpush.bf16.msra.mxu0 %v2472
  %2762 = vmatpush.bf16.msra.mxu0 %v2468
  %2763 = vmatpush.bf16.msra.mxu0 %v2464
  %2764 = vmatpush.bf16.msra.mxu0 %v2460
  %2765 = vmatpush.bf16.msra.mxu0 %v2456
  %2766 = vmatpush.bf16.msra.mxu0 %v2452
  %2767 = vmatpush.bf16.msra.mxu0 %v2448
  %2768 = vmatmul.bf16.gmra.mxu0 %v1827
  %v2769 = vpop.f32.mrf.mxu0
  %v2770 = vadd.f32 %v2756, %v2769
  %v2771 = vpop.f32.mrf.mxu0
  %v2772 = vadd.f32 %v2758, %v2771
  %2773 = vdwg.mxu0
  %2774 = vmatpush.bf16.msra.mxu0 %v2381
  %2775 = vmatpush.bf16.msra.mxu0 %v2377
  %2776 = vmatpush.bf16.msra.mxu0 %v2373
  %2777 = vmatpush.bf16.msra.mxu0 %v2369
  %2778 = vmatpush.bf16.msra.mxu0 %v2365
  %2779 = vmatpush.bf16.msra.mxu0 %v2361
  %2780 = vmatpush.bf16.msra.mxu0 %v2357
  %2781 = vmatpush.bf16.msra.mxu0 %v2353
  %2782 = vmatmul.bf16.gmra.mxu0 %v1824
  %v2783 = vpop.f32.mrf.mxu0
  %v2784 = vadd.f32 %v1961, %v2783
  %v2785 = vpop.f32.mrf.mxu0
  %v2786 = vadd.f32 %v1961, %v2785
  %2787 = vdwg.mxu0
  %2788 = vmatpush.bf16.msra.mxu0 %v2413
  %2789 = vmatpush.bf16.msra.mxu0 %v2409
  %2790 = vmatpush.bf16.msra.mxu0 %v2405
  %2791 = vmatpush.bf16.msra.mxu0 %v2401
  %2792 = vmatpush.bf16.msra.mxu0 %v2397
  %2793 = vmatpush.bf16.msra.mxu0 %v2393
  %2794 = vmatpush.bf16.msra.mxu0 %v2389
  %2795 = vmatpush.bf16.msra.mxu0 %v2385
  %2796 = vmatmul.bf16.gmra.mxu0 %v1825
  %v2797 = vpop.f32.mrf.mxu0
  %v2798 = vadd.f32 %v2784, %v2797
  %v2799 = vpop.f32.mrf.mxu0
  %v2800 = vadd.f32 %v2786, %v2799
  %2801 = vdwg.mxu0
  %2802 = vmatpush.bf16.msra.mxu0 %v2445
  %2803 = vmatpush.bf16.msra.mxu0 %v2441
  %2804 = vmatpush.bf16.msra.mxu0 %v2437
  %2805 = vmatpush.bf16.msra.mxu0 %v2433
  %2806 = vmatpush.bf16.msra.mxu0 %v2429
  %2807 = vmatpush.bf16.msra.mxu0 %v2425
  %2808 = vmatpush.bf16.msra.mxu0 %v2421
  %2809 = vmatpush.bf16.msra.mxu0 %v2417
  %2810 = vmatmul.bf16.gmra.mxu0 %v1826
  %v2811 = vpop.f32.mrf.mxu0
  %v2812 = vadd.f32 %v2798, %v2811
  %v2813 = vpop.f32.mrf.mxu0
  %v2814 = vadd.f32 %v2800, %v2813
  %2815 = vdwg.mxu0
  %2816 = vmatpush.bf16.msra.mxu0 %v2477
  %2817 = vmatpush.bf16.msra.mxu0 %v2473
  %2818 = vmatpush.bf16.msra.mxu0 %v2469
  %2819 = vmatpush.bf16.msra.mxu0 %v2465
  %2820 = vmatpush.bf16.msra.mxu0 %v2461
  %2821 = vmatpush.bf16.msra.mxu0 %v2457
  %2822 = vmatpush.bf16.msra.mxu0 %v2453
  %2823 = vmatpush.bf16.msra.mxu0 %v2449
  %2824 = vmatmul.bf16.gmra.mxu0 %v1827
  %v2825 = vpop.f32.mrf.mxu0
  %v2826 = vadd.f32 %v2812, %v2825
  %v2827 = vpop.f32.mrf.mxu0
  %v2828 = vadd.f32 %v2814, %v2827
  %2829 = vdwg.mxu0
  %v2830 = vmax.f32 %v2658, 0.0
  %v2831 = vmax.f32 %v2714, 0.0
  %v2832 = vmax.f32 %v2770, 0.0
  %v2833 = vmax.f32 %v2826, 0.0
  %v2834 = vmax.f32 %v2660, 0.0
  %v2835 = vmax.f32 %v2716, 0.0
  %v2836 = vmax.f32 %v2772, 0.0
  %v2837 = vmax.f32 %v2828, 0.0
  %v2838 = vpack.c.bf16 %v2834, %v2830
  %v2839 = vpack.c.bf16 %v2835, %v2831
  %v2840 = vpack.c.bf16 %v2836, %v2832
  %v2841 = vpack.c.bf16 %v2837, %v2833
  %v2842 = vld [vmem:[%s5] sm:$0xff]
  %v2843 = vld [vmem:[%s5 + $0x8] sm:$0xff]
  %v2844 = vld [vmem:[%s5 + $0x10] sm:$0xff]
  %v2845 = vld [vmem:[%s5 + $0x18] sm:$0xf]
  %v2846 = vld [vmem:[%s5 + $0x1c] sm:$0xff]
  %v2847 = vld [vmem:[%s5 + $0x24] sm:$0xff]
  %v2848 = vld [vmem:[%s5 + $0x2c] sm:$0xff]
  %v2849 = vld [vmem:[%s5 + $0x34] sm:$0xf]
  %v2850 = vld [vmem:[%s5 + $0x38] sm:$0xff]
  %v2851 = vld [vmem:[%s5 + $0x40] sm:$0xff]
  %v2852 = vld [vmem:[%s5 + $0x48] sm:$0xff]
  %v2853 = vld [vmem:[%s5 + $0x50] sm:$0xf]
  %v2854 = vld [vmem:[%s5 + $0x54] sm:$0xff]
  %v2855 = vld [vmem:[%s5 + $0x5c] sm:$0xff]
  %v2856 = vld [vmem:[%s5 + $0x64] sm:$0xff]
  %v2857 = vld [vmem:[%s5 + $0x6c] sm:$0xf]
  %v2858 = vld [vmem:[%s5 + $0x70] sm:$0xff]
  %v2859 = vld [vmem:[%s5 + $0x78] sm:$0xff]
  %v2860 = vld [vmem:[%s5 + $0x80] sm:$0xff]
  %v2861 = vld [vmem:[%s5 + $0x88] sm:$0xf]
  %v2862 = vld [vmem:[%s5 + $0x8c] sm:$0xff]
  %v2863 = vld [vmem:[%s5 + $0x94] sm:$0xff]
  %v2864 = vld [vmem:[%s5 + $0x9c] sm:$0xff]
  %v2865 = vld [vmem:[%s5 + $0xa4] sm:$0xf]
  %v2866 = vld [vmem:[%s5 + $0xa8] sm:$0xff]
  %v2867 = vld [vmem:[%s5 + $0xb0] sm:$0xff]
  %v2868 = vld [vmem:[%s5 + $0xb8] sm:$0xff]
  %v2869 = vld [vmem:[%s5 + $0xc0] sm:$0xf]
  %v2870 = vld [vmem:[%s5 + $0xc4] sm:$0xff]
  %v2871 = vld [vmem:[%s5 + $0xcc] sm:$0xff]
  %v2872 = vld [vmem:[%s5 + $0xd4] sm:$0xff]
  %v2873 = vld [vmem:[%s5 + $0xdc] sm:$0xf]
  %v2874 = vld [vmem:[%s5 + $0xe0] sm:$0xff]
  %v2875 = vld [vmem:[%s5 + $0xe8] sm:$0xff]
  %v2876 = vld [vmem:[%s5 + $0xf0] sm:$0xff]
  %v2877 = vld [vmem:[%s5 + $0xf8] sm:$0xf]
  %v2878 = vld [vmem:[%s5 + $0xfc] sm:$0xff]
  %v2879 = vld [vmem:[%s5 + $0x104] sm:$0xff]
  %v2880 = vld [vmem:[%s5 + $0x10c] sm:$0xff]
  %v2881 = vld [vmem:[%s5 + $0x114] sm:$0xf]
  %v2882 = vld [vmem:[%s5 + $0x118] sm:$0xff]
  %v2883 = vld [vmem:[%s5 + $0x120] sm:$0xff]
  %v2884 = vld [vmem:[%s5 + $0x128] sm:$0xff]
  %v2885 = vld [vmem:[%s5 + $0x130] sm:$0xf]
  %v2886 = vld [vmem:[%s5 + $0x134] sm:$0xff]
  %v2887 = vld [vmem:[%s5 + $0x13c] sm:$0xff]
  %v2888 = vld [vmem:[%s5 + $0x144] sm:$0xff]
  %v2889 = vld [vmem:[%s5 + $0x14c] sm:$0xf]
  %v2890 = vld [vmem:[%s5 + $0x150] sm:$0xff]
  %v2891 = vld [vmem:[%s5 + $0x158] sm:$0xff]
  %v2892 = vld [vmem:[%s5 + $0x160] sm:$0xff]
  %v2893 = vld [vmem:[%s5 + $0x168] sm:$0xf]
  %v2894 = vld [vmem:[%s5 + $0x16c] sm:$0xff]
  %v2895 = vld [vmem:[%s5 + $0x174] sm:$0xff]
  %v2896 = vld [vmem:[%s5 + $0x17c] sm:$0xff]
  %v2897 = vld [vmem:[%s5 + $0x184] sm:$0xf]
  %v2898 = vld [vmem:[%s5 + $0x188] sm:$0xff]
  %v2899 = vld [vmem:[%s5 + $0x190] sm:$0xff]
  %v2900 = vld [vmem:[%s5 + $0x198] sm:$0xff]
  %v2901 = vld [vmem:[%s5 + $0x1a0] sm:$0xf]
  %v2902 = vld [vmem:[%s5 + $0x1a4] sm:$0xff]
  %v2903 = vld [vmem:[%s5 + $0x1ac] sm:$0xff]
  %v2904 = vld [vmem:[%s5 + $0x1b4] sm:$0xff]
  %v2905 = vld [vmem:[%s5 + $0x1bc] sm:$0xf]
  %v2906 = vld [vmem:[%s5 + $0x1c0] sm:$0xff]
  %v2907 = vld [vmem:[%s5 + $0x1c8] sm:$0xff]
  %v2908 = vld [vmem:[%s5 + $0x1d0] sm:$0xff]
  %v2909 = vld [vmem:[%s5 + $0x1d8] sm:$0xf]
  %v2910 = vld [vmem:[%s5 + $0x1dc] sm:$0xff]
  %v2911 = vld [vmem:[%s5 + $0x1e4] sm:$0xff]
  %v2912 = vld [vmem:[%s5 + $0x1ec] sm:$0xff]
  %v2913 = vld [vmem:[%s5 + $0x1f4] sm:$0xf]
  %v2914 = vld [vmem:[%s5 + $0x1f8] sm:$0xff]
  %v2915 = vld [vmem:[%s5 + $0x200] sm:$0xff]
  %v2916 = vld [vmem:[%s5 + $0x208] sm:$0xff]
  %v2917 = vld [vmem:[%s5 + $0x210] sm:$0xf]
  %v2918 = vld [vmem:[%s5 + $0x214] sm:$0xff]
  %v2919 = vld [vmem:[%s5 + $0x21c] sm:$0xff]
  %v2920 = vld [vmem:[%s5 + $0x224] sm:$0xff]
  %v2921 = vld [vmem:[%s5 + $0x22c] sm:$0xf]
  %v2922 = vld [vmem:[%s5 + $0x230] sm:$0xff]
  %v2923 = vld [vmem:[%s5 + $0x238] sm:$0xff]
  %v2924 = vld [vmem:[%s5 + $0x240] sm:$0xff]
  %v2925 = vld [vmem:[%s5 + $0x248] sm:$0xf]
  %v2926 = vld [vmem:[%s5 + $0x24c] sm:$0xff]
  %v2927 = vld [vmem:[%s5 + $0x254] sm:$0xff]
  %v2928 = vld [vmem:[%s5 + $0x25c] sm:$0xff]
  %v2929 = vld [vmem:[%s5 + $0x264] sm:$0xf]
  %v2930 = vld [vmem:[%s5 + $0x268] sm:$0xff]
  %v2931 = vld [vmem:[%s5 + $0x270] sm:$0xff]
  %v2932 = vld [vmem:[%s5 + $0x278] sm:$0xff]
  %v2933 = vld [vmem:[%s5 + $0x280] sm:$0xf]
  %v2934 = vld [vmem:[%s5 + $0x284] sm:$0xff]
  %v2935 = vld [vmem:[%s5 + $0x28c] sm:$0xff]
  %v2936 = vld [vmem:[%s5 + $0x294] sm:$0xff]
  %v2937 = vld [vmem:[%s5 + $0x29c] sm:$0xf]
  %v2938 = vld [vmem:[%s5 + $0x2a0] sm:$0xff]
  %v2939 = vld [vmem:[%s5 + $0x2a8] sm:$0xff]
  %v2940 = vld [vmem:[%s5 + $0x2b0] sm:$0xff]
  %v2941 = vld [vmem:[%s5 + $0x2b8] sm:$0xf]
  %v2942 = vld [vmem:[%s5 + $0x2bc] sm:$0xff]
  %v2943 = vld [vmem:[%s5 + $0x2c4] sm:$0xff]
  %v2944 = vld [vmem:[%s5 + $0x2cc] sm:$0xff]
  %v2945 = vld [vmem:[%s5 + $0x2d4] sm:$0xf]
  %v2946 = vld [vmem:[%s5 + $0x2d8] sm:$0xff]
  %v2947 = vld [vmem:[%s5 + $0x2e0] sm:$0xff]
  %v2948 = vld [vmem:[%s5 + $0x2e8] sm:$0xff]
  %v2949 = vld [vmem:[%s5 + $0x2f0] sm:$0xf]
  %v2950 = vld [vmem:[%s5 + $0x2f4] sm:$0xff]
  %v2951 = vld [vmem:[%s5 + $0x2fc] sm:$0xff]
  %v2952 = vld [vmem:[%s5 + $0x304] sm:$0xff]
  %v2953 = vld [vmem:[%s5 + $0x30c] sm:$0xf]
  %v2954 = vld [vmem:[%s5 + $0x310] sm:$0xff]
  %v2955 = vld [vmem:[%s5 + $0x318] sm:$0xff]
  %v2956 = vld [vmem:[%s5 + $0x320] sm:$0xff]
  %v2957 = vld [vmem:[%s5 + $0x328] sm:$0xf]
  %v2958 = vld [vmem:[%s5 + $0x32c] sm:$0xff]
  %v2959 = vld [vmem:[%s5 + $0x334] sm:$0xff]
  %v2960 = vld [vmem:[%s5 + $0x33c] sm:$0xff]
  %v2961 = vld [vmem:[%s5 + $0x344] sm:$0xf]
  %v2962 = vld [vmem:[%s5 + $0x348] sm:$0xff]
  %v2963 = vld [vmem:[%s5 + $0x350] sm:$0xff]
  %v2964 = vld [vmem:[%s5 + $0x358] sm:$0xff]
  %v2965 = vld [vmem:[%s5 + $0x360] sm:$0xf]
  %v2966 = vld [vmem:[%s5 + $0x364] sm:$0xff]
  %v2967 = vld [vmem:[%s5 + $0x36c] sm:$0xff]
  %v2968 = vld [vmem:[%s5 + $0x374] sm:$0xff]
  %v2969 = vld [vmem:[%s5 + $0x37c] sm:$0xf]
  %v2970 = vld [vmem:[%s5 + $0x380] sm:$0xff]
  %v2971 = vld [vmem:[%s5 + $0x388] sm:$0xff]
  %v2972 = vld [vmem:[%s5 + $0x390] sm:$0xff]
  %v2973 = vld [vmem:[%s5 + $0x398] sm:$0xf]
  %v2974 = vld [vmem:[%s5 + $0x39c] sm:$0xff]
  %v2975 = vld [vmem:[%s5 + $0x3a4] sm:$0xff]
  %v2976 = vld [vmem:[%s5 + $0x3ac] sm:$0xff]
  %v2977 = vld [vmem:[%s5 + $0x3b4] sm:$0xf]
  %v2978 = vld [vmem:[%s5 + $0x3b8] sm:$0xff]
  %v2979 = vld [vmem:[%s5 + $0x3c0] sm:$0xff]
  %v2980 = vld [vmem:[%s5 + $0x3c8] sm:$0xff]
  %v2981 = vld [vmem:[%s5 + $0x3d0] sm:$0xf]
  %v2982 = vld [vmem:[%s5 + $0x3d4] sm:$0xff]
  %v2983 = vld [vmem:[%s5 + $0x3dc] sm:$0xff]
  %v2984 = vld [vmem:[%s5 + $0x3e4] sm:$0xff]
  %v2985 = vld [vmem:[%s5 + $0x3ec] sm:$0xf]
  %v2986 = vld [vmem:[%s5 + $0x3f0] sm:$0xff]
  %v2987 = vld [vmem:[%s5 + $0x3f8] sm:$0xff]
  %v2988 = vld [vmem:[%s5 + $0x400] sm:$0xff]
  %v2989 = vld [vmem:[%s5 + $0x408] sm:$0xf]
  %v2990 = vld [vmem:[%s5 + $0x40c] sm:$0xff]
  %v2991 = vld [vmem:[%s5 + $0x414] sm:$0xff]
  %v2992 = vld [vmem:[%s5 + $0x41c] sm:$0xff]
  %v2993 = vld [vmem:[%s5 + $0x424] sm:$0xf]
  %v2994 = vld [vmem:[%s5 + $0x428] sm:$0xff]
  %v2995 = vld [vmem:[%s5 + $0x430] sm:$0xff]
  %v2996 = vld [vmem:[%s5 + $0x438] sm:$0xff]
  %v2997 = vld [vmem:[%s5 + $0x440] sm:$0xf]
  %v2998 = vld [vmem:[%s5 + $0x444] sm:$0xff]
  %v2999 = vld [vmem:[%s5 + $0x44c] sm:$0xff]
  %v3000 = vld [vmem:[%s5 + $0x454] sm:$0xff]
  %v3001 = vld [vmem:[%s5 + $0x45c] sm:$0xf]
  %v3002 = vld [vmem:[%s5 + $0x460] sm:$0xff]
  %v3003 = vld [vmem:[%s5 + $0x468] sm:$0xff]
  %v3004 = vld [vmem:[%s5 + $0x470] sm:$0xff]
  %v3005 = vld [vmem:[%s5 + $0x478] sm:$0xf]
  %v3006 = vld [vmem:[%s5 + $0x47c] sm:$0xff]
  %v3007 = vld [vmem:[%s5 + $0x484] sm:$0xff]
  %v3008 = vld [vmem:[%s5 + $0x48c] sm:$0xff]
  %v3009 = vld [vmem:[%s5 + $0x494] sm:$0xf]
  %v3010 = vld [vmem:[%s5 + $0x498] sm:$0xff]
  %v3011 = vld [vmem:[%s5 + $0x4a0] sm:$0xff]
  %v3012 = vld [vmem:[%s5 + $0x4a8] sm:$0xff]
  %v3013 = vld [vmem:[%s5 + $0x4b0] sm:$0xf]
  %v3014 = vld [vmem:[%s5 + $0x4b4] sm:$0xff]
  %v3015 = vld [vmem:[%s5 + $0x4bc] sm:$0xff]
  %v3016 = vld [vmem:[%s5 + $0x4c4] sm:$0xff]
  %v3017 = vld [vmem:[%s5 + $0x4cc] sm:$0xf]
  %v3018 = vld [vmem:[%s5 + $0x4d0] sm:$0xff]
  %v3019 = vld [vmem:[%s5 + $0x4d8] sm:$0xff]
  %v3020 = vld [vmem:[%s5 + $0x4e0] sm:$0xff]
  %v3021 = vld [vmem:[%s5 + $0x4e8] sm:$0xf]
  %v3022 = vld [vmem:[%s5 + $0x4ec] sm:$0xff]
  %v3023 = vld [vmem:[%s5 + $0x4f4] sm:$0xff]
  %v3024 = vld [vmem:[%s5 + $0x4fc] sm:$0xff]
  %v3025 = vld [vmem:[%s5 + $0x504] sm:$0xf]
  %v3026 = vld [vmem:[%s5 + $0x508] sm:$0xff]
  %v3027 = vld [vmem:[%s5 + $0x510] sm:$0xff]
  %v3028 = vld [vmem:[%s5 + $0x518] sm:$0xff]
  %v3029 = vld [vmem:[%s5 + $0x520] sm:$0xf]
  %v3030 = vld [vmem:[%s5 + $0x524] sm:$0xff]
  %v3031 = vld [vmem:[%s5 + $0x52c] sm:$0xff]
  %v3032 = vld [vmem:[%s5 + $0x534] sm:$0xff]
  %v3033 = vld [vmem:[%s5 + $0x53c] sm:$0xf]
  %v3034 = vld [vmem:[%s5 + $0x540] sm:$0xff]
  %v3035 = vld [vmem:[%s5 + $0x548] sm:$0xff]
  %v3036 = vld [vmem:[%s5 + $0x550] sm:$0xff]
  %v3037 = vld [vmem:[%s5 + $0x558] sm:$0xf]
  %v3038 = vld [vmem:[%s5 + $0x55c] sm:$0xff]
  %v3039 = vld [vmem:[%s5 + $0x564] sm:$0xff]
  %v3040 = vld [vmem:[%s5 + $0x56c] sm:$0xff]
  %v3041 = vld [vmem:[%s5 + $0x574] sm:$0xf]
  %v3042 = vld [vmem:[%s5 + $0x578] sm:$0xff]
  %v3043 = vld [vmem:[%s5 + $0x580] sm:$0xff]
  %v3044 = vld [vmem:[%s5 + $0x588] sm:$0xff]
  %v3045 = vld [vmem:[%s5 + $0x590] sm:$0xf]
  %v3046 = vld [vmem:[%s5 + $0x594] sm:$0xff]
  %v3047 = vld [vmem:[%s5 + $0x59c] sm:$0xff]
  %v3048 = vld [vmem:[%s5 + $0x5a4] sm:$0xff]
  %v3049 = vld [vmem:[%s5 + $0x5ac] sm:$0xf]
  %v3050 = vld [vmem:[%s5 + $0x5b0] sm:$0xff]
  %v3051 = vld [vmem:[%s5 + $0x5b8] sm:$0xff]
  %v3052 = vld [vmem:[%s5 + $0x5c0] sm:$0xff]
  %v3053 = vld [vmem:[%s5 + $0x5c8] sm:$0xf]
  %v3054 = vld [vmem:[%s5 + $0x5cc] sm:$0xff]
  %v3055 = vld [vmem:[%s5 + $0x5d4] sm:$0xff]
  %v3056 = vld [vmem:[%s5 + $0x5dc] sm:$0xff]
  %v3057 = vld [vmem:[%s5 + $0x5e4] sm:$0xf]
  %v3058 = vld [vmem:[%s5 + $0x5e8] sm:$0xff]
  %v3059 = vld [vmem:[%s5 + $0x5f0] sm:$0xff]
  %v3060 = vld [vmem:[%s5 + $0x5f8] sm:$0xff]
  %v3061 = vld [vmem:[%s5 + $0x600] sm:$0xf]
  %v3062 = vld [vmem:[%s5 + $0x604] sm:$0xff]
  %v3063 = vld [vmem:[%s5 + $0x60c] sm:$0xff]
  %v3064 = vld [vmem:[%s5 + $0x614] sm:$0xff]
  %v3065 = vld [vmem:[%s5 + $0x61c] sm:$0xf]
  %v3066 = vld [vmem:[%s5 + $0x620] sm:$0xff]
  %v3067 = vld [vmem:[%s5 + $0x628] sm:$0xff]
  %v3068 = vld [vmem:[%s5 + $0x630] sm:$0xff]
  %v3069 = vld [vmem:[%s5 + $0x638] sm:$0xf]
  %v3070 = vld [vmem:[%s5 + $0x63c] sm:$0xff]
  %v3071 = vld [vmem:[%s5 + $0x644] sm:$0xff]
  %v3072 = vld [vmem:[%s5 + $0x64c] sm:$0xff]
  %v3073 = vld [vmem:[%s5 + $0x654] sm:$0xf]
  %v3074 = vld [vmem:[%s5 + $0x658] sm:$0xff]
  %v3075 = vld [vmem:[%s5 + $0x660] sm:$0xff]
  %v3076 = vld [vmem:[%s5 + $0x668] sm:$0xff]
  %v3077 = vld [vmem:[%s5 + $0x670] sm:$0xf]
  %v3078 = vld [vmem:[%s5 + $0x674] sm:$0xff]
  %v3079 = vld [vmem:[%s5 + $0x67c] sm:$0xff]
  %v3080 = vld [vmem:[%s5 + $0x684] sm:$0xff]
  %v3081 = vld [vmem:[%s5 + $0x68c] sm:$0xf]
  %v3082 = vld [vmem:[%s5 + $0x690] sm:$0xff]
  %v3083 = vld [vmem:[%s5 + $0x698] sm:$0xff]
  %v3084 = vld [vmem:[%s5 + $0x6a0] sm:$0xff]
  %v3085 = vld [vmem:[%s5 + $0x6a8] sm:$0xf]
  %v3086 = vld [vmem:[%s5 + $0x6ac] sm:$0xff]
  %v3087 = vld [vmem:[%s5 + $0x6b4] sm:$0xff]
  %v3088 = vld [vmem:[%s5 + $0x6bc] sm:$0xff]
  %v3089 = vld [vmem:[%s5 + $0x6c4] sm:$0xf]
  %v3090 = vld [vmem:[%s5 + $0x6c8] sm:$0xff]
  %v3091 = vld [vmem:[%s5 + $0x6d0] sm:$0xff]
  %v3092 = vld [vmem:[%s5 + $0x6d8] sm:$0xff]
  %v3093 = vld [vmem:[%s5 + $0x6e0] sm:$0xf]
  %v3094 = vld [vmem:[%s5 + $0x6e4] sm:$0xff]
  %v3095 = vld [vmem:[%s5 + $0x6ec] sm:$0xff]
  %v3096 = vld [vmem:[%s5 + $0x6f4] sm:$0xff]
  %v3097 = vld [vmem:[%s5 + $0x6fc] sm:$0xf]
  %v3098 = vld [vmem:[%s6] sm:$0xff]
  %v3100 = vperm.slane %v3098, 0
  %v3101 = vperm.slane %v3098, 1
  %v3102 = vperm.slane %v3098, 2
  %v3103 = vperm.slane %v3098, 3
  %v3104 = vperm.slane %v3098, 4
  %v3105 = vperm.slane %v3098, 5
  %v3106 = vperm.slane %v3098, 6
  %v3370 = vunpack.c.l.b16 %v2842
  %v3371 = vunpack.c.h.b16 %v2842
  %v3372 = vunpack.c.l.b16 %v2843
  %v3373 = vunpack.c.h.b16 %v2843
  %v3374 = vunpack.c.l.b16 %v2844
  %v3375 = vunpack.c.h.b16 %v2844
  %v3376 = vunpack.c.l.b16 %v2845
  %v3377 = vunpack.c.l.b16 %v2846
  %v3378 = vunpack.c.h.b16 %v2846
  %v3379 = vunpack.c.l.b16 %v2847
  %v3380 = vunpack.c.h.b16 %v2847
  %v3381 = vunpack.c.l.b16 %v2848
  %v3382 = vunpack.c.h.b16 %v2848
  %v3383 = vunpack.c.l.b16 %v2849
  %v3384 = vunpack.c.l.b16 %v2850
  %v3385 = vunpack.c.h.b16 %v2850
  %v3386 = vunpack.c.l.b16 %v2851
  %v3387 = vunpack.c.h.b16 %v2851
  %v3388 = vunpack.c.l.b16 %v2852
  %v3389 = vunpack.c.h.b16 %v2852
  %v3390 = vunpack.c.l.b16 %v2853
  %v3391 = vunpack.c.l.b16 %v2854
  %v3392 = vunpack.c.h.b16 %v2854
  %v3393 = vunpack.c.l.b16 %v2855
  %v3394 = vunpack.c.h.b16 %v2855
  %v3395 = vunpack.c.l.b16 %v2856
  %v3396 = vunpack.c.h.b16 %v2856
  %v3397 = vunpack.c.l.b16 %v2857
  %v3398 = vunpack.c.l.b16 %v2858
  %v3399 = vunpack.c.h.b16 %v2858
  %v3400 = vunpack.c.l.b16 %v2859
  %v3401 = vunpack.c.h.b16 %v2859
  %v3402 = vunpack.c.l.b16 %v2860
  %v3403 = vunpack.c.h.b16 %v2860
  %v3404 = vunpack.c.l.b16 %v2861
  %v3405 = vunpack.c.l.b16 %v2862
  %v3406 = vunpack.c.h.b16 %v2862
  %v3407 = vunpack.c.l.b16 %v2863
  %v3408 = vunpack.c.h.b16 %v2863
  %v3409 = vunpack.c.l.b16 %v2864
  %v3410 = vunpack.c.h.b16 %v2864
  %v3411 = vunpack.c.l.b16 %v2865
  %v3412 = vunpack.c.l.b16 %v2866
  %v3413 = vunpack.c.h.b16 %v2866
  %v3414 = vunpack.c.l.b16 %v2867
  %v3415 = vunpack.c.h.b16 %v2867
  %v3416 = vunpack.c.l.b16 %v2868
  %v3417 = vunpack.c.h.b16 %v2868
  %v3418 = vunpack.c.l.b16 %v2869
  %v3419 = vunpack.c.l.b16 %v2870
  %v3420 = vunpack.c.h.b16 %v2870
  %v3421 = vunpack.c.l.b16 %v2871
  %v3422 = vunpack.c.h.b16 %v2871
  %v3423 = vunpack.c.l.b16 %v2872
  %v3424 = vunpack.c.h.b16 %v2872
  %v3425 = vunpack.c.l.b16 %v2873
  %v3426 = vunpack.c.l.b16 %v2874
  %v3427 = vunpack.c.h.b16 %v2874
  %v3428 = vunpack.c.l.b16 %v2875
  %v3429 = vunpack.c.h.b16 %v2875
  %v3430 = vunpack.c.l.b16 %v2876
  %v3431 = vunpack.c.h.b16 %v2876
  %v3432 = vunpack.c.l.b16 %v2877
  %v3433 = vunpack.c.l.b16 %v2878
  %v3434 = vunpack.c.h.b16 %v2878
  %v3435 = vunpack.c.l.b16 %v2879
  %v3436 = vunpack.c.h.b16 %v2879
  %v3437 = vunpack.c.l.b16 %v2880
  %v3438 = vunpack.c.h.b16 %v2880
  %v3439 = vunpack.c.l.b16 %v2881
  %v3440 = vunpack.c.l.b16 %v2882
  %v3441 = vunpack.c.h.b16 %v2882
  %v3442 = vunpack.c.l.b16 %v2883
  %v3443 = vunpack.c.h.b16 %v2883
  %v3444 = vunpack.c.l.b16 %v2884
  %v3445 = vunpack.c.h.b16 %v2884
  %v3446 = vunpack.c.l.b16 %v2885
  %v3447 = vunpack.c.l.b16 %v2886
  %v3448 = vunpack.c.h.b16 %v2886
  %v3449 = vunpack.c.l.b16 %v2887
  %v3450 = vunpack.c.h.b16 %v2887
  %v3451 = vunpack.c.l.b16 %v2888
  %v3452 = vunpack.c.h.b16 %v2888
  %v3453 = vunpack.c.l.b16 %v2889
  %v3454 = vunpack.c.l.b16 %v2890
  %v3455 = vunpack.c.h.b16 %v2890
  %v3456 = vunpack.c.l.b16 %v2891
  %v3457 = vunpack.c.h.b16 %v2891
  %v3458 = vunpack.c.l.b16 %v2892
  %v3459 = vunpack.c.h.b16 %v2892
  %v3460 = vunpack.c.l.b16 %v2893
  %v3461 = vunpack.c.l.b16 %v2894
  %v3462 = vunpack.c.h.b16 %v2894
  %v3463 = vunpack.c.l.b16 %v2895
  %v3464 = vunpack.c.h.b16 %v2895
  %v3465 = vunpack.c.l.b16 %v2896
  %v3466 = vunpack.c.h.b16 %v2896
  %v3467 = vunpack.c.l.b16 %v2897
  %v3468 = vunpack.c.l.b16 %v2898
  %v3469 = vunpack.c.h.b16 %v2898
  %v3470 = vunpack.c.l.b16 %v2899
  %v3471 = vunpack.c.h.b16 %v2899
  %v3472 = vunpack.c.l.b16 %v2900
  %v3473 = vunpack.c.h.b16 %v2900
  %v3474 = vunpack.c.l.b16 %v2901
  %v3475 = vunpack.c.l.b16 %v2902
  %v3476 = vunpack.c.h.b16 %v2902
  %v3477 = vunpack.c.l.b16 %v2903
  %v3478 = vunpack.c.h.b16 %v2903
  %v3479 = vunpack.c.l.b16 %v2904
  %v3480 = vunpack.c.h.b16 %v2904
  %v3481 = vunpack.c.l.b16 %v2905
  %v3482 = vunpack.c.l.b16 %v2906
  %v3483 = vunpack.c.h.b16 %v2906
  %v3484 = vunpack.c.l.b16 %v2907
  %v3485 = vunpack.c.h.b16 %v2907
  %v3486 = vunpack.c.l.b16 %v2908
  %v3487 = vunpack.c.h.b16 %v2908
  %v3488 = vunpack.c.l.b16 %v2909
  %v3489 = vunpack.c.l.b16 %v2910
  %v3490 = vunpack.c.h.b16 %v2910
  %v3491 = vunpack.c.l.b16 %v2911
  %v3492 = vunpack.c.h.b16 %v2911
  %v3493 = vunpack.c.l.b16 %v2912
  %v3494 = vunpack.c.h.b16 %v2912
  %v3495 = vunpack.c.l.b16 %v2913
  %v3496 = vunpack.c.l.b16 %v2914
  %v3497 = vunpack.c.h.b16 %v2914
  %v3498 = vunpack.c.l.b16 %v2915
  %v3499 = vunpack.c.h.b16 %v2915
  %v3500 = vunpack.c.l.b16 %v2916
  %v3501 = vunpack.c.h.b16 %v2916
  %v3502 = vunpack.c.l.b16 %v2917
  %v3503 = vunpack.c.l.b16 %v2918
  %v3504 = vunpack.c.h.b16 %v2918
  %v3505 = vunpack.c.l.b16 %v2919
  %v3506 = vunpack.c.h.b16 %v2919
  %v3507 = vunpack.c.l.b16 %v2920
  %v3508 = vunpack.c.h.b16 %v2920
  %v3509 = vunpack.c.l.b16 %v2921
  %v3510 = vunpack.c.l.b16 %v2922
  %v3511 = vunpack.c.h.b16 %v2922
  %v3512 = vunpack.c.l.b16 %v2923
  %v3513 = vunpack.c.h.b16 %v2923
  %v3514 = vunpack.c.l.b16 %v2924
  %v3515 = vunpack.c.h.b16 %v2924
  %v3516 = vunpack.c.l.b16 %v2925
  %v3517 = vunpack.c.l.b16 %v2926
  %v3518 = vunpack.c.h.b16 %v2926
  %v3519 = vunpack.c.l.b16 %v2927
  %v3520 = vunpack.c.h.b16 %v2927
  %v3521 = vunpack.c.l.b16 %v2928
  %v3522 = vunpack.c.h.b16 %v2928
  %v3523 = vunpack.c.l.b16 %v2929
  %v3524 = vunpack.c.l.b16 %v2930
  %v3525 = vunpack.c.h.b16 %v2930
  %v3526 = vunpack.c.l.b16 %v2931
  %v3527 = vunpack.c.h.b16 %v2931
  %v3528 = vunpack.c.l.b16 %v2932
  %v3529 = vunpack.c.h.b16 %v2932
  %v3530 = vunpack.c.l.b16 %v2933
  %v3531 = vunpack.c.l.b16 %v2934
  %v3532 = vunpack.c.h.b16 %v2934
  %v3533 = vunpack.c.l.b16 %v2935
  %v3534 = vunpack.c.h.b16 %v2935
  %v3535 = vunpack.c.l.b16 %v2936
  %v3536 = vunpack.c.h.b16 %v2936
  %v3537 = vunpack.c.l.b16 %v2937
  %v3538 = vunpack.c.l.b16 %v2938
  %v3539 = vunpack.c.h.b16 %v2938
  %v3540 = vunpack.c.l.b16 %v2939
  %v3541 = vunpack.c.h.b16 %v2939
  %v3542 = vunpack.c.l.b16 %v2940
  %v3543 = vunpack.c.h.b16 %v2940
  %v3544 = vunpack.c.l.b16 %v2941
  %v3545 = vunpack.c.l.b16 %v2942
  %v3546 = vunpack.c.h.b16 %v2942
  %v3547 = vunpack.c.l.b16 %v2943
  %v3548 = vunpack.c.h.b16 %v2943
  %v3549 = vunpack.c.l.b16 %v2944
  %v3550 = vunpack.c.h.b16 %v2944
  %v3551 = vunpack.c.l.b16 %v2945
  %v3552 = vunpack.c.l.b16 %v2946
  %v3553 = vunpack.c.h.b16 %v2946
  %v3554 = vunpack.c.l.b16 %v2947
  %v3555 = vunpack.c.h.b16 %v2947
  %v3556 = vunpack.c.l.b16 %v2948
  %v3557 = vunpack.c.h.b16 %v2948
  %v3558 = vunpack.c.l.b16 %v2949
  %v3559 = vunpack.c.l.b16 %v2950
  %v3560 = vunpack.c.h.b16 %v2950
  %v3561 = vunpack.c.l.b16 %v2951
  %v3562 = vunpack.c.h.b16 %v2951
  %v3563 = vunpack.c.l.b16 %v2952
  %v3564 = vunpack.c.h.b16 %v2952
  %v3565 = vunpack.c.l.b16 %v2953
  %v3566 = vunpack.c.l.b16 %v2954
  %v3567 = vunpack.c.h.b16 %v2954
  %v3568 = vunpack.c.l.b16 %v2955
  %v3569 = vunpack.c.h.b16 %v2955
  %v3570 = vunpack.c.l.b16 %v2956
  %v3571 = vunpack.c.h.b16 %v2956
  %v3572 = vunpack.c.l.b16 %v2957
  %v3573 = vunpack.c.l.b16 %v2958
  %v3574 = vunpack.c.h.b16 %v2958
  %v3575 = vunpack.c.l.b16 %v2959
  %v3576 = vunpack.c.h.b16 %v2959
  %v3577 = vunpack.c.l.b16 %v2960
  %v3578 = vunpack.c.h.b16 %v2960
  %v3579 = vunpack.c.l.b16 %v2961
  %v3580 = vunpack.c.l.b16 %v2962
  %v3581 = vunpack.c.h.b16 %v2962
  %v3582 = vunpack.c.l.b16 %v2963
  %v3583 = vunpack.c.h.b16 %v2963
  %v3584 = vunpack.c.l.b16 %v2964
  %v3585 = vunpack.c.h.b16 %v2964
  %v3586 = vunpack.c.l.b16 %v2965
  %v3587 = vunpack.c.l.b16 %v2966
  %v3588 = vunpack.c.h.b16 %v2966
  %v3589 = vunpack.c.l.b16 %v2967
  %v3590 = vunpack.c.h.b16 %v2967
  %v3591 = vunpack.c.l.b16 %v2968
  %v3592 = vunpack.c.h.b16 %v2968
  %v3593 = vunpack.c.l.b16 %v2969
  %v3594 = vunpack.c.l.b16 %v2970
  %v3595 = vunpack.c.h.b16 %v2970
  %v3596 = vunpack.c.l.b16 %v2971
  %v3597 = vunpack.c.h.b16 %v2971
  %v3598 = vunpack.c.l.b16 %v2972
  %v3599 = vunpack.c.h.b16 %v2972
  %v3600 = vunpack.c.l.b16 %v2973
  %v3601 = vunpack.c.l.b16 %v2974
  %v3602 = vunpack.c.h.b16 %v2974
  %v3603 = vunpack.c.l.b16 %v2975
  %v3604 = vunpack.c.h.b16 %v2975
  %v3605 = vunpack.c.l.b16 %v2976
  %v3606 = vunpack.c.h.b16 %v2976
  %v3607 = vunpack.c.l.b16 %v2977
  %v3608 = vunpack.c.l.b16 %v2978
  %v3609 = vunpack.c.h.b16 %v2978
  %v3610 = vunpack.c.l.b16 %v2979
  %v3611 = vunpack.c.h.b16 %v2979
  %v3612 = vunpack.c.l.b16 %v2980
  %v3613 = vunpack.c.h.b16 %v2980
  %v3614 = vunpack.c.l.b16 %v2981
  %v3615 = vunpack.c.l.b16 %v2982
  %v3616 = vunpack.c.h.b16 %v2982
  %v3617 = vunpack.c.l.b16 %v2983
  %v3618 = vunpack.c.h.b16 %v2983
  %v3619 = vunpack.c.l.b16 %v2984
  %v3620 = vunpack.c.h.b16 %v2984
  %v3621 = vunpack.c.l.b16 %v2985
  %v3622 = vunpack.c.l.b16 %v2986
  %v3623 = vunpack.c.h.b16 %v2986
  %v3624 = vunpack.c.l.b16 %v2987
  %v3625 = vunpack.c.h.b16 %v2987
  %v3626 = vunpack.c.l.b16 %v2988
  %v3627 = vunpack.c.h.b16 %v2988
  %v3628 = vunpack.c.l.b16 %v2989
  %v3629 = vunpack.c.l.b16 %v2990
  %v3630 = vunpack.c.h.b16 %v2990
  %v3631 = vunpack.c.l.b16 %v2991
  %v3632 = vunpack.c.h.b16 %v2991
  %v3633 = vunpack.c.l.b16 %v2992
  %v3634 = vunpack.c.h.b16 %v2992
  %v3635 = vunpack.c.l.b16 %v2993
  %v3636 = vunpack.c.l.b16 %v2994
  %v3637 = vunpack.c.h.b16 %v2994
  %v3638 = vunpack.c.l.b16 %v2995
  %v3639 = vunpack.c.h.b16 %v2995
  %v3640 = vunpack.c.l.b16 %v2996
  %v3641 = vunpack.c.h.b16 %v2996
  %v3642 = vunpack.c.l.b16 %v2997
  %v3643 = vunpack.c.l.b16 %v2998
  %v3644 = vunpack.c.h.b16 %v2998
  %v3645 = vunpack.c.l.b16 %v2999
  %v3646 = vunpack.c.h.b16 %v2999
  %v3647 = vunpack.c.l.b16 %v3000
  %v3648 = vunpack.c.h.b16 %v3000
  %v3649 = vunpack.c.l.b16 %v3001
  %v3650 = vunpack.c.l.b16 %v3002
  %v3651 = vunpack.c.h.b16 %v3002
  %v3652 = vunpack.c.l.b16 %v3003
  %v3653 = vunpack.c.h.b16 %v3003
  %v3654 = vunpack.c.l.b16 %v3004
  %v3655 = vunpack.c.h.b16 %v3004
  %v3656 = vunpack.c.l.b16 %v3005
  %v3657 = vunpack.c.l.b16 %v3006
  %v3658 = vunpack.c.h.b16 %v3006
  %v3659 = vunpack.c.l.b16 %v3007
  %v3660 = vunpack.c.h.b16 %v3007
  %v3661 = vunpack.c.l.b16 %v3008
  %v3662 = vunpack.c.h.b16 %v3008
  %v3663 = vunpack.c.l.b16 %v3009
  %v3664 = vunpack.c.l.b16 %v3010
  %v3665 = vunpack.c.h.b16 %v3010
  %v3666 = vunpack.c.l.b16 %v3011
  %v3667 = vunpack.c.h.b16 %v3011
  %v3668 = vunpack.c.l.b16 %v3012
  %v3669 = vunpack.c.h.b16 %v3012
  %v3670 = vunpack.c.l.b16 %v3013
  %v3671 = vunpack.c.l.b16 %v3014
  %v3672 = vunpack.c.h.b16 %v3014
  %v3673 = vunpack.c.l.b16 %v3015
  %v3674 = vunpack.c.h.b16 %v3015
  %v3675 = vunpack.c.l.b16 %v3016
  %v3676 = vunpack.c.h.b16 %v3016
  %v3677 = vunpack.c.l.b16 %v3017
  %v3678 = vunpack.c.l.b16 %v3018
  %v3679 = vunpack.c.h.b16 %v3018
  %v3680 = vunpack.c.l.b16 %v3019
  %v3681 = vunpack.c.h.b16 %v3019
  %v3682 = vunpack.c.l.b16 %v3020
  %v3683 = vunpack.c.h.b16 %v3020
  %v3684 = vunpack.c.l.b16 %v3021
  %v3685 = vunpack.c.l.b16 %v3022
  %v3686 = vunpack.c.h.b16 %v3022
  %v3687 = vunpack.c.l.b16 %v3023
  %v3688 = vunpack.c.h.b16 %v3023
  %v3689 = vunpack.c.l.b16 %v3024
  %v3690 = vunpack.c.h.b16 %v3024
  %v3691 = vunpack.c.l.b16 %v3025
  %v3692 = vunpack.c.l.b16 %v3026
  %v3693 = vunpack.c.h.b16 %v3026
  %v3694 = vunpack.c.l.b16 %v3027
  %v3695 = vunpack.c.h.b16 %v3027
  %v3696 = vunpack.c.l.b16 %v3028
  %v3697 = vunpack.c.h.b16 %v3028
  %v3698 = vunpack.c.l.b16 %v3029
  %v3699 = vunpack.c.l.b16 %v3030
  %v3700 = vunpack.c.h.b16 %v3030
  %v3701 = vunpack.c.l.b16 %v3031
  %v3702 = vunpack.c.h.b16 %v3031
  %v3703 = vunpack.c.l.b16 %v3032
  %v3704 = vunpack.c.h.b16 %v3032
  %v3705 = vunpack.c.l.b16 %v3033
  %v3706 = vunpack.c.l.b16 %v3034
  %v3707 = vunpack.c.h.b16 %v3034
  %v3708 = vunpack.c.l.b16 %v3035
  %v3709 = vunpack.c.h.b16 %v3035
  %v3710 = vunpack.c.l.b16 %v3036
  %v3711 = vunpack.c.h.b16 %v3036
  %v3712 = vunpack.c.l.b16 %v3037
  %v3713 = vunpack.c.l.b16 %v3038
  %v3714 = vunpack.c.h.b16 %v3038
  %v3715 = vunpack.c.l.b16 %v3039
  %v3716 = vunpack.c.h.b16 %v3039
  %v3717 = vunpack.c.l.b16 %v3040
  %v3718 = vunpack.c.h.b16 %v3040
  %v3719 = vunpack.c.l.b16 %v3041
  %v3720 = vunpack.c.l.b16 %v3042
  %v3721 = vunpack.c.h.b16 %v3042
  %v3722 = vunpack.c.l.b16 %v3043
  %v3723 = vunpack.c.h.b16 %v3043
  %v3724 = vunpack.c.l.b16 %v3044
  %v3725 = vunpack.c.h.b16 %v3044
  %v3726 = vunpack.c.l.b16 %v3045
  %v3727 = vunpack.c.l.b16 %v3046
  %v3728 = vunpack.c.h.b16 %v3046
  %v3729 = vunpack.c.l.b16 %v3047
  %v3730 = vunpack.c.h.b16 %v3047
  %v3731 = vunpack.c.l.b16 %v3048
  %v3732 = vunpack.c.h.b16 %v3048
  %v3733 = vunpack.c.l.b16 %v3049
  %v3734 = vunpack.c.l.b16 %v3050
  %v3735 = vunpack.c.h.b16 %v3050
  %v3736 = vunpack.c.l.b16 %v3051
  %v3737 = vunpack.c.h.b16 %v3051
  %v3738 = vunpack.c.l.b16 %v3052
  %v3739 = vunpack.c.h.b16 %v3052
  %v3740 = vunpack.c.l.b16 %v3053
  %v3741 = vunpack.c.l.b16 %v3054
  %v3742 = vunpack.c.h.b16 %v3054
  %v3743 = vunpack.c.l.b16 %v3055
  %v3744 = vunpack.c.h.b16 %v3055
  %v3745 = vunpack.c.l.b16 %v3056
  %v3746 = vunpack.c.h.b16 %v3056
  %v3747 = vunpack.c.l.b16 %v3057
  %v3748 = vunpack.c.l.b16 %v3058
  %v3749 = vunpack.c.h.b16 %v3058
  %v3750 = vunpack.c.l.b16 %v3059
  %v3751 = vunpack.c.h.b16 %v3059
  %v3752 = vunpack.c.l.b16 %v3060
  %v3753 = vunpack.c.h.b16 %v3060
  %v3754 = vunpack.c.l.b16 %v3061
  %v3755 = vunpack.c.l.b16 %v3062
  %v3756 = vunpack.c.h.b16 %v3062
  %v3757 = vunpack.c.l.b16 %v3063
  %v3758 = vunpack.c.h.b16 %v3063
  %v3759 = vunpack.c.l.b16 %v3064
  %v3760 = vunpack.c.h.b16 %v3064
  %v3761 = vunpack.c.l.b16 %v3065
  %v3762 = vunpack.c.l.b16 %v3066
  %v3763 = vunpack.c.h.b16 %v3066
  %v3764 = vunpack.c.l.b16 %v3067
  %v3765 = vunpack.c.h.b16 %v3067
  %v3766 = vunpack.c.l.b16 %v3068
  %v3767 = vunpack.c.h.b16 %v3068
  %v3768 = vunpack.c.l.b16 %v3069
  %v3769 = vunpack.c.l.b16 %v3070
  %v3770 = vunpack.c.h.b16 %v3070
  %v3771 = vunpack.c.l.b16 %v3071
  %v3772 = vunpack.c.h.b16 %v3071
  %v3773 = vunpack.c.l.b16 %v3072
  %v3774 = vunpack.c.h.b16 %v3072
  %v3775 = vunpack.c.l.b16 %v3073
  %v3776 = vunpack.c.l.b16 %v3074
  %v3777 = vunpack.c.h.b16 %v3074
  %v3778 = vunpack.c.l.b16 %v3075
  %v3779 = vunpack.c.h.b16 %v3075
  %v3780 = vunpack.c.l.b16 %v3076
  %v3781 = vunpack.c.h.b16 %v3076
  %v3782 = vunpack.c.l.b16 %v3077
  %v3783 = vunpack.c.l.b16 %v3078
  %v3784 = vunpack.c.h.b16 %v3078
  %v3785 = vunpack.c.l.b16 %v3079
  %v3786 = vunpack.c.h.b16 %v3079
  %v3787 = vunpack.c.l.b16 %v3080
  %v3788 = vunpack.c.h.b16 %v3080
  %v3789 = vunpack.c.l.b16 %v3081
  %v3790 = vunpack.c.l.b16 %v3082
  %v3791 = vunpack.c.h.b16 %v3082
  %v3792 = vunpack.c.l.b16 %v3083
  %v3793 = vunpack.c.h.b16 %v3083
  %v3794 = vunpack.c.l.b16 %v3084
  %v3795 = vunpack.c.h.b16 %v3084
  %v3796 = vunpack.c.l.b16 %v3085
  %v3797 = vunpack.c.l.b16 %v3086
  %v3798 = vunpack.c.h.b16 %v3086
  %v3799 = vunpack.c.l.b16 %v3087
  %v3800 = vunpack.c.h.b16 %v3087
  %v3801 = vunpack.c.l.b16 %v3088
  %v3802 = vunpack.c.h.b16 %v3088
  %v3803 = vunpack.c.l.b16 %v3089
  %v3804 = vunpack.c.l.b16 %v3090
  %v3805 = vunpack.c.h.b16 %v3090
  %v3806 = vunpack.c.l.b16 %v3091
  %v3807 = vunpack.c.h.b16 %v3091
  %v3808 = vunpack.c.l.b16 %v3092
  %v3809 = vunpack.c.h.b16 %v3092
  %v3810 = vunpack.c.l.b16 %v3093
  %v3811 = vunpack.c.l.b16 %v3094
  %v3812 = vunpack.c.h.b16 %v3094
  %v3813 = vunpack.c.l.b16 %v3095
  %v3814 = vunpack.c.h.b16 %v3095
  %v3815 = vunpack.c.l.b16 %v3096
  %v3816 = vunpack.c.h.b16 %v3096
  %v3817 = vunpack.c.l.b16 %v3097
  %v3818 = vpack.c.b16 %v3377, %v3370
  %v3819 = vpack.c.b16 %v3378, %v3371
  %v3820 = vpack.c.b16 %v3379, %v3372
  %v3821 = vpack.c.b16 %v3380, %v3373
  %v3822 = vpack.c.b16 %v3381, %v3374
  %v3823 = vpack.c.b16 %v3382, %v3375
  %v3824 = vpack.c.b16 %v3383, %v3376
  %v3825 = vpack.c.b16 %v3391, %v3384
  %v3826 = vpack.c.b16 %v3392, %v3385
  %v3827 = vpack.c.b16 %v3393, %v3386
  %v3828 = vpack.c.b16 %v3394, %v3387
  %v3829 = vpack.c.b16 %v3395, %v3388
  %v3830 = vpack.c.b16 %v3396, %v3389
  %v3831 = vpack.c.b16 %v3397, %v3390
  %v3832 = vpack.c.b16 %v3405, %v3398
  %v3833 = vpack.c.b16 %v3406, %v3399
  %v3834 = vpack.c.b16 %v3407, %v3400
  %v3835 = vpack.c.b16 %v3408, %v3401
  %v3836 = vpack.c.b16 %v3409, %v3402
  %v3837 = vpack.c.b16 %v3410, %v3403
  %v3838 = vpack.c.b16 %v3411, %v3404
  %v3839 = vpack.c.b16 %v3419, %v3412
  %v3840 = vpack.c.b16 %v3420, %v3413
  %v3841 = vpack.c.b16 %v3421, %v3414
  %v3842 = vpack.c.b16 %v3422, %v3415
  %v3843 = vpack.c.b16 %v3423, %v3416
  %v3844 = vpack.c.b16 %v3424, %v3417
  %v3845 = vpack.c.b16 %v3425, %v3418
  %v3846 = vpack.c.b16 %v3433, %v3426
  %v3847 = vpack.c.b16 %v3434, %v3427
  %v3848 = vpack.c.b16 %v3435, %v3428
  %v3849 = vpack.c.b16 %v3436, %v3429
  %v3850 = vpack.c.b16 %v3437, %v3430
  %v3851 = vpack.c.b16 %v3438, %v3431
  %v3852 = vpack.c.b16 %v3439, %v3432
  %v3853 = vpack.c.b16 %v3447, %v3440
  %v3854 = vpack.c.b16 %v3448, %v3441
  %v3855 = vpack.c.b16 %v3449, %v3442
  %v3856 = vpack.c.b16 %v3450, %v3443
  %v3857 = vpack.c.b16 %v3451, %v3444
  %v3858 = vpack.c.b16 %v3452, %v3445
  %v3859 = vpack.c.b16 %v3453, %v3446
  %v3860 = vpack.c.b16 %v3461, %v3454
  %v3861 = vpack.c.b16 %v3462, %v3455
  %v3862 = vpack.c.b16 %v3463, %v3456
  %v3863 = vpack.c.b16 %v3464, %v3457
  %v3864 = vpack.c.b16 %v3465, %v3458
  %v3865 = vpack.c.b16 %v3466, %v3459
  %v3866 = vpack.c.b16 %v3467, %v3460
  %v3867 = vpack.c.b16 %v3475, %v3468
  %v3868 = vpack.c.b16 %v3476, %v3469
  %v3869 = vpack.c.b16 %v3477, %v3470
  %v3870 = vpack.c.b16 %v3478, %v3471
  %v3871 = vpack.c.b16 %v3479, %v3472
  %v3872 = vpack.c.b16 %v3480, %v3473
  %v3873 = vpack.c.b16 %v3481, %v3474
  %v3874 = vpack.c.b16 %v3489, %v3482
  %v3875 = vpack.c.b16 %v3490, %v3483
  %v3876 = vpack.c.b16 %v3491, %v3484
  %v3877 = vpack.c.b16 %v3492, %v3485
  %v3878 = vpack.c.b16 %v3493, %v3486
  %v3879 = vpack.c.b16 %v3494, %v3487
  %v3880 = vpack.c.b16 %v3495, %v3488
  %v3881 = vpack.c.b16 %v3503, %v3496
  %v3882 = vpack.c.b16 %v3504, %v3497
  %v3883 = vpack.c.b16 %v3505, %v3498
  %v3884 = vpack.c.b16 %v3506, %v3499
  %v3885 = vpack.c.b16 %v3507, %v3500
  %v3886 = vpack.c.b16 %v3508, %v3501
  %v3887 = vpack.c.b16 %v3509, %v3502
  %v3888 = vpack.c.b16 %v3517, %v3510
  %v3889 = vpack.c.b16 %v3518, %v3511
  %v3890 = vpack.c.b16 %v3519, %v3512
  %v3891 = vpack.c.b16 %v3520, %v3513
  %v3892 = vpack.c.b16 %v3521, %v3514
  %v3893 = vpack.c.b16 %v3522, %v3515
  %v3894 = vpack.c.b16 %v3523, %v3516
  %v3895 = vpack.c.b16 %v3531, %v3524
  %v3896 = vpack.c.b16 %v3532, %v3525
  %v3897 = vpack.c.b16 %v3533, %v3526
  %v3898 = vpack.c.b16 %v3534, %v3527
  %v3899 = vpack.c.b16 %v3535, %v3528
  %v3900 = vpack.c.b16 %v3536, %v3529
  %v3901 = vpack.c.b16 %v3537, %v3530
  %v3902 = vpack.c.b16 %v3545, %v3538
  %v3903 = vpack.c.b16 %v3546, %v3539
  %v3904 = vpack.c.b16 %v3547, %v3540
  %v3905 = vpack.c.b16 %v3548, %v3541
  %v3906 = vpack.c.b16 %v3549, %v3542
  %v3907 = vpack.c.b16 %v3550, %v3543
  %v3908 = vpack.c.b16 %v3551, %v3544
  %v3909 = vpack.c.b16 %v3559, %v3552
  %v3910 = vpack.c.b16 %v3560, %v3553
  %v3911 = vpack.c.b16 %v3561, %v3554
  %v3912 = vpack.c.b16 %v3562, %v3555
  %v3913 = vpack.c.b16 %v3563, %v3556
  %v3914 = vpack.c.b16 %v3564, %v3557
  %v3915 = vpack.c.b16 %v3565, %v3558
  %v3916 = vpack.c.b16 %v3573, %v3566
  %v3917 = vpack.c.b16 %v3574, %v3567
  %v3918 = vpack.c.b16 %v3575, %v3568
  %v3919 = vpack.c.b16 %v3576, %v3569
  %v3920 = vpack.c.b16 %v3577, %v3570
  %v3921 = vpack.c.b16 %v3578, %v3571
  %v3922 = vpack.c.b16 %v3579, %v3572
  %v3923 = vpack.c.b16 %v3587, %v3580
  %v3924 = vpack.c.b16 %v3588, %v3581
  %v3925 = vpack.c.b16 %v3589, %v3582
  %v3926 = vpack.c.b16 %v3590, %v3583
  %v3927 = vpack.c.b16 %v3591, %v3584
  %v3928 = vpack.c.b16 %v3592, %v3585
  %v3929 = vpack.c.b16 %v3593, %v3586
  %v3930 = vpack.c.b16 %v3601, %v3594
  %v3931 = vpack.c.b16 %v3602, %v3595
  %v3932 = vpack.c.b16 %v3603, %v3596
  %v3933 = vpack.c.b16 %v3604, %v3597
  %v3934 = vpack.c.b16 %v3605, %v3598
  %v3935 = vpack.c.b16 %v3606, %v3599
  %v3936 = vpack.c.b16 %v3607, %v3600
  %v3937 = vpack.c.b16 %v3615, %v3608
  %v3938 = vpack.c.b16 %v3616, %v3609
  %v3939 = vpack.c.b16 %v3617, %v3610
  %v3940 = vpack.c.b16 %v3618, %v3611
  %v3941 = vpack.c.b16 %v3619, %v3612
  %v3942 = vpack.c.b16 %v3620, %v3613
  %v3943 = vpack.c.b16 %v3621, %v3614
  %v3944 = vpack.c.b16 %v3629, %v3622
  %v3945 = vpack.c.b16 %v3630, %v3623
  %v3946 = vpack.c.b16 %v3631, %v3624
  %v3947 = vpack.c.b16 %v3632, %v3625
  %v3948 = vpack.c.b16 %v3633, %v3626
  %v3949 = vpack.c.b16 %v3634, %v3627
  %v3950 = vpack.c.b16 %v3635, %v3628
  %v3951 = vpack.c.b16 %v3643, %v3636
  %v3952 = vpack.c.b16 %v3644, %v3637
  %v3953 = vpack.c.b16 %v3645, %v3638
  %v3954 = vpack.c.b16 %v3646, %v3639
  %v3955 = vpack.c.b16 %v3647, %v3640
  %v3956 = vpack.c.b16 %v3648, %v3641
  %v3957 = vpack.c.b16 %v3649, %v3642
  %v3958 = vpack.c.b16 %v3657, %v3650
  %v3959 = vpack.c.b16 %v3658, %v3651
  %v3960 = vpack.c.b16 %v3659, %v3652
  %v3961 = vpack.c.b16 %v3660, %v3653
  %v3962 = vpack.c.b16 %v3661, %v3654
  %v3963 = vpack.c.b16 %v3662, %v3655
  %v3964 = vpack.c.b16 %v3663, %v3656
  %v3965 = vpack.c.b16 %v3671, %v3664
  %v3966 = vpack.c.b16 %v3672, %v3665
  %v3967 = vpack.c.b16 %v3673, %v3666
  %v3968 = vpack.c.b16 %v3674, %v3667
  %v3969 = vpack.c.b16 %v3675, %v3668
  %v3970 = vpack.c.b16 %v3676, %v3669
  %v3971 = vpack.c.b16 %v3677, %v3670
  %v3972 = vpack.c.b16 %v3685, %v3678
  %v3973 = vpack.c.b16 %v3686, %v3679
  %v3974 = vpack.c.b16 %v3687, %v3680
  %v3975 = vpack.c.b16 %v3688, %v3681
  %v3976 = vpack.c.b16 %v3689, %v3682
  %v3977 = vpack.c.b16 %v3690, %v3683
  %v3978 = vpack.c.b16 %v3691, %v3684
  %v3979 = vpack.c.b16 %v3699, %v3692
  %v3980 = vpack.c.b16 %v3700, %v3693
  %v3981 = vpack.c.b16 %v3701, %v3694
  %v3982 = vpack.c.b16 %v3702, %v3695
  %v3983 = vpack.c.b16 %v3703, %v3696
  %v3984 = vpack.c.b16 %v3704, %v3697
  %v3985 = vpack.c.b16 %v3705, %v3698
  %v3986 = vpack.c.b16 %v3713, %v3706
  %v3987 = vpack.c.b16 %v3714, %v3707
  %v3988 = vpack.c.b16 %v3715, %v3708
  %v3989 = vpack.c.b16 %v3716, %v3709
  %v3990 = vpack.c.b16 %v3717, %v3710
  %v3991 = vpack.c.b16 %v3718, %v3711
  %v3992 = vpack.c.b16 %v3719, %v3712
  %v3993 = vpack.c.b16 %v3727, %v3720
  %v3994 = vpack.c.b16 %v3728, %v3721
  %v3995 = vpack.c.b16 %v3729, %v3722
  %v3996 = vpack.c.b16 %v3730, %v3723
  %v3997 = vpack.c.b16 %v3731, %v3724
  %v3998 = vpack.c.b16 %v3732, %v3725
  %v3999 = vpack.c.b16 %v3733, %v3726
  %v4000 = vpack.c.b16 %v3741, %v3734
  %v4001 = vpack.c.b16 %v3742, %v3735
  %v4002 = vpack.c.b16 %v3743, %v3736
  %v4003 = vpack.c.b16 %v3744, %v3737
  %v4004 = vpack.c.b16 %v3745, %v3738
  %v4005 = vpack.c.b16 %v3746, %v3739
  %v4006 = vpack.c.b16 %v3747, %v3740
  %v4007 = vpack.c.b16 %v3755, %v3748
  %v4008 = vpack.c.b16 %v3756, %v3749
  %v4009 = vpack.c.b16 %v3757, %v3750
  %v4010 = vpack.c.b16 %v3758, %v3751
  %v4011 = vpack.c.b16 %v3759, %v3752
  %v4012 = vpack.c.b16 %v3760, %v3753
  %v4013 = vpack.c.b16 %v3761, %v3754
  %v4014 = vpack.c.b16 %v3769, %v3762
  %v4015 = vpack.c.b16 %v3770, %v3763
  %v4016 = vpack.c.b16 %v3771, %v3764
  %v4017 = vpack.c.b16 %v3772, %v3765
  %v4018 = vpack.c.b16 %v3773, %v3766
  %v4019 = vpack.c.b16 %v3774, %v3767
  %v4020 = vpack.c.b16 %v3775, %v3768
  %v4021 = vpack.c.b16 %v3783, %v3776
  %v4022 = vpack.c.b16 %v3784, %v3777
  %v4023 = vpack.c.b16 %v3785, %v3778
  %v4024 = vpack.c.b16 %v3786, %v3779
  %v4025 = vpack.c.b16 %v3787, %v3780
  %v4026 = vpack.c.b16 %v3788, %v3781
  %v4027 = vpack.c.b16 %v3789, %v3782
  %v4028 = vpack.c.b16 %v3797, %v3790
  %v4029 = vpack.c.b16 %v3798, %v3791
  %v4030 = vpack.c.b16 %v3799, %v3792
  %v4031 = vpack.c.b16 %v3800, %v3793
  %v4032 = vpack.c.b16 %v3801, %v3794
  %v4033 = vpack.c.b16 %v3802, %v3795
  %v4034 = vpack.c.b16 %v3803, %v3796
  %v4035 = vpack.c.b16 %v3811, %v3804
  %v4036 = vpack.c.b16 %v3812, %v3805
  %v4037 = vpack.c.b16 %v3813, %v3806
  %v4038 = vpack.c.b16 %v3814, %v3807
  %v4039 = vpack.c.b16 %v3815, %v3808
  %v4040 = vpack.c.b16 %v3816, %v3809
  %v4041 = vpack.c.b16 %v3817, %v3810
  %4266 = vmatpush.bf16.msra.mxu0 %v3867
  %4267 = vmatpush.bf16.msra.mxu0 %v3860
  %4268 = vmatpush.bf16.msra.mxu0 %v3853
  %4269 = vmatpush.bf16.msra.mxu0 %v3846
  %4270 = vmatpush.bf16.msra.mxu0 %v3839
  %4271 = vmatpush.bf16.msra.mxu0 %v3832
  %4272 = vmatpush.bf16.msra.mxu0 %v3825
  %4273 = vmatpush.bf16.msra.mxu0 %v3818
  %4274 = vmatmul.bf16.gmra.mxu0 %v2838
  %v4275 = vpop.f32.mrf.mxu0
  %v4276 = vadd.f32 %v3100, %v4275
  %v4277 = vpop.f32.mrf.mxu0
  %v4278 = vadd.f32 %v3100, %v4277
  %4279 = vdwg.mxu0
  %4280 = vmatpush.bf16.msra.mxu0 %v3923
  %4281 = vmatpush.bf16.msra.mxu0 %v3916
  %4282 = vmatpush.bf16.msra.mxu0 %v3909
  %4283 = vmatpush.bf16.msra.mxu0 %v3902
  %4284 = vmatpush.bf16.msra.mxu0 %v3895
  %4285 = vmatpush.bf16.msra.mxu0 %v3888
  %4286 = vmatpush.bf16.msra.mxu0 %v3881
  %4287 = vmatpush.bf16.msra.mxu0 %v3874
  %4288 = vmatmul.bf16.gmra.mxu0 %v2839
  %v4289 = vpop.f32.mrf.mxu0
  %v4290 = vadd.f32 %v4276, %v4289
  %v4291 = vpop.f32.mrf.mxu0
  %v4292 = vadd.f32 %v4278, %v4291
  %4293 = vdwg.mxu0
  %4294 = vmatpush.bf16.msra.mxu0 %v3979
  %4295 = vmatpush.bf16.msra.mxu0 %v3972
  %4296 = vmatpush.bf16.msra.mxu0 %v3965
  %4297 = vmatpush.bf16.msra.mxu0 %v3958
  %4298 = vmatpush.bf16.msra.mxu0 %v3951
  %4299 = vmatpush.bf16.msra.mxu0 %v3944
  %4300 = vmatpush.bf16.msra.mxu0 %v3937
  %4301 = vmatpush.bf16.msra.mxu0 %v3930
  %4302 = vmatmul.bf16.gmra.mxu0 %v2840
  %v4303 = vpop.f32.mrf.mxu0
  %v4304 = vadd.f32 %v4290, %v4303
  %v4305 = vpop.f32.mrf.mxu0
  %v4306 = vadd.f32 %v4292, %v4305
  %4307 = vdwg.mxu0
  %4308 = vmatpush.bf16.msra.mxu0 %v4035
  %4309 = vmatpush.bf16.msra.mxu0 %v4028
  %4310 = vmatpush.bf16.msra.mxu0 %v4021
  %4311 = vmatpush.bf16.msra.mxu0 %v4014
  %4312 = vmatpush.bf16.msra.mxu0 %v4007
  %4313 = vmatpush.bf16.msra.mxu0 %v4000
  %4314 = vmatpush.bf16.msra.mxu0 %v3993
  %4315 = vmatpush.bf16.msra.mxu0 %v3986
  %4316 = vmatmul.bf16.gmra.mxu0 %v2841
  %v4317 = vpop.f32.mrf.mxu0
  %v4318 = vadd.f32 %v4304, %v4317
  %v4319 = vpop.f32.mrf.mxu0
  %v4320 = vadd.f32 %v4306, %v4319
  %4321 = vdwg.mxu0
  %4322 = vmatpush.bf16.msra.mxu0 %v3868
  %4323 = vmatpush.bf16.msra.mxu0 %v3861
  %4324 = vmatpush.bf16.msra.mxu0 %v3854
  %4325 = vmatpush.bf16.msra.mxu0 %v3847
  %4326 = vmatpush.bf16.msra.mxu0 %v3840
  %4327 = vmatpush.bf16.msra.mxu0 %v3833
  %4328 = vmatpush.bf16.msra.mxu0 %v3826
  %4329 = vmatpush.bf16.msra.mxu0 %v3819
  %4330 = vmatmul.bf16.gmra.mxu0 %v2838
  %v4331 = vpop.f32.mrf.mxu0
  %v4332 = vadd.f32 %v3101, %v4331
  %v4333 = vpop.f32.mrf.mxu0
  %v4334 = vadd.f32 %v3101, %v4333
  %4335 = vdwg.mxu0
  %4336 = vmatpush.bf16.msra.mxu0 %v3924
  %4337 = vmatpush.bf16.msra.mxu0 %v3917
  %4338 = vmatpush.bf16.msra.mxu0 %v3910
  %4339 = vmatpush.bf16.msra.mxu0 %v3903
  %4340 = vmatpush.bf16.msra.mxu0 %v3896
  %4341 = vmatpush.bf16.msra.mxu0 %v3889
  %4342 = vmatpush.bf16.msra.mxu0 %v3882
  %4343 = vmatpush.bf16.msra.mxu0 %v3875
  %4344 = vmatmul.bf16.gmra.mxu0 %v2839
  %v4345 = vpop.f32.mrf.mxu0
  %v4346 = vadd.f32 %v4332, %v4345
  %v4347 = vpop.f32.mrf.mxu0
  %v4348 = vadd.f32 %v4334, %v4347
  %4349 = vdwg.mxu0
  %4350 = vmatpush.bf16.msra.mxu0 %v3980
  %4351 = vmatpush.bf16.msra.mxu0 %v3973
  %4352 = vmatpush.bf16.msra.mxu0 %v3966
  %4353 = vmatpush.bf16.msra.mxu0 %v3959
  %4354 = vmatpush.bf16.msra.mxu0 %v3952
  %4355 = vmatpush.bf16.msra.mxu0 %v3945
  %4356 = vmatpush.bf16.msra.mxu0 %v3938
  %4357 = vmatpush.bf16.msra.mxu0 %v3931
  %4358 = vmatmul.bf16.gmra.mxu0 %v2840
  %v4359 = vpop.f32.mrf.mxu0
  %v4360 = vadd.f32 %v4346, %v4359
  %v4361 = vpop.f32.mrf.mxu0
  %v4362 = vadd.f32 %v4348, %v4361
  %4363 = vdwg.mxu0
  %4364 = vmatpush.bf16.msra.mxu0 %v4036
  %4365 = vmatpush.bf16.msra.mxu0 %v4029
  %4366 = vmatpush.bf16.msra.mxu0 %v4022
  %4367 = vmatpush.bf16.msra.mxu0 %v4015
  %4368 = vmatpush.bf16.msra.mxu0 %v4008
  %4369 = vmatpush.bf16.msra.mxu0 %v4001
  %4370 = vmatpush.bf16.msra.mxu0 %v3994
  %4371 = vmatpush.bf16.msra.mxu0 %v3987
  %4372 = vmatmul.bf16.gmra.mxu0 %v2841
  %v4373 = vpop.f32.mrf.mxu0
  %v4374 = vadd.f32 %v4360, %v4373
  %v4375 = vpop.f32.mrf.mxu0
  %v4376 = vadd.f32 %v4362, %v4375
  %4377 = vdwg.mxu0
  %4378 = vmatpush.bf16.msra.mxu0 %v3869
  %4379 = vmatpush.bf16.msra.mxu0 %v3862
  %4380 = vmatpush.bf16.msra.mxu0 %v3855
  %4381 = vmatpush.bf16.msra.mxu0 %v3848
  %4382 = vmatpush.bf16.msra.mxu0 %v3841
  %4383 = vmatpush.bf16.msra.mxu0 %v3834
  %4384 = vmatpush.bf16.msra.mxu0 %v3827
  %4385 = vmatpush.bf16.msra.mxu0 %v3820
  %4386 = vmatmul.bf16.gmra.mxu0 %v2838
  %v4387 = vpop.f32.mrf.mxu0
  %v4388 = vadd.f32 %v3102, %v4387
  %v4389 = vpop.f32.mrf.mxu0
  %v4390 = vadd.f32 %v3102, %v4389
  %4391 = vdwg.mxu0
  %4392 = vmatpush.bf16.msra.mxu0 %v3925
  %4393 = vmatpush.bf16.msra.mxu0 %v3918
  %4394 = vmatpush.bf16.msra.mxu0 %v3911
  %4395 = vmatpush.bf16.msra.mxu0 %v3904
  %4396 = vmatpush.bf16.msra.mxu0 %v3897
  %4397 = vmatpush.bf16.msra.mxu0 %v3890
  %4398 = vmatpush.bf16.msra.mxu0 %v3883
  %4399 = vmatpush.bf16.msra.mxu0 %v3876
  %4400 = vmatmul.bf16.gmra.mxu0 %v2839
  %v4401 = vpop.f32.mrf.mxu0
  %v4402 = vadd.f32 %v4388, %v4401
  %v4403 = vpop.f32.mrf.mxu0
  %v4404 = vadd.f32 %v4390, %v4403
  %4405 = vdwg.mxu0
  %4406 = vmatpush.bf16.msra.mxu0 %v3981
  %4407 = vmatpush.bf16.msra.mxu0 %v3974
  %4408 = vmatpush.bf16.msra.mxu0 %v3967
  %4409 = vmatpush.bf16.msra.mxu0 %v3960
  %4410 = vmatpush.bf16.msra.mxu0 %v3953
  %4411 = vmatpush.bf16.msra.mxu0 %v3946
  %4412 = vmatpush.bf16.msra.mxu0 %v3939
  %4413 = vmatpush.bf16.msra.mxu0 %v3932
  %4414 = vmatmul.bf16.gmra.mxu0 %v2840
  %v4415 = vpop.f32.mrf.mxu0
  %v4416 = vadd.f32 %v4402, %v4415
  %v4417 = vpop.f32.mrf.mxu0
  %v4418 = vadd.f32 %v4404, %v4417
  %4419 = vdwg.mxu0
  %4420 = vmatpush.bf16.msra.mxu0 %v4037
  %4421 = vmatpush.bf16.msra.mxu0 %v4030
  %4422 = vmatpush.bf16.msra.mxu0 %v4023
  %4423 = vmatpush.bf16.msra.mxu0 %v4016
  %4424 = vmatpush.bf16.msra.mxu0 %v4009
  %4425 = vmatpush.bf16.msra.mxu0 %v4002
  %4426 = vmatpush.bf16.msra.mxu0 %v3995
  %4427 = vmatpush.bf16.msra.mxu0 %v3988
  %4428 = vmatmul.bf16.gmra.mxu0 %v2841
  %v4429 = vpop.f32.mrf.mxu0
  %v4430 = vadd.f32 %v4416, %v4429
  %v4431 = vpop.f32.mrf.mxu0
  %v4432 = vadd.f32 %v4418, %v4431
  %4433 = vdwg.mxu0
  %4434 = vmatpush.bf16.msra.mxu0 %v3870
  %4435 = vmatpush.bf16.msra.mxu0 %v3863
  %4436 = vmatpush.bf16.msra.mxu0 %v3856
  %4437 = vmatpush.bf16.msra.mxu0 %v3849
  %4438 = vmatpush.bf16.msra.mxu0 %v3842
  %4439 = vmatpush.bf16.msra.mxu0 %v3835
  %4440 = vmatpush.bf16.msra.mxu0 %v3828
  %4441 = vmatpush.bf16.msra.mxu0 %v3821
  %4442 = vmatmul.bf16.gmra.mxu0 %v2838
  %v4443 = vpop.f32.mrf.mxu0
  %v4444 = vadd.f32 %v3103, %v4443
  %v4445 = vpop.f32.mrf.mxu0
  %v4446 = vadd.f32 %v3103, %v4445
  %4447 = vdwg.mxu0
  %4448 = vmatpush.bf16.msra.mxu0 %v3926
  %4449 = vmatpush.bf16.msra.mxu0 %v3919
  %4450 = vmatpush.bf16.msra.mxu0 %v3912
  %4451 = vmatpush.bf16.msra.mxu0 %v3905
  %4452 = vmatpush.bf16.msra.mxu0 %v3898
  %4453 = vmatpush.bf16.msra.mxu0 %v3891
  %4454 = vmatpush.bf16.msra.mxu0 %v3884
  %4455 = vmatpush.bf16.msra.mxu0 %v3877
  %4456 = vmatmul.bf16.gmra.mxu0 %v2839
  %v4457 = vpop.f32.mrf.mxu0
  %v4458 = vadd.f32 %v4444, %v4457
  %v4459 = vpop.f32.mrf.mxu0
  %v4460 = vadd.f32 %v4446, %v4459
  %4461 = vdwg.mxu0
  %4462 = vmatpush.bf16.msra.mxu0 %v3982
  %4463 = vmatpush.bf16.msra.mxu0 %v3975
  %4464 = vmatpush.bf16.msra.mxu0 %v3968
  %4465 = vmatpush.bf16.msra.mxu0 %v3961
  %4466 = vmatpush.bf16.msra.mxu0 %v3954
  %4467 = vmatpush.bf16.msra.mxu0 %v3947
  %4468 = vmatpush.bf16.msra.mxu0 %v3940
  %4469 = vmatpush.bf16.msra.mxu0 %v3933
  %4470 = vmatmul.bf16.gmra.mxu0 %v2840
  %v4471 = vpop.f32.mrf.mxu0
  %v4472 = vadd.f32 %v4458, %v4471
  %v4473 = vpop.f32.mrf.mxu0
  %v4474 = vadd.f32 %v4460, %v4473
  %4475 = vdwg.mxu0
  %4476 = vmatpush.bf16.msra.mxu0 %v4038
  %4477 = vmatpush.bf16.msra.mxu0 %v4031
  %4478 = vmatpush.bf16.msra.mxu0 %v4024
  %4479 = vmatpush.bf16.msra.mxu0 %v4017
  %4480 = vmatpush.bf16.msra.mxu0 %v4010
  %4481 = vmatpush.bf16.msra.mxu0 %v4003
  %4482 = vmatpush.bf16.msra.mxu0 %v3996
  %4483 = vmatpush.bf16.msra.mxu0 %v3989
  %4484 = vmatmul.bf16.gmra.mxu0 %v2841
  %v4485 = vpop.f32.mrf.mxu0
  %v4486 = vadd.f32 %v4472, %v4485
  %v4487 = vpop.f32.mrf.mxu0
  %v4488 = vadd.f32 %v4474, %v4487
  %4489 = vdwg.mxu0
  %4490 = vmatpush.bf16.msra.mxu0 %v3871
  %4491 = vmatpush.bf16.msra.mxu0 %v3864
  %4492 = vmatpush.bf16.msra.mxu0 %v3857
  %4493 = vmatpush.bf16.msra.mxu0 %v3850
  %4494 = vmatpush.bf16.msra.mxu0 %v3843
  %4495 = vmatpush.bf16.msra.mxu0 %v3836
  %4496 = vmatpush.bf16.msra.mxu0 %v3829
  %4497 = vmatpush.bf16.msra.mxu0 %v3822
  %4498 = vmatmul.bf16.gmra.mxu0 %v2838
  %v4499 = vpop.f32.mrf.mxu0
  %v4500 = vadd.f32 %v3104, %v4499
  %v4501 = vpop.f32.mrf.mxu0
  %v4502 = vadd.f32 %v3104, %v4501
  %4503 = vdwg.mxu0
  %4504 = vmatpush.bf16.msra.mxu0 %v3927
  %4505 = vmatpush.bf16.msra.mxu0 %v3920
  %4506 = vmatpush.bf16.msra.mxu0 %v3913
  %4507 = vmatpush.bf16.msra.mxu0 %v3906
  %4508 = vmatpush.bf16.msra.mxu0 %v3899
  %4509 = vmatpush.bf16.msra.mxu0 %v3892
  %4510 = vmatpush.bf16.msra.mxu0 %v3885
  %4511 = vmatpush.bf16.msra.mxu0 %v3878
  %4512 = vmatmul.bf16.gmra.mxu0 %v2839
  %v4513 = vpop.f32.mrf.mxu0
  %v4514 = vadd.f32 %v4500, %v4513
  %v4515 = vpop.f32.mrf.mxu0
  %v4516 = vadd.f32 %v4502, %v4515
  %4517 = vdwg.mxu0
  %4518 = vmatpush.bf16.msra.mxu0 %v3983
  %4519 = vmatpush.bf16.msra.mxu0 %v3976
  %4520 = vmatpush.bf16.msra.mxu0 %v3969
  %4521 = vmatpush.bf16.msra.mxu0 %v3962
  %4522 = vmatpush.bf16.msra.mxu0 %v3955
  %4523 = vmatpush.bf16.msra.mxu0 %v3948
  %4524 = vmatpush.bf16.msra.mxu0 %v3941
  %4525 = vmatpush.bf16.msra.mxu0 %v3934
  %4526 = vmatmul.bf16.gmra.mxu0 %v2840
  %v4527 = vpop.f32.mrf.mxu0
  %v4528 = vadd.f32 %v4514, %v4527
  %v4529 = vpop.f32.mrf.mxu0
  %v4530 = vadd.f32 %v4516, %v4529
  %4531 = vdwg.mxu0
  %4532 = vmatpush.bf16.msra.mxu0 %v4039
  %4533 = vmatpush.bf16.msra.mxu0 %v4032
  %4534 = vmatpush.bf16.msra.mxu0 %v4025
  %4535 = vmatpush.bf16.msra.mxu0 %v4018
  %4536 = vmatpush.bf16.msra.mxu0 %v4011
  %4537 = vmatpush.bf16.msra.mxu0 %v4004
  %4538 = vmatpush.bf16.msra.mxu0 %v3997
  %4539 = vmatpush.bf16.msra.mxu0 %v3990
  %4540 = vmatmul.bf16.gmra.mxu0 %v2841
  %v4541 = vpop.f32.mrf.mxu0
  %v4542 = vadd.f32 %v4528, %v4541
  %v4543 = vpop.f32.mrf.mxu0
  %v4544 = vadd.f32 %v4530, %v4543
  %4545 = vdwg.mxu0
  %4546 = vmatpush.bf16.msra.mxu0 %v3872
  %4547 = vmatpush.bf16.msra.mxu0 %v3865
  %4548 = vmatpush.bf16.msra.mxu0 %v3858
  %4549 = vmatpush.bf16.msra.mxu0 %v3851
  %4550 = vmatpush.bf16.msra.mxu0 %v3844
  %4551 = vmatpush.bf16.msra.mxu0 %v3837
  %4552 = vmatpush.bf16.msra.mxu0 %v3830
  %4553 = vmatpush.bf16.msra.mxu0 %v3823
  %4554 = vmatmul.bf16.gmra.mxu0 %v2838
  %v4555 = vpop.f32.mrf.mxu0
  %v4556 = vadd.f32 %v3105, %v4555
  %v4557 = vpop.f32.mrf.mxu0
  %v4558 = vadd.f32 %v3105, %v4557
  %4559 = vdwg.mxu0
  %4560 = vmatpush.bf16.msra.mxu0 %v3928
  %4561 = vmatpush.bf16.msra.mxu0 %v3921
  %4562 = vmatpush.bf16.msra.mxu0 %v3914
  %4563 = vmatpush.bf16.msra.mxu0 %v3907
  %4564 = vmatpush.bf16.msra.mxu0 %v3900
  %4565 = vmatpush.bf16.msra.mxu0 %v3893
  %4566 = vmatpush.bf16.msra.mxu0 %v3886
  %4567 = vmatpush.bf16.msra.mxu0 %v3879
  %4568 = vmatmul.bf16.gmra.mxu0 %v2839
  %v4569 = vpop.f32.mrf.mxu0
  %v4570 = vadd.f32 %v4556, %v4569
  %v4571 = vpop.f32.mrf.mxu0
  %v4572 = vadd.f32 %v4558, %v4571
  %4573 = vdwg.mxu0
  %4574 = vmatpush.bf16.msra.mxu0 %v3984
  %4575 = vmatpush.bf16.msra.mxu0 %v3977
  %4576 = vmatpush.bf16.msra.mxu0 %v3970
  %4577 = vmatpush.bf16.msra.mxu0 %v3963
  %4578 = vmatpush.bf16.msra.mxu0 %v3956
  %4579 = vmatpush.bf16.msra.mxu0 %v3949
  %4580 = vmatpush.bf16.msra.mxu0 %v3942
  %4581 = vmatpush.bf16.msra.mxu0 %v3935
  %4582 = vmatmul.bf16.gmra.mxu0 %v2840
  %v4583 = vpop.f32.mrf.mxu0
  %v4584 = vadd.f32 %v4570, %v4583
  %v4585 = vpop.f32.mrf.mxu0
  %v4586 = vadd.f32 %v4572, %v4585
  %4587 = vdwg.mxu0
  %4588 = vmatpush.bf16.msra.mxu0 %v4040
  %4589 = vmatpush.bf16.msra.mxu0 %v4033
  %4590 = vmatpush.bf16.msra.mxu0 %v4026
  %4591 = vmatpush.bf16.msra.mxu0 %v4019
  %4592 = vmatpush.bf16.msra.mxu0 %v4012
  %4593 = vmatpush.bf16.msra.mxu0 %v4005
  %4594 = vmatpush.bf16.msra.mxu0 %v3998
  %4595 = vmatpush.bf16.msra.mxu0 %v3991
  %4596 = vmatmul.bf16.gmra.mxu0 %v2841
  %v4597 = vpop.f32.mrf.mxu0
  %v4598 = vadd.f32 %v4584, %v4597
  %v4599 = vpop.f32.mrf.mxu0
  %v4600 = vadd.f32 %v4586, %v4599
  %4601 = vdwg.mxu0
  %4602 = vmatpush.bf16.msra.mxu0 %v3873
  %4603 = vmatpush.bf16.msra.mxu0 %v3866
  %4604 = vmatpush.bf16.msra.mxu0 %v3859
  %4605 = vmatpush.bf16.msra.mxu0 %v3852
  %4606 = vmatpush.bf16.msra.mxu0 %v3845
  %4607 = vmatpush.bf16.msra.mxu0 %v3838
  %4608 = vmatpush.bf16.msra.mxu0 %v3831
  %4609 = vmatpush.bf16.msra.mxu0 %v3824
  %4610 = vmatmul.bf16.gmra.mxu0 %v2838
  %v4611 = vpop.f32.mrf.mxu0
  %v4612 = vadd.f32 %v3106, %v4611
  %v4613 = vpop.f32.mrf.mxu0
  %v4614 = vadd.f32 %v3106, %v4613
  %4615 = vdwg.mxu0
  %4616 = vmatpush.bf16.msra.mxu0 %v3929
  %4617 = vmatpush.bf16.msra.mxu0 %v3922
  %4618 = vmatpush.bf16.msra.mxu0 %v3915
  %4619 = vmatpush.bf16.msra.mxu0 %v3908
  %4620 = vmatpush.bf16.msra.mxu0 %v3901
  %4621 = vmatpush.bf16.msra.mxu0 %v3894
  %4622 = vmatpush.bf16.msra.mxu0 %v3887
  %4623 = vmatpush.bf16.msra.mxu0 %v3880
  %4624 = vmatmul.bf16.gmra.mxu0 %v2839
  %v4625 = vpop.f32.mrf.mxu0
  %v4626 = vadd.f32 %v4612, %v4625
  %v4627 = vpop.f32.mrf.mxu0
  %v4628 = vadd.f32 %v4614, %v4627
  %4629 = vdwg.mxu0
  %4630 = vmatpush.bf16.msra.mxu0 %v3985
  %4631 = vmatpush.bf16.msra.mxu0 %v3978
  %4632 = vmatpush.bf16.msra.mxu0 %v3971
  %4633 = vmatpush.bf16.msra.mxu0 %v3964
  %4634 = vmatpush.bf16.msra.mxu0 %v3957
  %4635 = vmatpush.bf16.msra.mxu0 %v3950
  %4636 = vmatpush.bf16.msra.mxu0 %v3943
  %4637 = vmatpush.bf16.msra.mxu0 %v3936
  %4638 = vmatmul.bf16.gmra.mxu0 %v2840
  %v4639 = vpop.f32.mrf.mxu0
  %v4640 = vadd.f32 %v4626, %v4639
  %v4641 = vpop.f32.mrf.mxu0
  %v4642 = vadd.f32 %v4628, %v4641
  %4643 = vdwg.mxu0
  %4644 = vmatpush.bf16.msra.mxu0 %v4041
  %4645 = vmatpush.bf16.msra.mxu0 %v4034
  %4646 = vmatpush.bf16.msra.mxu0 %v4027
  %4647 = vmatpush.bf16.msra.mxu0 %v4020
  %4648 = vmatpush.bf16.msra.mxu0 %v4013
  %4649 = vmatpush.bf16.msra.mxu0 %v4006
  %4650 = vmatpush.bf16.msra.mxu0 %v3999
  %4651 = vmatpush.bf16.msra.mxu0 %v3992
  %4652 = vmatmul.bf16.gmra.mxu0 %v2841
  %v4653 = vpop.f32.mrf.mxu0
  %v4654 = vadd.f32 %v4640, %v4653
  %v4655 = vpop.f32.mrf.mxu0
  %v4656 = vadd.f32 %v4642, %v4655
  %4657 = vdwg.mxu0
  %v4658 = vmul.f32 %v4318, 0.5
  %v4659 = vmul.f32 %v4374, 0.5
  %v4660 = vmul.f32 %v4430, 0.5
  %v4661 = vmul.f32 %v4486, 0.5
  %v4662 = vmul.f32 %v4542, 0.5
  %v4663 = vmul.f32 %v4598, 0.5
  %v4664 = vmul.f32 %v4654, 0.5
  %v4665 = vmul.f32 %v4320, 0.5
  %v4666 = vmul.f32 %v4376, 0.5
  %v4667 = vmul.f32 %v4432, 0.5
  %v4668 = vmul.f32 %v4488, 0.5
  %v4669 = vmul.f32 %v4544, 0.5
  %v4670 = vmul.f32 %v4600, 0.5
  %v4671 = vmul.f32 %v4656, 0.5
  %v4672 = vtanh.pop %v4658
  %v4673 = vtanh.pop %v4659
  %v4674 = vtanh.pop %v4660
  %v4675 = vtanh.pop %v4661
  %v4676 = vtanh.pop %v4662
  %v4677 = vtanh.pop %v4663
  %v4678 = vtanh.pop %v4664
  %v4679 = vtanh.pop %v4665
  %v4680 = vtanh.pop %v4666
  %v4681 = vtanh.pop %v4667
  %v4682 = vtanh.pop %v4668
  %v4683 = vtanh.pop %v4669
  %v4684 = vtanh.pop %v4670
  %v4685 = vtanh.pop %v4671
  %v4686 = vmul.f32 %v4672, 0.5
  %v4687 = vmul.f32 %v4673, 0.5
  %v4688 = vmul.f32 %v4674, 0.5
  %v4689 = vmul.f32 %v4675, 0.5
  %v4690 = vmul.f32 %v4676, 0.5
  %v4691 = vmul.f32 %v4677, 0.5
  %v4692 = vmul.f32 %v4678, 0.5
  %v4693 = vmul.f32 %v4679, 0.5
  %v4694 = vmul.f32 %v4680, 0.5
  %v4695 = vmul.f32 %v4681, 0.5
  %v4696 = vmul.f32 %v4682, 0.5
  %v4697 = vmul.f32 %v4683, 0.5
  %v4698 = vmul.f32 %v4684, 0.5
  %v4699 = vmul.f32 %v4685, 0.5
  %v4700 = vadd.f32 %v4686, 0.5
  %v4701 = vadd.f32 %v4687, 0.5
  %v4702 = vadd.f32 %v4688, 0.5
  %v4703 = vadd.f32 %v4689, 0.5
  %v4704 = vadd.f32 %v4690, 0.5
  %v4705 = vadd.f32 %v4691, 0.5
  %v4706 = vadd.f32 %v4692, 0.5
  %v4707 = vadd.f32 %v4693, 0.5
  %v4708 = vadd.f32 %v4694, 0.5
  %v4709 = vadd.f32 %v4695, 0.5
  %v4710 = vadd.f32 %v4696, 0.5
  %v4711 = vadd.f32 %v4697, 0.5
  %v4712 = vadd.f32 %v4698, 0.5
  %v4713 = vadd.f32 %v4699, 0.5
  %4714 = vst [vmem:[%s7] sm:$0xff] %v4700
  %4715 = vst [vmem:[%s7 + $0x8] sm:$0xff] %v4701
  %4716 = vst [vmem:[%s7 + $0x10] sm:$0xff] %v4702
  %4717 = vst [vmem:[%s7 + $0x18] sm:$0xff] %v4703
  %4718 = vst [vmem:[%s7 + $0x20] sm:$0xff] %v4704
  %4719 = vst [vmem:[%s7 + $0x28] sm:$0xff] %v4705
  %4720 = vst [vmem:[%s7 + $0x30] sm:$0xff] %v4706
  %4721 = vst [vmem:[%s7 + $0x38] sm:$0xff] %v4707
  %4722 = vst [vmem:[%s7 + $0x40] sm:$0xff] %v4708
  %4723 = vst [vmem:[%s7 + $0x48] sm:$0xff] %v4709
  %4724 = vst [vmem:[%s7 + $0x50] sm:$0xff] %v4710
  %4725 = vst [vmem:[%s7 + $0x58] sm:$0xff] %v4711
  %4726 = vst [vmem:[%s7 + $0x60] sm:$0xff] %v4712
  %4727 = vst [vmem:[%s7 + $0x68] sm:$0xff] %v4713
  // Predicated region
  $region30: #{autoencoder_forward.1} parent=0 // pred_check
    _
  $region31: #{autoencoder_forward.1} parent=0 // pred_check_branch
    %4729 = sbr.rel (0) target = $region33
  $region32: #{autoencoder_forward.1} parent=0 // pred_region
    _
  $region33: #{autoencoder_forward.1} parent=0 // pred_fallthru
    _
  // Predicated region
  $region34: #{autoencoder_forward.1} parent=0 // pred_check
    _
  $region35: #{autoencoder_forward.1} parent=0 // pred_check_branch
    %4731 = sbr.rel (0) target = $region37
  $region36: #{autoencoder_forward.1} parent=0 // pred_region
    _
  $region37: #{autoencoder_forward.1} parent=0 // pred_fallthru
    _

</llo_original>
